<compile_context>
chip_gen: v7x
topology: tpu7x:2x2x1
jax: 0.10.0
libtpu: 0.0.40
codegen_flags: <defaults>
</compile_context>

<pallas_src>
import functools

import numpy as np
import jax
import jax.numpy as jnp
from jax.experimental import pallas as pl
from jax.experimental.pallas import tpu as pltpu

# ----------------------------- model hyper-params -----------------------------
INPUT_SIZE = 16        # frequency bins
OUTPUT_SIZE = 32       # conv-stack FC output size
K = 3                  # conv kernel size
C1, S1 = 4, 2
C2, S2 = 8, 2
C3, S3 = 8, 2

F0 = INPUT_SIZE
F1 = (F0 + 2 * (K // 2) - K) // S1 + 1      # 8
F2 = (F1 + 2 * (K // 2) - K) // S2 + 1      # 4
F3 = (F2 + 2 * (K // 2) - K) // S3 + 1      # 2

LANES = 128
PAD_W = 32                                  # per-time-tap column width in the im2col scratch
TAP_PREV, TAP_CUR, TAP_NEXT = 0, PAD_W, 2 * PAD_W
AUX_OFF = 3 * PAD_W                         # 96: note-attrib columns used by the FC dot
AUX_W = 8                                   # [attr0, attr1, attr2, not_last, not_first, 0, 0, 0]

NG = 4 + 1             # group_size + 1
NT = 9 + 1             # tech_size + 1
NF = 24 + 1            # final_tech_size + 1
NOUT = NG + NT + NF    # 40 real logit columns inside the 128-lane output slab

GROUP_TO_TECH = {0: [0], 1: [1], 2: [2, 3, 4], 3: [5, 6, 7], 4: [8, 9]}
TECH_TO_FINAL = {0: [0], 1: [1, 19], 2: [2, 3, 4],
                 3: [5, 6, 7, 8, 9, 10, 11, 12, 20, 21, 22, 24],
                 4: [13], 5: [17], 6: [15], 7: [18], 8: [16], 9: [14, 23]}

# packed-constant row layout (consts: [40, 128] f32)
ROW_BH, ROW_SC, ROW_SH, ROW_GOV, ROW_TOF, ROW_WH = 0, 1, 2, 3, 4, 8
CONST_ROWS = ROW_WH + OUTPUT_SIZE           # 40 (multiple of 8)


def _invert(mapping, n):
    out = [-1] * n
    for parent, children in mapping.items():
        for c in children:
            out[c] = parent
    return out


# ----------------------------- fused Pallas kernel -----------------------------
def fused_forward_kernel(x_ref, aux_ref, wstack_ref, consts_ref, out_ref, col_ref):
    """Whole CNNNet forward for one batch tile (Bb*T rows); intermediates stay in VMEM."""
    M = x_ref.shape[0]
    f32 = jnp.float32

    aux = aux_ref[...]                       # (M, 8)
    not_last = aux[:, 3:4]                   # 0.0 where t == T-1 (per batch element)
    not_first = aux[:, 4:5]                  # 0.0 where t == 0

    # Zero only what a dot could read but nothing writes earlier in this step:
    #  * the spare lane tail 96:128 (96:104 is re-filled with aux before the FC dot),
    #  * the first row's "prev" tap and the last row's "next" tap (shifted stores skip them).
    col_ref[:, AUX_OFF:LANES] = jnp.zeros((M, LANES - AUX_OFF), f32)
    col_ref[0:1, TAP_PREV:TAP_PREV + PAD_W] = jnp.zeros((1, PAD_W), f32)
    col_ref[M - 1:M, TAP_NEXT:TAP_NEXT + PAD_W] = jnp.zeros((1, PAD_W), f32)

    def scatter_taps(v):
        # time-im2col: col row r holds [v[r-1] | v[r] | v[r+1]] with cross-element leakage masked.
        col_ref[pl.ds(1, M - 1), TAP_PREV:TAP_PREV + PAD_W] = (v * not_last)[0:M - 1]
        col_ref[:, TAP_CUR:TAP_CUR + PAD_W] = v
        col_ref[pl.ds(0, M - 1), TAP_NEXT:TAP_NEXT + PAD_W] = (v * not_first)[1:M]

    def conv_layer(layer):
        # one K=128 MXU dot per conv layer (3 taps fused); folded BatchNorm + bias, then ReLU
        sc = consts_ref[ROW_SC:ROW_SC + 1, layer * PAD_W:(layer + 1) * PAD_W]
        sh = consts_ref[ROW_SH:ROW_SH + 1, layer * PAD_W:(layer + 1) * PAD_W]
        acc = jnp.dot(col_ref[...], wstack_ref[layer], preferred_element_type=f32)   # (M, 32)
        return jnp.maximum(acc * sc + sh, 0.0)

    # conv stack: x is zero-padded to 32 lanes host-side so every scatter is 32 wide
    scatter_taps(x_ref[...])
    h = conv_layer(0)                        # [M, 16] -> [M, 32]
    scatter_taps(h)
    h = conv_layer(1)                        # [M, 32] -> [M, 32]
    scatter_taps(h)
    h = conv_layer(2)                        # [M, 32] -> [M, 32] (cols 16:32 are zero padding)

    # FC (19 -> 32): conv features + note attribs folded into ONE K=128 dot.
    # Stale prev/next tap columns hit zero weight rows and contribute nothing.
    col_ref[:, TAP_CUR:TAP_CUR + PAD_W] = h
    col_ref[:, AUX_OFF:AUX_OFF + AUX_W] = aux
    bfc = consts_ref[ROW_SC:ROW_SC + 1, 3 * PAD_W:4 * PAD_W]
    y = jnp.maximum(
        jnp.dot(col_ref[...], wstack_ref[3], preferred_element_type=f32) + bfc, 0.0)  # (M, 32)

    # hierarchical head: single merged [32, 128] matmul (wg|wt|wf zero-padded to 128 lanes)
    wh = consts_ref[ROW_WH:ROW_WH + OUTPUT_SIZE, :]
    bh = consts_ref[ROW_BH:ROW_BH + 1, :]
    z = jnp.dot(y, wh, preferred_element_type=f32) + bh                               # (M, 128)

    cols = jax.lax.broadcasted_iota(jnp.int32, (M, LANES), 1)

    def masked_argmax(vals, col_mask):
        # first-occurrence argmax (matches torch.argmax) restricted to col_mask, int32 keepdims
        mv = jnp.where(col_mask, vals, -jnp.inf)
        mmax = jnp.max(mv, axis=-1, keepdims=True)
        cand = jnp.where(mv == mmax, cols, LANES)
        return jnp.min(cand, axis=-1, keepdims=True)

    gmask = cols < NG
    tmask = jnp.logical_and(cols >= NG, cols < NG + NT)

    gov = consts_ref[ROW_GOV:ROW_GOV + 1, :]   # per-column parent group id (tech cols), else -1
    tof = consts_ref[ROW_TOF:ROW_TOF + 1, :]   # per-column parent tech id (final cols), else -1

    gp = masked_argmax(z, gmask).astype(f32)             # [M, 1] group prediction
    t_gated = jnp.where(gp == gov, z, 0.0)                # torch zero-fill gating of tech logits
    tp = (masked_argmax(t_gated, tmask) - NG).astype(f32)  # [M, 1] tech prediction
    f_gated = jnp.where(tp == tof, z, 0.0)                # gated final-tech logits

    # one full-width, lane-dense store: [group | gated tech | gated final | zeros]
    out_ref[...] = jnp.where(gmask, z, 0.0) + t_gated + f_gated


# ----------------------------- forward wrapper ----------------------------------
def _pick_batch_tile(B, T):
    bb = max(1, min(B, 256 // max(T, 1)))        # target M = Bb*T in the 128-256 row range
    if B >= 2:
        bb = min(bb, pl.cdiv(B, 2))              # keep >= 2 grid steps (v7x has 2 TensorCores)
    bb = max(bb, 1)
    if (bb * T) % 8 != 0:
        bb = B                                   # fall back to a full-array block (sublane rule)
    return bb


def cnn_net_forward(params, padded_cqt, frame_level_note_attribs, note_attribs):
    B, T, F = padded_cqt.shape
    assert F == INPUT_SIZE
    f32 = jnp.float32

    Bb = _pick_batch_tile(B, T)
    B_pad = pl.cdiv(B, Bb) * Bb
    M = Bb * T

    # inputs flattened to (rows, lanes); x zero-padded to the 32-lane tap width
    x = jnp.zeros((B_pad, T, PAD_W), f32).at[:B, :, :F].set(padded_cqt.astype(f32))
    t_idx = jnp.arange(T)
    aux = jnp.zeros((B_pad, T, AUX_W), f32)
    aux = aux.at[:B, :, 0:3].set(frame_level_note_attribs.astype(f32))
    aux = aux.at[:, :, 3].set((t_idx != T - 1).astype(f32))    # not_last  (time halo mask)
    aux = aux.at[:, :, 4].set((t_idx != 0).astype(f32))        # not_first (time halo mask)

    x2 = x.reshape(B_pad * T, PAD_W)
    aux2 = aux.reshape(B_pad * T, AUX_W)

    slab = pl.pallas_call(
        fused_forward_kernel,
        out_shape=jax.ShapeDtypeStruct((B_pad * T, LANES), f32),
        grid=(B_pad // Bb,),
        in_specs=[
            pl.BlockSpec((M, PAD_W), lambda i: (i, 0)),
            pl.BlockSpec((M, AUX_W), lambda i: (i, 0)),
            pl.BlockSpec((4, LANES, PAD_W), lambda i: (0, 0, 0)),     # packed conv/FC weights
            pl.BlockSpec((CONST_ROWS, LANES), lambda i: (0, 0)),      # packed head/BN constants
        ],
        out_specs=pl.BlockSpec((M, LANES), lambda i: (i, 0)),
        scratch_shapes=[pltpu.VMEM((M, LANES), f32)],                 # time-im2col scratch
        compiler_params=pltpu.CompilerParams(
            dimension_semantics=("parallel",)),
    )(x2, aux2, params["wstack"], params["consts"])

    slab = slab[:B * T, :NOUT].reshape(B, T, NOUT)
    frame_level_final_tech_logits = slab[:, :, NG + NT:]

    # nn.Upsample(size=note_size, mode='nearest') over time == index gather (plain JAX glue)
    n_notes = note_attribs.shape[1]
    idx = (jnp.arange(n_notes) * T) // n_notes
    up = slab[:, idx, :]
    group_logits = up[:, :, :NG]
    tech_logits = up[:, :, NG:NG + NT]
    final_tech_logits = up[:, :, NG + NT:]
    return (group_logits, tech_logits, final_tech_logits,
            frame_level_final_tech_logits)


# ----------------------------- host-side weight packing ------------------------
def _bn_fold(gamma, beta, mean, var, conv_bias, eps=1e-5):
    scale = gamma / np.sqrt(var + eps)
    shift = (conv_bias - mean) * scale + beta
    return scale, shift


def _pack_conv_dense(w, stride, f_in, f_out):
    """w: [kh, kw, c_in, c_out] -> dense [128, 32] block weight.

    Time taps occupy row blocks 0/32/64; the freq convolution (pad k//2, stride) is baked in.
    Row layout inside a tap block is freq-major (fi*c_in + ci); output columns are fo*c_out + co.
    """
    kh, kw, c_in, c_out = w.shape
    pad = kw // 2
    wd = np.zeros((LANES, PAD_W), np.float32)
    for dt in range(kh):
        for fo in range(f_out):
            for dj in range(kw):
                fi = stride * fo + dj - pad
                if 0 <= fi < f_in:
                    wd[dt * PAD_W + fi * c_in: dt * PAD_W + (fi + 1) * c_in,
                       fo * c_out:(fo + 1) * c_out] = w[dt, dj]
    return wd


def init_params(key):
    ks = list(jax.random.split(key, 26))

    def nrm(k, shape, s=0.1):
        return np.asarray(jax.random.normal(k, shape, jnp.float32)) * np.float32(s)

    wstack = np.zeros((4, LANES, PAD_W), np.float32)        # 3 conv blocks + FC
    consts = np.zeros((CONST_ROWS, LANES), np.float32)

    def conv_block(slot, i, c_in, c_out, stride, f_in, f_out):
        w = nrm(ks[i], (K, K, c_in, c_out))
        b = nrm(ks[i + 1], (c_out,))
        gamma = 1.0 + nrm(ks[i + 2], (c_out,))
        beta = nrm(ks[i + 3], (c_out,))
        mean = nrm(ks[i + 4], (c_out,))
        var = np.abs(nrm(ks[i + 5], (c_out,))) + 1.0
        scale, shift = _bn_fold(gamma, beta, mean, var, b)
        wstack[slot] = _pack_conv_dense(w, stride, f_in, f_out)
        consts[ROW_SC, slot * PAD_W: slot * PAD_W + f_out * c_out] = np.tile(scale, f_out)
        consts[ROW_SH, slot * PAD_W: slot * PAD_W + f_out * c_out] = np.tile(shift, f_out)

    conv_block(0, 0, 1, C1, S1, F0, F1)
    conv_block(1, 6, C1, C2, S2, F1, F2)
    conv_block(2, 12, C2, C3, S3, F2, F3)

    # FC: torch flattens the conv output channel-major (c*F3 + f); the kernel activation columns
    # are freq-major (f*C3 + c) -> fold the permutation into the weight rows.  The 3 frame-level
    # note attribs are read from scratch lanes AUX_OFF..AUX_OFF+2, so their rows go there.
    fc_in = C3 * F3 + 3                                      # 19
    w_fc = nrm(ks[18], (fc_in, OUTPUT_SIZE))
    for f in range(F3):
        for c in range(C3):
            wstack[3, TAP_CUR + f * C3 + c, :] = w_fc[c * F3 + f, :]
    wstack[3, AUX_OFF:AUX_OFF + 3, :] = w_fc[C3 * F3:, :]
    consts[ROW_SC, 3 * PAD_W:4 * PAD_W] = nrm(ks[19], (OUTPUT_SIZE,))   # FC bias

    # hierarchical head weights merged into one [32, 128] matmul (zero-padded lanes)
    wg = nrm(ks[20], (OUTPUT_SIZE, NG)); bg = nrm(ks[21], (NG,))
    wt = nrm(ks[22], (OUTPUT_SIZE, NT)); bt = nrm(ks[23], (NT,))
    wf = nrm(ks[24], (OUTPUT_SIZE, NF)); bf = nrm(ks[25], (NF,))
    consts[ROW_WH:ROW_WH + OUTPUT_SIZE, 0:NG] = wg
    consts[ROW_WH:ROW_WH + OUTPUT_SIZE, NG:NG + NT] = wt
    consts[ROW_WH:ROW_WH + OUTPUT_SIZE, NG + NT:NOUT] = wf
    consts[ROW_BH, 0:NG] = bg
    consts[ROW_BH, NG:NG + NT] = bt
    consts[ROW_BH, NG + NT:NOUT] = bf

    # gating-id rows: parent group per tech column / parent tech per final column, -1 elsewhere
    consts[ROW_GOV, :] = -1.0
    consts[ROW_GOV, NG:NG + NT] = np.asarray(_invert(GROUP_TO_TECH, NT), np.float32)
    consts[ROW_TOF, :] = -1.0
    consts[ROW_TOF, NG + NT:NOUT] = np.asarray(_invert(TECH_TO_FINAL, NF), np.float32)

    return {"wstack": jnp.asarray(wstack), "consts": jnp.asarray(consts)}


# ----------------------------- main ---------------------------------------------
if __name__ == "__main__":
    key = jax.random.PRNGKey(0)
    k_x, k_fa, k_na = jax.random.split(key, 3)

    B, T, F = 8, 32, INPUT_SIZE
    N_NOTES = 8
    padded_cqt = jax.random.normal(k_x, (B, T, F), jnp.float32)
    frame_level_note_attribs = jax.random.normal(k_fa, (B, T, 3), jnp.float32)
    note_attribs = jax.random.normal(k_na, (B, N_NOTES, 3), jnp.float32)

    params = init_params(jax.random.PRNGKey(42))

    fwd = jax.jit(functools.partial(cnn_net_forward, params))
    outs = jax.block_until_ready(fwd(padded_cqt, frame_level_note_attribs, note_attribs))

    group_logits, tech_logits, final_tech_logits, frame_final = outs
    assert group_logits.shape == (B, N_NOTES, NG)
    assert tech_logits.shape == (B, N_NOTES, NT)
    assert final_tech_logits.shape == (B, N_NOTES, NF)
    assert frame_final.shape == (B, T, NF)
    for o in outs:
        assert bool(jnp.all(jnp.isfinite(o)))
    # TODO(synk): GreedyCTCDecoder (inference-only, host-side python list processing) is not a kernel.
    print("KERNEL_OK")
</pallas_src>

<mosaic_0001>
module attributes {stable_mosaic.version = 11 : i64} {
  func.func @fused_forward_kernel(%arg0: i32, %arg1: memref<128x32xf32, #tpu.memory_space<vmem>>, %arg2: memref<128x8xf32, #tpu.memory_space<vmem>>, %arg3: memref<4x128x32xf32, #tpu.memory_space<vmem>>, %arg4: memref<40x128xf32, #tpu.memory_space<vmem>>, %arg5: memref<128x128xf32, #tpu.memory_space<vmem>>, %arg6: memref<128x128xf32, #tpu.memory_space<vmem>>) attributes {dimension_semantics = [#tpu.dimension_semantics<parallel>], iteration_bounds = array<i64: 2>, scalar_prefetch = 0 : i64, scratch_operands = 1 : i64, tpu.core_type = #tpu.core_type<tc>, window_params = [{transform_indices = @transform_0, window_bounds = array<i64: 128, 32>}, {transform_indices = @transform_1, window_bounds = array<i64: 128, 8>}, {pipeline_mode = #tpu.pipeline_mode<synchronous>, transform_indices = @transform_2, window_bounds = array<i64: 4, 128, 32>}, {pipeline_mode = #tpu.pipeline_mode<synchronous>, transform_indices = @transform_3, window_bounds = array<i64: 40, 128>}, {transform_indices = @transform_4, window_bounds = array<i64: 128, 128>}]} {
    %c0 = arith.constant 0 : index
    %c0_0 = arith.constant 0 : index
    %0 = vector.load %arg2[%c0, %c0_0] : memref<128x8xf32, #tpu.memory_space<vmem>>, vector<128x8xf32>
    %1 = vector.extract_strided_slice %0 {offsets = [0, 3], sizes = [128, 1], strides = [1, 1]} : vector<128x8xf32> to vector<128x1xf32>
    %2 = vector.extract_strided_slice %0 {offsets = [0, 4], sizes = [128, 1], strides = [1, 1]} : vector<128x8xf32> to vector<128x1xf32>
    %cst = arith.constant 0.000000e+00 : f32
    %3 = vector.broadcast %cst : f32 to vector<128x32xf32>
    %c0_1 = arith.constant 0 : index
    %c96 = arith.constant 96 : index
    %4 = vector.load %arg6[%c0_1, %c96] : memref<128x128xf32, #tpu.memory_space<vmem>>, vector<128x32xf32>
    tpu.vector_store %arg6[%c0_1, %c96], %3 {strides = array<i32>} : memref<128x128xf32, #tpu.memory_space<vmem>>, vector<128x32xf32>,
    %cst_2 = arith.constant 0.000000e+00 : f32
    %5 = vector.broadcast %cst_2 : f32 to vector<1x32xf32>
    %c0_3 = arith.constant 0 : index
    %c0_4 = arith.constant 0 : index
    %6 = vector.load %arg6[%c0_3, %c0_4] : memref<128x128xf32, #tpu.memory_space<vmem>>, vector<1x32xf32>
    tpu.vector_store %arg6[%c0_3, %c0_4], %5 {strides = array<i32>} : memref<128x128xf32, #tpu.memory_space<vmem>>, vector<1x32xf32>,
    %cst_5 = arith.constant 0.000000e+00 : f32
    %7 = vector.broadcast %cst_5 : f32 to vector<1x32xf32>
    %c127 = arith.constant 127 : index
    %c64 = arith.constant 64 : index
    %8 = vector.load %arg6[%c127, %c64] : memref<128x128xf32, #tpu.memory_space<vmem>>, vector<1x32xf32>
    tpu.vector_store %arg6[%c127, %c64], %7 {strides = array<i32>} : memref<128x128xf32, #tpu.memory_space<vmem>>, vector<1x32xf32>,
    %c0_6 = arith.constant 0 : index
    %c0_7 = arith.constant 0 : index
    %9 = vector.load %arg1[%c0_6, %c0_7] : memref<128x32xf32, #tpu.memory_space<vmem>>, vector<128x32xf32>
    %10 = vector.broadcast %1 : vector<128x1xf32> to vector<128x32xf32>
    %11 = arith.mulf %9, %10 : vector<128x32xf32>
    %12 = vector.extract_strided_slice %11 {offsets = [0, 0], sizes = [127, 32], strides = [1, 1]} : vector<128x32xf32> to vector<127x32xf32>
    %c1 = arith.constant 1 : index
    %c0_8 = arith.constant 0 : index
    %13 = vector.load %arg6[%c1, %c0_8] : memref<128x128xf32, #tpu.memory_space<vmem>>, vector<127x32xf32>
    tpu.vector_store %arg6[%c1, %c0_8], %12 {strides = array<i32>} : memref<128x128xf32, #tpu.memory_space<vmem>>, vector<127x32xf32>,
    %c0_9 = arith.constant 0 : index
    %c32 = arith.constant 32 : index
    %14 = vector.load %arg6[%c0_9, %c32] : memref<128x128xf32, #tpu.memory_space<vmem>>, vector<128x32xf32>
    tpu.vector_store %arg6[%c0_9, %c32], %9 {strides = array<i32>} : memref<128x128xf32, #tpu.memory_space<vmem>>, vector<128x32xf32>,
    %15 = vector.broadcast %2 : vector<128x1xf32> to vector<128x32xf32>
    %16 = arith.mulf %9, %15 : vector<128x32xf32>
    %17 = vector.extract_strided_slice %16 {offsets = [1, 0], sizes = [127, 32], strides = [1, 1]} : vector<128x32xf32> to vector<127x32xf32>
    %c0_10 = arith.constant 0 : index
    %c64_11 = arith.constant 64 : index
    %18 = vector.load %arg6[%c0_10, %c64_11] : memref<128x128xf32, #tpu.memory_space<vmem>>, vector<127x32xf32>
    tpu.vector_store %arg6[%c0_10, %c64_11], %17 {strides = array<i32>} : memref<128x128xf32, #tpu.memory_space<vmem>>, vector<127x32xf32>,
    %c1_12 = arith.constant 1 : index
    %c0_13 = arith.constant 0 : index
    %19 = vector.load %arg4[%c1_12, %c0_13] : memref<40x128xf32, #tpu.memory_space<vmem>>, vector<1x32xf32>
    %c2 = arith.constant 2 : index
    %c0_14 = arith.constant 0 : index
    %20 = vector.load %arg4[%c2, %c0_14] : memref<40x128xf32, #tpu.memory_space<vmem>>, vector<1x32xf32>
    %c0_15 = arith.constant 0 : index
    %c0_16 = arith.constant 0 : index
    %21 = vector.load %arg6[%c0_15, %c0_16] : memref<128x128xf32, #tpu.memory_space<vmem>>, vector<128x128xf32>
    %c0_17 = arith.constant 0 : index
    %c0_18 = arith.constant 0 : index
    %c0_19 = arith.constant 0 : index
    %22 = vector.load %arg3[%c0_17, %c0_18, %c0_19] : memref<4x128x32xf32, #tpu.memory_space<vmem>>, vector<1x128x32xf32>
    %23 = vector.shape_cast %22 : vector<1x128x32xf32> to vector<128x32xf32>
    %cst_20 = arith.constant dense<0.000000e+00> : vector<128x32xf32>
    %24 = tpu.matmul %21, %23, %cst_20 {dimension_numbers = #tpu.dot_dimension_numbers<[1], [0], [0], [1], [0, 0, 1, 1], [], []>} : vector<128x128xf32>, vector<128x32xf32>, vector<128x32xf32> -> vector<128x32xf32>
    %25 = vector.broadcast %19 : vector<1x32xf32> to vector<128x32xf32>
    %26 = arith.mulf %24, %25 : vector<128x32xf32>
    %27 = vector.broadcast %20 : vector<1x32xf32> to vector<128x32xf32>
    %28 = arith.addf %26, %27 : vector<128x32xf32>
    %cst_21 = arith.constant 0.000000e+00 : f32
    %29 = vector.broadcast %cst_21 : f32 to vector<128x32xf32>
    %30 = arith.maximumf %28, %29 : vector<128x32xf32>
    %31 = vector.broadcast %1 : vector<128x1xf32> to vector<128x32xf32>
    %32 = arith.mulf %30, %31 : vector<128x32xf32>
    %33 = vector.extract_strided_slice %32 {offsets = [0, 0], sizes = [127, 32], strides = [1, 1]} : vector<128x32xf32> to vector<127x32xf32>
    %c1_22 = arith.constant 1 : index
    %c0_23 = arith.constant 0 : index
    %34 = vector.load %arg6[%c1_22, %c0_23] : memref<128x128xf32, #tpu.memory_space<vmem>>, vector<127x32xf32>
    tpu.vector_store %arg6[%c1_22, %c0_23], %33 {strides = array<i32>} : memref<128x128xf32, #tpu.memory_space<vmem>>, vector<127x32xf32>,
    %c0_24 = arith.constant 0 : index
    %c32_25 = arith.constant 32 : index
    %35 = vector.load %arg6[%c0_24, %c32_25] : memref<128x128xf32, #tpu.memory_space<vmem>>, vector<128x32xf32>
    tpu.vector_store %arg6[%c0_24, %c32_25], %30 {strides = array<i32>} : memref<128x128xf32, #tpu.memory_space<vmem>>, vector<128x32xf32>,
    %36 = vector.broadcast %2 : vector<128x1xf32> to vector<128x32xf32>
    %37 = arith.mulf %30, %36 : vector<128x32xf32>
    %38 = vector.extract_strided_slice %37 {offsets = [1, 0], sizes = [127, 32], strides = [1, 1]} : vector<128x32xf32> to vector<127x32xf32>
    %c0_26 = arith.constant 0 : index
    %c64_27 = arith.constant 64 : index
    %39 = vector.load %arg6[%c0_26, %c64_27] : memref<128x128xf32, #tpu.memory_space<vmem>>, vector<127x32xf32>
    tpu.vector_store %arg6[%c0_26, %c64_27], %38 {strides = array<i32>} : memref<128x128xf32, #tpu.memory_space<vmem>>, vector<127x32xf32>,
    %c1_28 = arith.constant 1 : index
    %c32_29 = arith.constant 32 : index
    %40 = vector.load %arg4[%c1_28, %c32_29] : memref<40x128xf32, #tpu.memory_space<vmem>>, vector<1x32xf32>
    %c2_30 = arith.constant 2 : index
    %c32_31 = arith.constant 32 : index
    %41 = vector.load %arg4[%c2_30, %c32_31] : memref<40x128xf32, #tpu.memory_space<vmem>>, vector<1x32xf32>
    %c0_32 = arith.constant 0 : index
    %c0_33 = arith.constant 0 : index
    %42 = vector.load %arg6[%c0_32, %c0_33] : memref<128x128xf32, #tpu.memory_space<vmem>>, vector<128x128xf32>
    %c1_34 = arith.constant 1 : index
    %c0_35 = arith.constant 0 : index
    %c0_36 = arith.constant 0 : index
    %43 = vector.load %arg3[%c1_34, %c0_35, %c0_36] : memref<4x128x32xf32, #tpu.memory_space<vmem>>, vector<1x128x32xf32>
    %44 = vector.shape_cast %43 : vector<1x128x32xf32> to vector<128x32xf32>
    %cst_37 = arith.constant dense<0.000000e+00> : vector<128x32xf32>
    %45 = tpu.matmul %42, %44, %cst_37 {dimension_numbers = #tpu.dot_dimension_numbers<[1], [0], [0], [1], [0, 0, 1, 1], [], []>} : vector<128x128xf32>, vector<128x32xf32>, vector<128x32xf32> -> vector<128x32xf32>
    %46 = vector.broadcast %40 : vector<1x32xf32> to vector<128x32xf32>
    %47 = arith.mulf %45, %46 : vector<128x32xf32>
    %48 = vector.broadcast %41 : vector<1x32xf32> to vector<128x32xf32>
    %49 = arith.addf %47, %48 : vector<128x32xf32>
    %cst_38 = arith.constant 0.000000e+00 : f32
    %50 = vector.broadcast %cst_38 : f32 to vector<128x32xf32>
    %51 = arith.maximumf %49, %50 : vector<128x32xf32>
    %52 = vector.broadcast %1 : vector<128x1xf32> to vector<128x32xf32>
    %53 = arith.mulf %51, %52 : vector<128x32xf32>
    %54 = vector.extract_strided_slice %53 {offsets = [0, 0], sizes = [127, 32], strides = [1, 1]} : vector<128x32xf32> to vector<127x32xf32>
    %c1_39 = arith.constant 1 : index
    %c0_40 = arith.constant 0 : index
    %55 = vector.load %arg6[%c1_39, %c0_40] : memref<128x128xf32, #tpu.memory_space<vmem>>, vector<127x32xf32>
    tpu.vector_store %arg6[%c1_39, %c0_40], %54 {strides = array<i32>} : memref<128x128xf32, #tpu.memory_space<vmem>>, vector<127x32xf32>,
    %c0_41 = arith.constant 0 : index
    %c32_42 = arith.constant 32 : index
    %56 = vector.load %arg6[%c0_41, %c32_42] : memref<128x128xf32, #tpu.memory_space<vmem>>, vector<128x32xf32>
    tpu.vector_store %arg6[%c0_41, %c32_42], %51 {strides = array<i32>} : memref<128x128xf32, #tpu.memory_space<vmem>>, vector<128x32xf32>,
    %57 = vector.broadcast %2 : vector<128x1xf32> to vector<128x32xf32>
    %58 = arith.mulf %51, %57 : vector<128x32xf32>
    %59 = vector.extract_strided_slice %58 {offsets = [1, 0], sizes = [127, 32], strides = [1, 1]} : vector<128x32xf32> to vector<127x32xf32>
    %c0_43 = arith.constant 0 : index
    %c64_44 = arith.constant 64 : index
    %60 = vector.load %arg6[%c0_43, %c64_44] : memref<128x128xf32, #tpu.memory_space<vmem>>, vector<127x32xf32>
    tpu.vector_store %arg6[%c0_43, %c64_44], %59 {strides = array<i32>} : memref<128x128xf32, #tpu.memory_space<vmem>>, vector<127x32xf32>,
    %c1_45 = arith.constant 1 : index
    %c64_46 = arith.constant 64 : index
    %61 = vector.load %arg4[%c1_45, %c64_46] : memref<40x128xf32, #tpu.memory_space<vmem>>, vector<1x32xf32>
    %c2_47 = arith.constant 2 : index
    %c64_48 = arith.constant 64 : index
    %62 = vector.load %arg4[%c2_47, %c64_48] : memref<40x128xf32, #tpu.memory_space<vmem>>, vector<1x32xf32>
    %c0_49 = arith.constant 0 : index
    %c0_50 = arith.constant 0 : index
    %63 = vector.load %arg6[%c0_49, %c0_50] : memref<128x128xf32, #tpu.memory_space<vmem>>, vector<128x128xf32>
    %c2_51 = arith.constant 2 : index
    %c0_52 = arith.constant 0 : index
    %c0_53 = arith.constant 0 : index
    %64 = vector.load %arg3[%c2_51, %c0_52, %c0_53] : memref<4x128x32xf32, #tpu.memory_space<vmem>>, vector<1x128x32xf32>
    %65 = vector.shape_cast %64 : vector<1x128x32xf32> to vector<128x32xf32>
    %cst_54 = arith.constant dense<0.000000e+00> : vector<128x32xf32>
    %66 = tpu.matmul %63, %65, %cst_54 {dimension_numbers = #tpu.dot_dimension_numbers<[1], [0], [0], [1], [0, 0, 1, 1], [], []>} : vector<128x128xf32>, vector<128x32xf32>, vector<128x32xf32> -> vector<128x32xf32>
    %67 = vector.broadcast %61 : vector<1x32xf32> to vector<128x32xf32>
    %68 = arith.mulf %66, %67 : vector<128x32xf32>
    %69 = vector.broadcast %62 : vector<1x32xf32> to vector<128x32xf32>
    %70 = arith.addf %68, %69 : vector<128x32xf32>
    %cst_55 = arith.constant 0.000000e+00 : f32
    %71 = vector.broadcast %cst_55 : f32 to vector<128x32xf32>
    %72 = arith.maximumf %70, %71 : vector<128x32xf32>
    %c0_56 = arith.constant 0 : index
    %c32_57 = arith.constant 32 : index
    %73 = vector.load %arg6[%c0_56, %c32_57] : memref<128x128xf32, #tpu.memory_space<vmem>>, vector<128x32xf32>
    tpu.vector_store %arg6[%c0_56, %c32_57], %72 {strides = array<i32>} : memref<128x128xf32, #tpu.memory_space<vmem>>, vector<128x32xf32>,
    %c0_58 = arith.constant 0 : index
    %c96_59 = arith.constant 96 : index
    %74 = vector.load %arg6[%c0_58, %c96_59] : memref<128x128xf32, #tpu.memory_space<vmem>>, vector<128x8xf32>
    tpu.vector_store %arg6[%c0_58, %c96_59], %0 {strides = array<i32>} : memref<128x128xf32, #tpu.memory_space<vmem>>, vector<128x8xf32>,
    %c1_60 = arith.constant 1 : index
    %c96_61 = arith.constant 96 : index
    %75 = vector.load %arg4[%c1_60, %c96_61] : memref<40x128xf32, #tpu.memory_space<vmem>>, vector<1x32xf32>
    %c0_62 = arith.constant 0 : index
    %c0_63 = arith.constant 0 : index
    %76 = vector.load %arg6[%c0_62, %c0_63] : memref<128x128xf32, #tpu.memory_space<vmem>>, vector<128x128xf32>
    %c3 = arith.constant 3 : index
    %c0_64 = arith.constant 0 : index
    %c0_65 = arith.constant 0 : index
    %77 = vector.load %arg3[%c3, %c0_64, %c0_65] : memref<4x128x32xf32, #tpu.memory_space<vmem>>, vector<1x128x32xf32>
    %78 = vector.shape_cast %77 : vector<1x128x32xf32> to vector<128x32xf32>
    %cst_66 = arith.constant dense<0.000000e+00> : vector<128x32xf32>
    %79 = tpu.matmul %76, %78, %cst_66 {dimension_numbers = #tpu.dot_dimension_numbers<[1], [0], [0], [1], [0, 0, 1, 1], [], []>} : vector<128x128xf32>, vector<128x32xf32>, vector<128x32xf32> -> vector<128x32xf32>
    %80 = vector.broadcast %75 : vector<1x32xf32> to vector<128x32xf32>
    %81 = arith.addf %79, %80 : vector<128x32xf32>
    %cst_67 = arith.constant 0.000000e+00 : f32
    %82 = vector.broadcast %cst_67 : f32 to vector<128x32xf32>
    %83 = arith.maximumf %81, %82 : vector<128x32xf32>
    %c8 = arith.constant 8 : index
    %c0_68 = arith.constant 0 : index
    %84 = vector.load %arg4[%c8, %c0_68] : memref<40x128xf32, #tpu.memory_space<vmem>>, vector<32x128xf32>
    %c0_69 = arith.constant 0 : index
    %c0_70 = arith.constant 0 : index
    %85 = vector.load %arg4[%c0_69, %c0_70] : memref<40x128xf32, #tpu.memory_space<vmem>>, vector<1x128xf32>
    %cst_71 = arith.constant dense<0.000000e+00> : vector<128x128xf32>
    %86 = tpu.matmul %83, %84, %cst_71 {dimension_numbers = #tpu.dot_dimension_numbers<[1], [0], [0], [1], [0, 0, 1, 1], [], []>} : vector<128x32xf32>, vector<32x128xf32>, vector<128x128xf32> -> vector<128x128xf32>
    %87 = vector.broadcast %85 : vector<1x128xf32> to vector<128x128xf32>
    %88 = arith.addf %86, %87 : vector<128x128xf32>
    %89 = tpu.iota {dimensions = array<i32: 1>} : vector<128x128xi32>
    %c5_i32 = arith.constant 5 : i32
    %90 = vector.broadcast %c5_i32 : i32 to vector<128x128xi32>
    %91 = arith.cmpi slt, %89, %90 : vector<128x128xi32>
    %c5_i32_72 = arith.constant 5 : i32
    %92 = vector.broadcast %c5_i32_72 : i32 to vector<128x128xi32>
    %93 = arith.cmpi sge, %89, %92 : vector<128x128xi32>
    %c15_i32 = arith.constant 15 : i32
    %94 = vector.broadcast %c15_i32 : i32 to vector<128x128xi32>
    %95 = arith.cmpi slt, %89, %94 : vector<128x128xi32>
    %96 = arith.andi %93, %95 : vector<128x128xi1>
    %c3_73 = arith.constant 3 : index
    %c0_74 = arith.constant 0 : index
    %97 = vector.load %arg4[%c3_73, %c0_74] : memref<40x128xf32, #tpu.memory_space<vmem>>, vector<1x128xf32>
    %c4 = arith.constant 4 : index
    %c0_75 = arith.constant 0 : index
    %98 = vector.load %arg4[%c4, %c0_75] : memref<40x128xf32, #tpu.memory_space<vmem>>, vector<1x128xf32>
    %cst_76 = arith.constant 0xFF800000 : f32
    %99 = vector.broadcast %cst_76 : f32 to vector<128x128xf32>
    %100 = arith.select %91, %88, %99 : vector<128x128xi1>, vector<128x128xf32>
    %cst_77 = arith.constant dense<0xFF800000> : vector<128xf32>
    %101 = vector.multi_reduction <maximumf>, %100, %cst_77 [1] : vector<128x128xf32> to vector<128xf32>
    %102 = vector.shape_cast %101 : vector<128xf32> to vector<128x1xf32>
    %103 = vector.broadcast %102 : vector<128x1xf32> to vector<128x128xf32>
    %104 = arith.cmpf oeq, %100, %103 : vector<128x128xf32>
    %c128_i32 = arith.constant 128 : i32
    %105 = vector.broadcast %c128_i32 : i32 to vector<128x128xi32>
    %106 = arith.select %104, %89, %105 : vector<128x128xi1>, vector<128x128xi32>
    %cst_78 = arith.constant dense<2147483647> : vector<128xi32>
    %107 = vector.multi_reduction <minsi>, %106, %cst_78 [1] : vector<128x128xi32> to vector<128xi32>
    %108 = vector.shape_cast %107 : vector<128xi32> to vector<128x1xi32>
    %109 = arith.sitofp %108 : vector<128x1xi32> to vector<128x1xf32>
    %110 = vector.broadcast %109 : vector<128x1xf32> to vector<128x128xf32>
    %111 = vector.broadcast %97 : vector<1x128xf32> to vector<128x128xf32>
    %112 = arith.cmpf oeq, %110, %111 : vector<128x128xf32>
    %cst_79 = arith.constant 0.000000e+00 : f32
    %113 = vector.broadcast %cst_79 : f32 to vector<128x128xf32>
    %114 = arith.select %112, %88, %113 : vector<128x128xi1>, vector<128x128xf32>
    %cst_80 = arith.constant 0xFF800000 : f32
    %115 = vector.broadcast %cst_80 : f32 to vector<128x128xf32>
    %116 = arith.select %96, %114, %115 : vector<128x128xi1>, vector<128x128xf32>
    %cst_81 = arith.constant dense<0xFF800000> : vector<128xf32>
    %117 = vector.multi_reduction <maximumf>, %116, %cst_81 [1] : vector<128x128xf32> to vector<128xf32>
    %118 = vector.shape_cast %117 : vector<128xf32> to vector<128x1xf32>
    %119 = vector.broadcast %118 : vector<128x1xf32> to vector<128x128xf32>
    %120 = arith.cmpf oeq, %116, %119 : vector<128x128xf32>
    %c128_i32_82 = arith.constant 128 : i32
    %121 = vector.broadcast %c128_i32_82 : i32 to vector<128x128xi32>
    %122 = arith.select %120, %89, %121 : vector<128x128xi1>, vector<128x128xi32>
    %cst_83 = arith.constant dense<2147483647> : vector<128xi32>
    %123 = vector.multi_reduction <minsi>, %122, %cst_83 [1] : vector<128x128xi32> to vector<128xi32>
    %124 = vector.shape_cast %123 : vector<128xi32> to vector<128x1xi32>
    %c5_i32_84 = arith.constant 5 : i32
    %125 = vector.broadcast %c5_i32_84 : i32 to vector<128x1xi32>
    %126 = arith.subi %124, %125 : vector<128x1xi32>
    %127 = arith.sitofp %126 : vector<128x1xi32> to vector<128x1xf32>
    %128 = vector.broadcast %127 : vector<128x1xf32> to vector<128x128xf32>
    %129 = vector.broadcast %98 : vector<1x128xf32> to vector<128x128xf32>
    %130 = arith.cmpf oeq, %128, %129 : vector<128x128xf32>
    %cst_85 = arith.constant 0.000000e+00 : f32
    %131 = vector.broadcast %cst_85 : f32 to vector<128x128xf32>
    %132 = arith.select %130, %88, %131 : vector<128x128xi1>, vector<128x128xf32>
    %cst_86 = arith.constant 0.000000e+00 : f32
    %133 = vector.broadcast %cst_86 : f32 to vector<128x128xf32>
    %134 = arith.select %91, %88, %133 : vector<128x128xi1>, vector<128x128xf32>
    %135 = arith.addf %134, %114 : vector<128x128xf32>
    %136 = arith.addf %135, %132 : vector<128x128xf32>
    %c0_87 = arith.constant 0 : index
    %c0_88 = arith.constant 0 : index
    %137 = vector.load %arg5[%c0_87, %c0_88] : memref<128x128xf32, #tpu.memory_space<vmem>>, vector<128x128xf32>
    tpu.vector_store %arg5[%c0_87, %c0_88], %136 {strides = array<i32>} : memref<128x128xf32, #tpu.memory_space<vmem>>, vector<128x128xf32>,
    return
  }
  func.func @transform_0(%arg0: i32) -> (i32, i32) {
    %c0_i32 = arith.constant 0 : i32
    %c0_i32_0 = arith.constant 0 : i32
    return %arg0, %c0_i32 : i32, i32
  }
  func.func @transform_1(%arg0: i32) -> (i32, i32) {
    %c0_i32 = arith.constant 0 : i32
    %c0_i32_0 = arith.constant 0 : i32
    return %arg0, %c0_i32 : i32, i32
  }
  func.func @transform_2(%arg0: i32) -> (i32, i32, i32) {
    %c0_i32 = arith.constant 0 : i32
    %c0_i32_0 = arith.constant 0 : i32
    %c0_i32_1 = arith.constant 0 : i32
    %c0_i32_2 = arith.constant 0 : i32
    return %c0_i32, %c0_i32_0, %c0_i32_1 : i32, i32, i32
  }
  func.func @transform_3(%arg0: i32) -> (i32, i32) {
    %c0_i32 = arith.constant 0 : i32
    %c0_i32_0 = arith.constant 0 : i32
    %c0_i32_1 = arith.constant 0 : i32
    return %c0_i32, %c0_i32_0 : i32, i32
  }
  func.func @transform_4(%arg0: i32) -> (i32, i32) {
    %c0_i32 = arith.constant 0 : i32
    %c0_i32_0 = arith.constant 0 : i32
    return %arg0, %c0_i32 : i32, i32
  }
}

</mosaic_0001>

<llo_original>
// kernel: cnn_net_forward.1
$region0: #{cnn_net_forward.1}
  #allocation0 [shape = 'u32[]', space=smem, size = 0x4, offset = 0x4, fixed_abs, tag = 'smem constant byte address 0x4 - core index']
  #allocation1 [shape = 'u32[144,128]{1,0:T(1,128)}', space=vmem, size = 0x12000, scoped, tag = 'internal scratch']
  #allocation2 [shape = 'f32[128,128]{1,0:T(8,128)}', space=vmem, size = 0x10000, scoped, tag = 'scratch operand']
  %s0 = inlined_call_operand.vmem [shape: f32[256,32], index: 0, kind: input, shape index: {}]
  %s1 = inlined_call_operand.vmem [shape: f32[256,8], index: 1, kind: input, shape index: {}]
  %s2 = inlined_call_operand.vmem [shape: f32[4,128,32], index: 2, kind: input, shape index: {}]
  %s3 = inlined_call_operand.vmem [shape: f32[40,128], index: 3, kind: input, shape index: {}]
  %s4 = inlined_call_operand.vmem [shape: f32[256,128], index: 4, kind: output, shape index: {}]
  %s5 = sld [smem:[#allocation0]]
  $region49: #{cnn_net_forward.1} parent=0
    _
  %s7 = ssub.s32 1, %s5
  %s8 = scalar_select 0, %s7, %s5
  loop: start=0, step=1, limit=4
  $region2: #{cnn_net_forward.1} parent=0 // loop_pre_header
    _
  $region3: #{cnn_net_forward.1} parent=0 // loop_header
    %s10 = sphi 0, %s14
    %p11 = scmp.ge.s32.totalorder %s10, 4
    %s20 = sphi 0, %s22
    %s23 = sphi 0, %s20
    %s24 = sphi 0, %s23
    %s40 = sphi 0, %s24
    %s46 = sphi 0, %s48
    %s49 = sphi 0, %s46
    %s50 = sphi 0, %s49
    %s66 = sphi 0, %s50
    %s70 = sphi 0, %s70
    %s72 = sphi 0, %s70
    %s73 = sphi 0, %s72
    %s87 = sphi 0, %s73
    %s91 = sphi 0, %s91
    %s93 = sphi 0, %s91
    %s94 = sphi 0, %s93
    %s108 = sphi 0, %s94
    %s114 = sphi 0, %s116
    %s117 = sphi 0, %s114
    %s118 = sphi 0, %s117
    %s134 = sphi 0, %s118
  $region4: #{cnn_net_forward.1} parent=0 // loop_header_branch
    %13 = sbr.rel (%p11) target = $region8
  $region5: #{cnn_net_forward.1} parent=0 // loop_body
    %s15 = ssub.s32 %s10, 1
    %s16 = ssub.s32 %s10, 2
    %s17 = sadd.s32 %s10, 1
    %s18 = ssub.s32 %s10, %s17
    %p19 = scmp.eq.s32.totalorder %s18, 0
    %s21 = sadd.s32 %s20, 1
    %s22 = scalar_select %p19, %s20, %s21
    %p25 = pneg %p19
    %p26 = scmp.eq.s32.totalorder %s10, 1
    %p27 = por %p25, %p26
    %p28 = scmp.ne.s32.totalorder %s20, %s23
    %p29 = scmp.eq.s32.totalorder %s10, 0
    %p30 = por %p28, %p29
    %p31 = scmp.ne.s32.totalorder %s20, %s23
    %p32 = scmp.eq.s32.totalorder %s15, 1
    %p33 = por %p31, %p32
    %p34 = scmp.ne.s32.totalorder %s23, %s24
    %p35 = scmp.eq.s32.totalorder %s15, 0
    %p36 = por %p34, %p35
    %p37 = scmp.ne.s32.totalorder %s23, %s24
    %p38 = scmp.eq.s32.totalorder %s16, 1
    %p39 = por %p37, %p38
    %p41 = scmp.ne.s32.totalorder %s24, %s40
    %p42 = scmp.eq.s32.totalorder %s16, 0
    %p43 = por %p41, %p42
    %s44 = ssub.s32 %s10, %s17
    %p45 = scmp.eq.s32.totalorder %s44, 0
    %s47 = sadd.s32 %s46, 1
    %s48 = scalar_select %p45, %s46, %s47
    %p51 = pneg %p45
    %p52 = scmp.eq.s32.totalorder %s10, 1
    %p53 = por %p51, %p52
    %p54 = scmp.ne.s32.totalorder %s46, %s49
    %p55 = scmp.eq.s32.totalorder %s10, 0
    %p56 = por %p54, %p55
    %p57 = scmp.ne.s32.totalorder %s46, %s49
    %p58 = scmp.eq.s32.totalorder %s15, 1
    %p59 = por %p57, %p58
    %p60 = scmp.ne.s32.totalorder %s49, %s50
    %p61 = scmp.eq.s32.totalorder %s15, 0
    %p62 = por %p60, %p61
    %p63 = scmp.ne.s32.totalorder %s49, %s50
    %p64 = scmp.eq.s32.totalorder %s16, 1
    %p65 = por %p63, %p64
    %p67 = scmp.ne.s32.totalorder %s50, %s66
    %p68 = scmp.eq.s32.totalorder %s16, 0
    %p69 = por %p67, %p68
    %s71 = sadd.s32 %s70, 1
    %p74 = scmp.eq.s32.totalorder %s10, 1
    %p75 = scmp.ne.s32.totalorder %s70, %s72
    %p76 = scmp.eq.s32.totalorder %s10, 0
    %p77 = por %p75, %p76
    %p78 = scmp.ne.s32.totalorder %s70, %s72
    %p79 = scmp.eq.s32.totalorder %s15, 1
    %p80 = por %p78, %p79
    %p81 = scmp.ne.s32.totalorder %s72, %s73
    %p82 = scmp.eq.s32.totalorder %s15, 0
    %p83 = por %p81, %p82
    %p84 = scmp.ne.s32.totalorder %s72, %s73
    %p85 = scmp.eq.s32.totalorder %s16, 1
    %p86 = por %p84, %p85
    %p88 = scmp.ne.s32.totalorder %s73, %s87
    %p89 = scmp.eq.s32.totalorder %s16, 0
    %p90 = por %p88, %p89
    %s92 = sadd.s32 %s91, 1
    %p95 = scmp.eq.s32.totalorder %s10, 1
    %p96 = scmp.ne.s32.totalorder %s91, %s93
    %p97 = scmp.eq.s32.totalorder %s10, 0
    %p98 = por %p96, %p97
    %p99 = scmp.ne.s32.totalorder %s91, %s93
    %p100 = scmp.eq.s32.totalorder %s15, 1
    %p101 = por %p99, %p100
    %p102 = scmp.ne.s32.totalorder %s93, %s94
    %p103 = scmp.eq.s32.totalorder %s15, 0
    %p104 = por %p102, %p103
    %p105 = scmp.ne.s32.totalorder %s93, %s94
    %p106 = scmp.eq.s32.totalorder %s16, 1
    %p107 = por %p105, %p106
    %p109 = scmp.ne.s32.totalorder %s94, %s108
    %p110 = scmp.eq.s32.totalorder %s16, 0
    %p111 = por %p109, %p110
    %s112 = ssub.s32 %s10, %s17
    %p113 = scmp.eq.s32.totalorder %s112, 0
    %s115 = sadd.s32 %s114, 1
    %s116 = scalar_select %p113, %s114, %s115
    %p119 = pneg %p113
    %p120 = scmp.eq.s32.totalorder %s10, 1
    %p121 = por %p119, %p120
    %p122 = scmp.ne.s32.totalorder %s114, %s117
    %p123 = scmp.eq.s32.totalorder %s10, 0
    %p124 = por %p122, %p123
    %p125 = scmp.ne.s32.totalorder %s114, %s117
    %p126 = scmp.eq.s32.totalorder %s15, 1
    %p127 = por %p125, %p126
    %p128 = scmp.ne.s32.totalorder %s117, %s118
    %p129 = scmp.eq.s32.totalorder %s15, 0
    %p130 = por %p128, %p129
    %p131 = scmp.ne.s32.totalorder %s117, %s118
    %p132 = scmp.eq.s32.totalorder %s16, 1
    %p133 = por %p131, %p132
    %p135 = scmp.ne.s32.totalorder %s118, %s134
    %p136 = scmp.eq.s32.totalorder %s16, 0
    %p137 = por %p135, %p136
    %p138 = scmp.le.s32.totalorder 1, %s10
    %p139 = scmp.lt.s32.totalorder %s10, 3
    %p140 = pnand %p138, %p139
    %p141 = pneg %p140
    // Predicated region
    $region9: #{cnn_net_forward.1} parent=5 // pred_check
      _
    $region10: #{cnn_net_forward.1} parent=5 // pred_check_branch
      %143 = sbr.rel (%p140) target = $region12
    $region11: #{cnn_net_forward.1} parent=5 // pred_region
      %s144 = ssub.s32 %s10, 1
      // Predicated region
      $region13: #{cnn_net_forward.1} parent=11 // pred_check
        %p145 = pneg %p83
      $region14: #{cnn_net_forward.1} parent=11 // pred_check_branch
        %147 = sbr.rel (%p145) target = $region16
      $region15: #{cnn_net_forward.1} parent=11 // pred_region
        _
      $region16: #{cnn_net_forward.1} parent=11 // pred_fallthru
        _
      // Predicated region
      $region17: #{cnn_net_forward.1} parent=11 // pred_check
        %p148 = pneg %p104
      $region18: #{cnn_net_forward.1} parent=11 // pred_check_branch
        %150 = sbr.rel (%p148) target = $region20
      $region19: #{cnn_net_forward.1} parent=11 // pred_region
        _
      $region20: #{cnn_net_forward.1} parent=11 // pred_fallthru
        _
    $region12: #{cnn_net_forward.1} parent=5 // pred_fallthru
      _
    %p151 = scmp.lt.s32.totalorder %s10, 2
    // Predicated region
    $region21: #{cnn_net_forward.1} parent=5 // pred_check
      %p152 = pneg %p151
    $region22: #{cnn_net_forward.1} parent=5 // pred_check_branch
      %154 = sbr.rel (%p152) target = $region24
    $region23: #{cnn_net_forward.1} parent=5 // pred_region
      // Predicated region
      $region25: #{cnn_net_forward.1} parent=23 // pred_check
        %p155 = pneg %p30
      $region26: #{cnn_net_forward.1} parent=23 // pred_check_branch
        %157 = sbr.rel (%p155) target = $region28
      $region27: #{cnn_net_forward.1} parent=23 // pred_region
        %s158 = smul.u32 16, %s10
        %p159 = scmp.lt.s32.totalorder %s158, 31
        %s160 = scalar_select %p159, %s158, 31
        %s161 = smul.addr %s160, 8
        %s162 = scalar_lea.vmem %s0, %s161
        %s163 = smul.u32 16, %s10
      $region28: #{cnn_net_forward.1} parent=23 // pred_fallthru
        _
      // Predicated region
      $region29: #{cnn_net_forward.1} parent=23 // pred_check
        %p164 = pneg %p56
      $region30: #{cnn_net_forward.1} parent=23 // pred_check_branch
        %166 = sbr.rel (%p164) target = $region32
      $region31: #{cnn_net_forward.1} parent=23 // pred_region
        %s167 = smul.u32 16, %s10
        %p168 = scmp.lt.s32.totalorder %s167, 31
        %s169 = scalar_select %p168, %s167, 31
        %s170 = smul.addr %s169, 8
        %s171 = scalar_lea.vmem %s1, %s170
        %s172 = smul.u32 16, %s10
      $region32: #{cnn_net_forward.1} parent=23 // pred_fallthru
        _
    $region24: #{cnn_net_forward.1} parent=5 // pred_fallthru
      _
    %p173 = scmp.le.s32.totalorder 1, %s10
    %p174 = scmp.lt.s32.totalorder %s10, 3
    %p175 = pnand %p173, %p174
    %p176 = pneg %p175
    // Predicated region
    $region33: #{cnn_net_forward.1} parent=5 // pred_check
      _
    $region34: #{cnn_net_forward.1} parent=5 // pred_check_branch
      %178 = sbr.rel (%p175) target = $region36
    $region35: #{cnn_net_forward.1} parent=5 // pred_region
      %s179 = ssub.s32 %s10, 1
      %s180 = smul.u32 16, %s15
      %p181 = scmp.lt.s32.totalorder %s180, 31
      %s182 = scalar_select %p181, %s180, 31
      %s183 = smul.addr %s182, 8
      %s184 = scalar_lea.vmem %s0, %s183
      %p185 = pneg %p36
      %p186 = pneg %p33
      %s187 = smul.u32 16, %s15
      %p188 = scmp.lt.s32.totalorder %s187, 31
      %s189 = scalar_select %p188, %s187, 31
      %s190 = smul.addr %s189, 8
      %s191 = scalar_lea.vmem %s1, %s190
      %p192 = pneg %p62
      %p193 = pneg %p59
      %p194 = pneg %p83
      %p195 = pneg %p80
      %p196 = pneg %p104
      %p197 = pneg %p101
      %p198 = pneg %p130
      %p199 = pneg %p127
      %s200 = smul.u32 16, %s15
      %p201 = scmp.lt.s32.totalorder %s200, 31
      %s202 = scalar_select %p201, %s200, 31
      %s203 = smul.addr %s202, 8
      %s204 = scalar_lea.vmem %s4, %s203
      %s205 = smul.u32 16, %s15
      %p206 = scmp.lt.s32.totalorder %s205, 31
      %s207 = scalar_select %p206, %s205, 31
      %s208 = smul.addr %s207, 8
      %s209 = scalar_lea.vmem %s0, %s208
      %s210 = smul.u32 16, %s15
      %s211 = smul.u32 16, %s15
      %p212 = scmp.lt.s32.totalorder %s211, 31
      %s213 = scalar_select %p212, %s211, 31
      %s214 = smul.addr %s213, 8
      %s215 = scalar_lea.vmem %s1, %s214
      %s216 = smul.u32 16, %s15
      %s217 = smul.u32 16, %s15
      %p218 = scmp.lt.s32.totalorder %s217, 31
      %s219 = scalar_select %p218, %s217, 31
      %s220 = smul.addr %s219, 8
      %s221 = scalar_lea.vmem %s4, %s220
      %s222 = smul.u32 16, %s15
      %v223 = vld [vmem:[%s215] sm:$0xff]
      %v224 = vld [vmem:[%s215 + $0x8] sm:$0xff]
      %v225 = vld [vmem:[%s215 + $0x10] sm:$0xff]
      %v226 = vld [vmem:[%s215 + $0x18] sm:$0xff]
      %v227 = vld [vmem:[%s215 + $0x20] sm:$0xff]
      %v228 = vld [vmem:[%s215 + $0x28] sm:$0xff]
      %v229 = vld [vmem:[%s215 + $0x30] sm:$0xff]
      %v230 = vld [vmem:[%s215 + $0x38] sm:$0xff]
      %v231 = vld [vmem:[%s215 + $0x40] sm:$0xff]
      %v232 = vld [vmem:[%s215 + $0x48] sm:$0xff]
      %v233 = vld [vmem:[%s215 + $0x50] sm:$0xff]
      %v234 = vld [vmem:[%s215 + $0x58] sm:$0xff]
      %v235 = vld [vmem:[%s215 + $0x60] sm:$0xff]
      %v236 = vld [vmem:[%s215 + $0x68] sm:$0xff]
      %v237 = vld [vmem:[%s215 + $0x70] sm:$0xff]
      %v238 = vld [vmem:[%s215 + $0x78] sm:$0xff]
      %vm239 = vcmask 1048320
      %240 = vst.msk [vmem:[#allocation2] sm:$0xff] %vm239, 0.0
      %241 = vst.msk [vmem:[#allocation2 + $0x8] sm:$0xff] %vm239, 0.0
      %242 = vst.msk [vmem:[#allocation2 + $0x10] sm:$0xff] %vm239, 0.0
      %243 = vst.msk [vmem:[#allocation2 + $0x18] sm:$0xff] %vm239, 0.0
      %244 = vst.msk [vmem:[#allocation2 + $0x20] sm:$0xff] %vm239, 0.0
      %245 = vst.msk [vmem:[#allocation2 + $0x28] sm:$0xff] %vm239, 0.0
      %246 = vst.msk [vmem:[#allocation2 + $0x30] sm:$0xff] %vm239, 0.0
      %247 = vst.msk [vmem:[#allocation2 + $0x38] sm:$0xff] %vm239, 0.0
      %248 = vst.msk [vmem:[#allocation2 + $0x40] sm:$0xff] %vm239, 0.0
      %249 = vst.msk [vmem:[#allocation2 + $0x48] sm:$0xff] %vm239, 0.0
      %250 = vst.msk [vmem:[#allocation2 + $0x50] sm:$0xff] %vm239, 0.0
      %251 = vst.msk [vmem:[#allocation2 + $0x58] sm:$0xff] %vm239, 0.0
      %252 = vst.msk [vmem:[#allocation2 + $0x60] sm:$0xff] %vm239, 0.0
      %253 = vst.msk [vmem:[#allocation2 + $0x68] sm:$0xff] %vm239, 0.0
      %254 = vst.msk [vmem:[#allocation2 + $0x70] sm:$0xff] %vm239, 0.0
      %255 = vst.msk [vmem:[#allocation2 + $0x78] sm:$0xff] %vm239, 0.0
      %vm256 = vcmask 253952
      %257 = vst.msk [vmem:[#allocation2] sm:$0x1] %vm256, 0.0
      %vm258 = vcmask 778752
      %259 = vst.msk [vmem:[#allocation2 + $0x7f] sm:$0x1] %vm258, 0.0
      %v260 = vld [vmem:[%s209] sm:$0xff]
      %v261 = vld [vmem:[%s209 + $0x8] sm:$0xff]
      %v262 = vld [vmem:[%s209 + $0x10] sm:$0xff]
      %v263 = vld [vmem:[%s209 + $0x18] sm:$0xff]
      %v264 = vld [vmem:[%s209 + $0x20] sm:$0xff]
      %v265 = vld [vmem:[%s209 + $0x28] sm:$0xff]
      %v266 = vld [vmem:[%s209 + $0x30] sm:$0xff]
      %v267 = vld [vmem:[%s209 + $0x38] sm:$0xff]
      %v268 = vld [vmem:[%s209 + $0x40] sm:$0xff]
      %v269 = vld [vmem:[%s209 + $0x48] sm:$0xff]
      %v270 = vld [vmem:[%s209 + $0x50] sm:$0xff]
      %v271 = vld [vmem:[%s209 + $0x58] sm:$0xff]
      %v272 = vld [vmem:[%s209 + $0x60] sm:$0xff]
      %v273 = vld [vmem:[%s209 + $0x68] sm:$0xff]
      %v274 = vld [vmem:[%s209 + $0x70] sm:$0xff]
      %v275 = vld [vmem:[%s209 + $0x78] sm:$0xff]
      %277 = vset.pattern.permute.xlu0 3
      %278 = vperm.xlu0 %277, %v223
      %v279 = vpop.permute.xlu0 %278
      %282 = vset.pattern.permute.xlu0 3
      %283 = vperm.xlu0 %282, %v224
      %v284 = vpop.permute.xlu0 %283
      %287 = vset.pattern.permute.xlu0 3
      %288 = vperm.xlu0 %287, %v225
      %v289 = vpop.permute.xlu0 %288
      %292 = vset.pattern.permute.xlu0 3
      %293 = vperm.xlu0 %292, %v226
      %v294 = vpop.permute.xlu0 %293
      %297 = vset.pattern.permute.xlu0 3
      %298 = vperm.xlu0 %297, %v227
      %v299 = vpop.permute.xlu0 %298
      %302 = vset.pattern.permute.xlu0 3
      %303 = vperm.xlu0 %302, %v228
      %v304 = vpop.permute.xlu0 %303
      %307 = vset.pattern.permute.xlu0 3
      %308 = vperm.xlu0 %307, %v229
      %v309 = vpop.permute.xlu0 %308
      %312 = vset.pattern.permute.xlu0 3
      %313 = vperm.xlu0 %312, %v230
      %v314 = vpop.permute.xlu0 %313
      %317 = vset.pattern.permute.xlu0 3
      %318 = vperm.xlu0 %317, %v231
      %v319 = vpop.permute.xlu0 %318
      %322 = vset.pattern.permute.xlu0 3
      %323 = vperm.xlu0 %322, %v232
      %v324 = vpop.permute.xlu0 %323
      %327 = vset.pattern.permute.xlu0 3
      %328 = vperm.xlu0 %327, %v233
      %v329 = vpop.permute.xlu0 %328
      %332 = vset.pattern.permute.xlu0 3
      %333 = vperm.xlu0 %332, %v234
      %v334 = vpop.permute.xlu0 %333
      %337 = vset.pattern.permute.xlu0 3
      %338 = vperm.xlu0 %337, %v235
      %v339 = vpop.permute.xlu0 %338
      %342 = vset.pattern.permute.xlu0 3
      %343 = vperm.xlu0 %342, %v236
      %v344 = vpop.permute.xlu0 %343
      %347 = vset.pattern.permute.xlu0 3
      %348 = vperm.xlu0 %347, %v237
      %v349 = vpop.permute.xlu0 %348
      %352 = vset.pattern.permute.xlu0 3
      %353 = vperm.xlu0 %352, %v238
      %v354 = vpop.permute.xlu0 %353
      %v356 = vmul.f32 %v260, %v279
      %v357 = vmul.f32 %v261, %v284
      %v358 = vmul.f32 %v262, %v289
      %v359 = vmul.f32 %v263, %v294
      %v360 = vmul.f32 %v264, %v299
      %v361 = vmul.f32 %v265, %v304
      %v362 = vmul.f32 %v266, %v309
      %v363 = vmul.f32 %v267, %v314
      %v364 = vmul.f32 %v268, %v319
      %v365 = vmul.f32 %v269, %v324
      %v366 = vmul.f32 %v270, %v329
      %v367 = vmul.f32 %v271, %v334
      %v368 = vmul.f32 %v272, %v339
      %v369 = vmul.f32 %v273, %v344
      %v370 = vmul.f32 %v274, %v349
      %v371 = vmul.f32 %v275, %v354
      %vm372 = vcmask 261120
      %373 = vst.msk [vmem:[#allocation2 + $0x1] sm:$0xff] %vm372, %v356
      %374 = vst.msk [vmem:[#allocation2 + $0x9] sm:$0xff] %vm372, %v357
      %375 = vst.msk [vmem:[#allocation2 + $0x11] sm:$0xff] %vm372, %v358
      %376 = vst.msk [vmem:[#allocation2 + $0x19] sm:$0xff] %vm372, %v359
      %377 = vst.msk [vmem:[#allocation2 + $0x21] sm:$0xff] %vm372, %v360
      %378 = vst.msk [vmem:[#allocation2 + $0x29] sm:$0xff] %vm372, %v361
      %379 = vst.msk [vmem:[#allocation2 + $0x31] sm:$0xff] %vm372, %v362
      %380 = vst.msk [vmem:[#allocation2 + $0x39] sm:$0xff] %vm372, %v363
      %381 = vst.msk [vmem:[#allocation2 + $0x41] sm:$0xff] %vm372, %v364
      %382 = vst.msk [vmem:[#allocation2 + $0x49] sm:$0xff] %vm372, %v365
      %383 = vst.msk [vmem:[#allocation2 + $0x51] sm:$0xff] %vm372, %v366
      %384 = vst.msk [vmem:[#allocation2 + $0x59] sm:$0xff] %vm372, %v367
      %385 = vst.msk [vmem:[#allocation2 + $0x61] sm:$0xff] %vm372, %v368
      %386 = vst.msk [vmem:[#allocation2 + $0x69] sm:$0xff] %vm372, %v369
      %387 = vst.msk [vmem:[#allocation2 + $0x71] sm:$0xff] %vm372, %v370
      %vm388 = vcmask 260096
      %389 = vst.msk [vmem:[#allocation2 + $0x79] sm:$0x7f] %vm388, %v371
      %406 = vrot.lane.b32.xlu0 %v260, 32
      %v407 = vpop.permute.xlu0 %406
      %408 = vrot.lane.b32.xlu0 %v261, 32
      %v409 = vpop.permute.xlu0 %408
      %410 = vrot.lane.b32.xlu0 %v262, 32
      %v411 = vpop.permute.xlu0 %410
      %412 = vrot.lane.b32.xlu0 %v263, 32
      %v413 = vpop.permute.xlu0 %412
      %414 = vrot.lane.b32.xlu0 %v264, 32
      %v415 = vpop.permute.xlu0 %414
      %416 = vrot.lane.b32.xlu0 %v265, 32
      %v417 = vpop.permute.xlu0 %416
      %418 = vrot.lane.b32.xlu0 %v266, 32
      %v419 = vpop.permute.xlu0 %418
      %420 = vrot.lane.b32.xlu0 %v267, 32
      %v421 = vpop.permute.xlu0 %420
      %422 = vrot.lane.b32.xlu0 %v268, 32
      %v423 = vpop.permute.xlu0 %422
      %424 = vrot.lane.b32.xlu0 %v269, 32
      %v425 = vpop.permute.xlu0 %424
      %426 = vrot.lane.b32.xlu0 %v270, 32
      %v427 = vpop.permute.xlu0 %426
      %428 = vrot.lane.b32.xlu0 %v271, 32
      %v429 = vpop.permute.xlu0 %428
      %430 = vrot.lane.b32.xlu0 %v272, 32
      %v431 = vpop.permute.xlu0 %430
      %432 = vrot.lane.b32.xlu0 %v273, 32
      %v433 = vpop.permute.xlu0 %432
      %434 = vrot.lane.b32.xlu0 %v274, 32
      %v435 = vpop.permute.xlu0 %434
      %436 = vrot.lane.b32.xlu0 %v275, 32
      %v437 = vpop.permute.xlu0 %436
      %vm454 = vcmask 523520
      %455 = vst.msk [vmem:[#allocation2] sm:$0xff] %vm454, %v407
      %456 = vst.msk [vmem:[#allocation2 + $0x8] sm:$0xff] %vm454, %v409
      %457 = vst.msk [vmem:[#allocation2 + $0x10] sm:$0xff] %vm454, %v411
      %458 = vst.msk [vmem:[#allocation2 + $0x18] sm:$0xff] %vm454, %v413
      %459 = vst.msk [vmem:[#allocation2 + $0x20] sm:$0xff] %vm454, %v415
      %460 = vst.msk [vmem:[#allocation2 + $0x28] sm:$0xff] %vm454, %v417
      %461 = vst.msk [vmem:[#allocation2 + $0x30] sm:$0xff] %vm454, %v419
      %462 = vst.msk [vmem:[#allocation2 + $0x38] sm:$0xff] %vm454, %v421
      %463 = vst.msk [vmem:[#allocation2 + $0x40] sm:$0xff] %vm454, %v423
      %464 = vst.msk [vmem:[#allocation2 + $0x48] sm:$0xff] %vm454, %v425
      %465 = vst.msk [vmem:[#allocation2 + $0x50] sm:$0xff] %vm454, %v427
      %466 = vst.msk [vmem:[#allocation2 + $0x58] sm:$0xff] %vm454, %v429
      %467 = vst.msk [vmem:[#allocation2 + $0x60] sm:$0xff] %vm454, %v431
      %468 = vst.msk [vmem:[#allocation2 + $0x68] sm:$0xff] %vm454, %v433
      %469 = vst.msk [vmem:[#allocation2 + $0x70] sm:$0xff] %vm454, %v435
      %470 = vst.msk [vmem:[#allocation2 + $0x78] sm:$0xff] %vm454, %v437
      %471 = vset.pattern.permute.xlu0 4
      %472 = vperm.xlu0 %471, %v223
      %v473 = vpop.permute.xlu0 %472
      %475 = vset.pattern.permute.xlu0 4
      %476 = vperm.xlu0 %475, %v224
      %v477 = vpop.permute.xlu0 %476
      %479 = vset.pattern.permute.xlu0 4
      %480 = vperm.xlu0 %479, %v225
      %v481 = vpop.permute.xlu0 %480
      %483 = vset.pattern.permute.xlu0 4
      %484 = vperm.xlu0 %483, %v226
      %v485 = vpop.permute.xlu0 %484
      %487 = vset.pattern.permute.xlu0 4
      %488 = vperm.xlu0 %487, %v227
      %v489 = vpop.permute.xlu0 %488
      %491 = vset.pattern.permute.xlu0 4
      %492 = vperm.xlu0 %491, %v228
      %v493 = vpop.permute.xlu0 %492
      %495 = vset.pattern.permute.xlu0 4
      %496 = vperm.xlu0 %495, %v229
      %v497 = vpop.permute.xlu0 %496
      %499 = vset.pattern.permute.xlu0 4
      %500 = vperm.xlu0 %499, %v230
      %v501 = vpop.permute.xlu0 %500
      %503 = vset.pattern.permute.xlu0 4
      %504 = vperm.xlu0 %503, %v231
      %v505 = vpop.permute.xlu0 %504
      %507 = vset.pattern.permute.xlu0 4
      %508 = vperm.xlu0 %507, %v232
      %v509 = vpop.permute.xlu0 %508
      %511 = vset.pattern.permute.xlu0 4
      %512 = vperm.xlu0 %511, %v233
      %v513 = vpop.permute.xlu0 %512
      %515 = vset.pattern.permute.xlu0 4
      %516 = vperm.xlu0 %515, %v234
      %v517 = vpop.permute.xlu0 %516
      %519 = vset.pattern.permute.xlu0 4
      %520 = vperm.xlu0 %519, %v235
      %v521 = vpop.permute.xlu0 %520
      %523 = vset.pattern.permute.xlu0 4
      %524 = vperm.xlu0 %523, %v236
      %v525 = vpop.permute.xlu0 %524
      %527 = vset.pattern.permute.xlu0 4
      %528 = vperm.xlu0 %527, %v237
      %v529 = vpop.permute.xlu0 %528
      %531 = vset.pattern.permute.xlu0 4
      %532 = vperm.xlu0 %531, %v238
      %v533 = vpop.permute.xlu0 %532
      %v535 = vmul.f32 %v260, %v473
      %v536 = vmul.f32 %v261, %v477
      %v537 = vmul.f32 %v262, %v481
      %v538 = vmul.f32 %v263, %v485
      %v539 = vmul.f32 %v264, %v489
      %v540 = vmul.f32 %v265, %v493
      %v541 = vmul.f32 %v266, %v497
      %v542 = vmul.f32 %v267, %v501
      %v543 = vmul.f32 %v268, %v505
      %v544 = vmul.f32 %v269, %v509
      %v545 = vmul.f32 %v270, %v513
      %v546 = vmul.f32 %v271, %v517
      %v547 = vmul.f32 %v272, %v521
      %v548 = vmul.f32 %v273, %v525
      %v549 = vmul.f32 %v274, %v529
      %v550 = vmul.f32 %v275, %v533
      %567 = vrot.lane.b32.xlu0 %v535, 64
      %v568 = vpop.permute.xlu0 %567
      %569 = vrot.lane.b32.xlu0 %v536, 64
      %v570 = vpop.permute.xlu0 %569
      %571 = vrot.lane.b32.xlu0 %v537, 64
      %v572 = vpop.permute.xlu0 %571
      %573 = vrot.lane.b32.xlu0 %v538, 64
      %v574 = vpop.permute.xlu0 %573
      %575 = vrot.lane.b32.xlu0 %v539, 64
      %v576 = vpop.permute.xlu0 %575
      %577 = vrot.lane.b32.xlu0 %v540, 64
      %v578 = vpop.permute.xlu0 %577
      %579 = vrot.lane.b32.xlu0 %v541, 64
      %v580 = vpop.permute.xlu0 %579
      %581 = vrot.lane.b32.xlu0 %v542, 64
      %v582 = vpop.permute.xlu0 %581
      %583 = vrot.lane.b32.xlu0 %v543, 64
      %v584 = vpop.permute.xlu0 %583
      %585 = vrot.lane.b32.xlu0 %v544, 64
      %v586 = vpop.permute.xlu0 %585
      %587 = vrot.lane.b32.xlu0 %v545, 64
      %v588 = vpop.permute.xlu0 %587
      %589 = vrot.lane.b32.xlu0 %v546, 64
      %v590 = vpop.permute.xlu0 %589
      %591 = vrot.lane.b32.xlu0 %v547, 64
      %v592 = vpop.permute.xlu0 %591
      %593 = vrot.lane.b32.xlu0 %v548, 64
      %v594 = vpop.permute.xlu0 %593
      %595 = vrot.lane.b32.xlu0 %v549, 64
      %v596 = vpop.permute.xlu0 %595
      %597 = vrot.lane.b32.xlu0 %v550, 64
      %v598 = vpop.permute.xlu0 %597
      %vm615 = vcmask 785921
      %616 = vst.msk [vmem:[#allocation2 - $0x1] sm:$0xfe] %vm615, %v568
      %vm617 = vcmask 785920
      %618 = vst.msk [vmem:[#allocation2 + $0x7] sm:$0xff] %vm617, %v570
      %619 = vst.msk [vmem:[#allocation2 + $0xf] sm:$0xff] %vm617, %v572
      %620 = vst.msk [vmem:[#allocation2 + $0x17] sm:$0xff] %vm617, %v574
      %621 = vst.msk [vmem:[#allocation2 + $0x1f] sm:$0xff] %vm617, %v576
      %622 = vst.msk [vmem:[#allocation2 + $0x27] sm:$0xff] %vm617, %v578
      %623 = vst.msk [vmem:[#allocation2 + $0x2f] sm:$0xff] %vm617, %v580
      %624 = vst.msk [vmem:[#allocation2 + $0x37] sm:$0xff] %vm617, %v582
      %625 = vst.msk [vmem:[#allocation2 + $0x3f] sm:$0xff] %vm617, %v584
      %626 = vst.msk [vmem:[#allocation2 + $0x47] sm:$0xff] %vm617, %v586
      %627 = vst.msk [vmem:[#allocation2 + $0x4f] sm:$0xff] %vm617, %v588
      %628 = vst.msk [vmem:[#allocation2 + $0x57] sm:$0xff] %vm617, %v590
      %629 = vst.msk [vmem:[#allocation2 + $0x5f] sm:$0xff] %vm617, %v592
      %630 = vst.msk [vmem:[#allocation2 + $0x67] sm:$0xff] %vm617, %v594
      %631 = vst.msk [vmem:[#allocation2 + $0x6f] sm:$0xff] %vm617, %v596
      %632 = vst.msk [vmem:[#allocation2 + $0x77] sm:$0xff] %vm617, %v598
      %v633 = vld [vmem:[%s3 + $0x1] sm:$0x1]
      %v634 = vld [vmem:[%s3 + $0x2] sm:$0x1]
      %v635 = vld [vmem:[#allocation2] sm:$0xff]
      %v636 = vld [vmem:[#allocation2 + $0x8] sm:$0xff]
      %v637 = vld [vmem:[#allocation2 + $0x10] sm:$0xff]
      %v638 = vld [vmem:[#allocation2 + $0x18] sm:$0xff]
      %v639 = vld [vmem:[#allocation2 + $0x20] sm:$0xff]
      %v640 = vld [vmem:[#allocation2 + $0x28] sm:$0xff]
      %v641 = vld [vmem:[#allocation2 + $0x30] sm:$0xff]
      %v642 = vld [vmem:[#allocation2 + $0x38] sm:$0xff]
      %v643 = vld [vmem:[#allocation2 + $0x40] sm:$0xff]
      %v644 = vld [vmem:[#allocation2 + $0x48] sm:$0xff]
      %v645 = vld [vmem:[#allocation2 + $0x50] sm:$0xff]
      %v646 = vld [vmem:[#allocation2 + $0x58] sm:$0xff]
      %v647 = vld [vmem:[#allocation2 + $0x60] sm:$0xff]
      %v648 = vld [vmem:[#allocation2 + $0x68] sm:$0xff]
      %v649 = vld [vmem:[#allocation2 + $0x70] sm:$0xff]
      %v650 = vld [vmem:[#allocation2 + $0x78] sm:$0xff]
      %v651 = vld [vmem:[%s2] sm:$0xff]
      %v652 = vld [vmem:[%s2 + $0x8] sm:$0xff]
      %v653 = vld [vmem:[%s2 + $0x10] sm:$0xff]
      %v654 = vld [vmem:[%s2 + $0x18] sm:$0xff]
      %v655 = vld [vmem:[%s2 + $0x20] sm:$0xff]
      %v656 = vld [vmem:[%s2 + $0x28] sm:$0xff]
      %v657 = vld [vmem:[%s2 + $0x30] sm:$0xff]
      %v658 = vld [vmem:[%s2 + $0x38] sm:$0xff]
      %v659 = vld [vmem:[%s2 + $0x40] sm:$0xff]
      %v660 = vld [vmem:[%s2 + $0x48] sm:$0xff]
      %v661 = vld [vmem:[%s2 + $0x50] sm:$0xff]
      %v662 = vld [vmem:[%s2 + $0x58] sm:$0xff]
      %v663 = vld [vmem:[%s2 + $0x60] sm:$0xff]
      %v664 = vld [vmem:[%s2 + $0x68] sm:$0xff]
      %v665 = vld [vmem:[%s2 + $0x70] sm:$0xff]
      %v666 = vld [vmem:[%s2 + $0x78] sm:$0xff]
      %667 = vmatprep.subr.mxu0 0.0
      %668 = vmatpush1.msra.mxu0 %v651
      %669 = vmatprep.subr.mxu0 0.0
      %670 = vmatpush1.msra.mxu0 %v652
      %671 = vmatprep.subr.mxu0 0.0
      %672 = vmatpush1.msra.mxu0 %v653
      %673 = vmatprep.subr.mxu0 0.0
      %674 = vmatpush1.msra.mxu0 %v654
      %675 = vmatprep.subr.mxu0 0.0
      %676 = vmatpush1.msra.mxu0 %v655
      %677 = vmatprep.subr.mxu0 0.0
      %678 = vmatpush1.msra.mxu0 %v656
      %679 = vmatprep.subr.mxu0 0.0
      %680 = vmatpush1.msra.mxu0 %v657
      %681 = vmatprep.subr.mxu0 0.0
      %682 = vmatpush1.msra.mxu0 %v658
      %683 = vmatprep.subr.mxu0 0.0
      %684 = vmatpush1.msra.mxu0 %v659
      %685 = vmatprep.subr.mxu0 0.0
      %686 = vmatpush1.msra.mxu0 %v660
      %687 = vmatprep.subr.mxu0 0.0
      %688 = vmatpush1.msra.mxu0 %v661
      %689 = vmatprep.subr.mxu0 0.0
      %690 = vmatpush1.msra.mxu0 %v662
      %691 = vmatprep.subr.mxu0 0.0
      %692 = vmatpush1.msra.mxu0 %v663
      %693 = vmatprep.subr.mxu0 0.0
      %694 = vmatpush1.msra.mxu0 %v664
      %695 = vmatprep.subr.mxu0 0.0
      %696 = vmatpush1.msra.mxu0 %v665
      %697 = vmatprep.subr.mxu0 0.0
      %698 = vmatpush1.msra.mxu0 %v666
      %699 = vmatprep.subr.mxu0 0.0
      %700 = vmatpush1.msra.mxu0 0.0
      %701 = vmatprep.subr.mxu0 0.0
      %702 = vmatpush1.msra.mxu0 0.0
      %703 = vmatprep.subr.mxu0 0.0
      %704 = vmatpush1.msra.mxu0 0.0
      %705 = vmatprep.subr.mxu0 0.0
      %706 = vmatpush1.msra.mxu0 0.0
      %707 = vmatprep.subr.mxu0 0.0
      %708 = vmatpush1.msra.mxu0 0.0
      %709 = vmatprep.subr.mxu0 0.0
      %710 = vmatpush1.msra.mxu0 0.0
      %711 = vmatprep.subr.mxu0 0.0
      %712 = vmatpush1.msra.mxu0 0.0
      %713 = vmatprep.subr.mxu0 0.0
      %714 = vmatpush1.msra.mxu0 0.0
      %715 = vmatprep.subr.mxu0 0.0
      %716 = vmatpush1.msra.mxu0 0.0
      %717 = vmatprep.subr.mxu0 0.0
      %718 = vmatpush1.msra.mxu0 0.0
      %719 = vmatprep.subr.mxu0 0.0
      %720 = vmatpush1.msra.mxu0 0.0
      %721 = vmatprep.subr.mxu0 0.0
      %722 = vmatpush1.msra.mxu0 0.0
      %723 = vmatprep.subr.mxu0 0.0
      %724 = vmatpush1.msra.mxu0 0.0
      %725 = vmatprep.subr.mxu0 0.0
      %726 = vmatpush1.msra.mxu0 0.0
      %727 = vmatprep.subr.mxu0 0.0
      %728 = vmatpush1.msra.mxu0 0.0
      %729 = vmatprep.subr.mxu0 0.0
      %730 = vmatpush1.msra.mxu0 0.0
      %731 = vmatprep.mubr.f32.mxu0 0.0
      %732 = vmatmul.mubr.f32.gmra.mrb[0].mxu0 %v635
      %v733 = vpop.f32.mrb[0].mxu0
      %v734 = vadd.f32 0.0, %v733
      %v735 = vpop.f32.mrb[0].mxu0
      %736 = vmatprep.mubr.f32.mxu0 0.0
      %737 = vmatmul.mubr.f32.gmra.mrb[0].mxu0 %v636
      %v738 = vpop.f32.mrb[0].mxu0
      %v739 = vadd.f32 0.0, %v738
      %v740 = vpop.f32.mrb[0].mxu0
      %741 = vmatprep.mubr.f32.mxu0 0.0
      %742 = vmatmul.mubr.f32.gmra.mrb[0].mxu0 %v637
      %v743 = vpop.f32.mrb[0].mxu0
      %v744 = vadd.f32 0.0, %v743
      %v745 = vpop.f32.mrb[0].mxu0
      %746 = vmatprep.mubr.f32.mxu0 0.0
      %747 = vmatmul.mubr.f32.gmra.mrb[0].mxu0 %v638
      %v748 = vpop.f32.mrb[0].mxu0
      %v749 = vadd.f32 0.0, %v748
      %v750 = vpop.f32.mrb[0].mxu0
      %751 = vmatprep.mubr.f32.mxu0 0.0
      %752 = vmatmul.mubr.f32.gmra.mrb[0].mxu0 %v639
      %v753 = vpop.f32.mrb[0].mxu0
      %v754 = vadd.f32 0.0, %v753
      %v755 = vpop.f32.mrb[0].mxu0
      %756 = vmatprep.mubr.f32.mxu0 0.0
      %757 = vmatmul.mubr.f32.gmra.mrb[0].mxu0 %v640
      %v758 = vpop.f32.mrb[0].mxu0
      %v759 = vadd.f32 0.0, %v758
      %v760 = vpop.f32.mrb[0].mxu0
      %761 = vmatprep.mubr.f32.mxu0 0.0
      %762 = vmatmul.mubr.f32.gmra.mrb[0].mxu0 %v641
      %v763 = vpop.f32.mrb[0].mxu0
      %v764 = vadd.f32 0.0, %v763
      %v765 = vpop.f32.mrb[0].mxu0
      %766 = vmatprep.mubr.f32.mxu0 0.0
      %767 = vmatmul.mubr.f32.gmra.mrb[0].mxu0 %v642
      %v768 = vpop.f32.mrb[0].mxu0
      %v769 = vadd.f32 0.0, %v768
      %v770 = vpop.f32.mrb[0].mxu0
      %771 = vmatprep.mubr.f32.mxu0 0.0
      %772 = vmatmul.mubr.f32.gmra.mrb[0].mxu0 %v643
      %v773 = vpop.f32.mrb[0].mxu0
      %v774 = vadd.f32 0.0, %v773
      %v775 = vpop.f32.mrb[0].mxu0
      %776 = vmatprep.mubr.f32.mxu0 0.0
      %777 = vmatmul.mubr.f32.gmra.mrb[0].mxu0 %v644
      %v778 = vpop.f32.mrb[0].mxu0
      %v779 = vadd.f32 0.0, %v778
      %v780 = vpop.f32.mrb[0].mxu0
      %781 = vmatprep.mubr.f32.mxu0 0.0
      %782 = vmatmul.mubr.f32.gmra.mrb[0].mxu0 %v645
      %v783 = vpop.f32.mrb[0].mxu0
      %v784 = vadd.f32 0.0, %v783
      %v785 = vpop.f32.mrb[0].mxu0
      %786 = vmatprep.mubr.f32.mxu0 0.0
      %787 = vmatmul.mubr.f32.gmra.mrb[0].mxu0 %v646
      %v788 = vpop.f32.mrb[0].mxu0
      %v789 = vadd.f32 0.0, %v788
      %v790 = vpop.f32.mrb[0].mxu0
      %791 = vmatprep.mubr.f32.mxu0 0.0
      %792 = vmatmul.mubr.f32.gmra.mrb[0].mxu0 %v647
      %v793 = vpop.f32.mrb[0].mxu0
      %v794 = vadd.f32 0.0, %v793
      %v795 = vpop.f32.mrb[0].mxu0
      %796 = vmatprep.mubr.f32.mxu0 0.0
      %797 = vmatmul.mubr.f32.gmra.mrb[0].mxu0 %v648
      %v798 = vpop.f32.mrb[0].mxu0
      %v799 = vadd.f32 0.0, %v798
      %v800 = vpop.f32.mrb[0].mxu0
      %801 = vmatprep.mubr.f32.mxu0 0.0
      %802 = vmatmul.mubr.f32.gmra.mrb[0].mxu0 %v649
      %v803 = vpop.f32.mrb[0].mxu0
      %v804 = vadd.f32 0.0, %v803
      %v805 = vpop.f32.mrb[0].mxu0
      %806 = vmatprep.mubr.f32.mxu0 0.0
      %807 = vmatmul.mubr.f32.gmra.mrb[0].mxu0 %v650
      %v808 = vpop.f32.mrb[0].mxu0
      %v809 = vadd.f32 0.0, %v808
      %v810 = vpop.f32.mrb[0].mxu0
      %811 = vdwg.mxu0
      %v812 = vlaneseq
      %v813 = vshrl.u32 %v812, 7
      %v814 = vsub.s32 0, %v813
      %v815 = vrot.slane %v633, %v814
      %v816 = vmul.f32 %v734, %v815
      %v817 = vmul.f32 %v739, %v815
      %v818 = vmul.f32 %v744, %v815
      %v819 = vmul.f32 %v749, %v815
      %v820 = vmul.f32 %v754, %v815
      %v821 = vmul.f32 %v759, %v815
      %v822 = vmul.f32 %v764, %v815
      %v823 = vmul.f32 %v769, %v815
      %v824 = vmul.f32 %v774, %v815
      %v825 = vmul.f32 %v779, %v815
      %v826 = vmul.f32 %v784, %v815
      %v827 = vmul.f32 %v789, %v815
      %v828 = vmul.f32 %v794, %v815
      %v829 = vmul.f32 %v799, %v815
      %v830 = vmul.f32 %v804, %v815
      %v831 = vmul.f32 %v809, %v815
      %v832 = vlaneseq
      %v833 = vshrl.u32 %v832, 7
      %v834 = vsub.s32 0, %v833
      %v835 = vrot.slane %v634, %v834
      %v836 = vadd.f32 %v816, %v835
      %v837 = vadd.f32 %v817, %v835
      %v838 = vadd.f32 %v818, %v835
      %v839 = vadd.f32 %v819, %v835
      %v840 = vadd.f32 %v820, %v835
      %v841 = vadd.f32 %v821, %v835
      %v842 = vadd.f32 %v822, %v835
      %v843 = vadd.f32 %v823, %v835
      %v844 = vadd.f32 %v824, %v835
      %v845 = vadd.f32 %v825, %v835
      %v846 = vadd.f32 %v826, %v835
      %v847 = vadd.f32 %v827, %v835
      %v848 = vadd.f32 %v828, %v835
      %v849 = vadd.f32 %v829, %v835
      %v850 = vadd.f32 %v830, %v835
      %v851 = vadd.f32 %v831, %v835
      %v852 = vmax.f32 %v836, 0.0
      %v853 = vmax.f32 %v837, 0.0
      %v854 = vmax.f32 %v838, 0.0
      %v855 = vmax.f32 %v839, 0.0
      %v856 = vmax.f32 %v840, 0.0
      %v857 = vmax.f32 %v841, 0.0
      %v858 = vmax.f32 %v842, 0.0
      %v859 = vmax.f32 %v843, 0.0
      %v860 = vmax.f32 %v844, 0.0
      %v861 = vmax.f32 %v845, 0.0
      %v862 = vmax.f32 %v846, 0.0
      %v863 = vmax.f32 %v847, 0.0
      %v864 = vmax.f32 %v848, 0.0
      %v865 = vmax.f32 %v849, 0.0
      %v866 = vmax.f32 %v850, 0.0
      %v867 = vmax.f32 %v851, 0.0
      %v868 = vmul.f32 %v852, %v279
      %v869 = vmul.f32 %v853, %v284
      %v870 = vmul.f32 %v854, %v289
      %v871 = vmul.f32 %v855, %v294
      %v872 = vmul.f32 %v856, %v299
      %v873 = vmul.f32 %v857, %v304
      %v874 = vmul.f32 %v858, %v309
      %v875 = vmul.f32 %v859, %v314
      %v876 = vmul.f32 %v860, %v319
      %v877 = vmul.f32 %v861, %v324
      %v878 = vmul.f32 %v862, %v329
      %v879 = vmul.f32 %v863, %v334
      %v880 = vmul.f32 %v864, %v339
      %v881 = vmul.f32 %v865, %v344
      %v882 = vmul.f32 %v866, %v349
      %v883 = vmul.f32 %v867, %v354
      %884 = vst.msk [vmem:[#allocation2 + $0x1] sm:$0xff] %vm372, %v868
      %885 = vst.msk [vmem:[#allocation2 + $0x9] sm:$0xff] %vm372, %v869
      %886 = vst.msk [vmem:[#allocation2 + $0x11] sm:$0xff] %vm372, %v870
      %887 = vst.msk [vmem:[#allocation2 + $0x19] sm:$0xff] %vm372, %v871
      %888 = vst.msk [vmem:[#allocation2 + $0x21] sm:$0xff] %vm372, %v872
      %889 = vst.msk [vmem:[#allocation2 + $0x29] sm:$0xff] %vm372, %v873
      %890 = vst.msk [vmem:[#allocation2 + $0x31] sm:$0xff] %vm372, %v874
      %891 = vst.msk [vmem:[#allocation2 + $0x39] sm:$0xff] %vm372, %v875
      %892 = vst.msk [vmem:[#allocation2 + $0x41] sm:$0xff] %vm372, %v876
      %893 = vst.msk [vmem:[#allocation2 + $0x49] sm:$0xff] %vm372, %v877
      %894 = vst.msk [vmem:[#allocation2 + $0x51] sm:$0xff] %vm372, %v878
      %895 = vst.msk [vmem:[#allocation2 + $0x59] sm:$0xff] %vm372, %v879
      %896 = vst.msk [vmem:[#allocation2 + $0x61] sm:$0xff] %vm372, %v880
      %897 = vst.msk [vmem:[#allocation2 + $0x69] sm:$0xff] %vm372, %v881
      %898 = vst.msk [vmem:[#allocation2 + $0x71] sm:$0xff] %vm372, %v882
      %899 = vst.msk [vmem:[#allocation2 + $0x79] sm:$0x7f] %vm388, %v883
      %916 = vrot.lane.b32.xlu0 %v852, 32
      %v917 = vpop.permute.xlu0 %916
      %918 = vrot.lane.b32.xlu0 %v853, 32
      %v919 = vpop.permute.xlu0 %918
      %920 = vrot.lane.b32.xlu0 %v854, 32
      %v921 = vpop.permute.xlu0 %920
      %922 = vrot.lane.b32.xlu0 %v855, 32
      %v923 = vpop.permute.xlu0 %922
      %924 = vrot.lane.b32.xlu0 %v856, 32
      %v925 = vpop.permute.xlu0 %924
      %926 = vrot.lane.b32.xlu0 %v857, 32
      %v927 = vpop.permute.xlu0 %926
      %928 = vrot.lane.b32.xlu0 %v858, 32
      %v929 = vpop.permute.xlu0 %928
      %930 = vrot.lane.b32.xlu0 %v859, 32
      %v931 = vpop.permute.xlu0 %930
      %932 = vrot.lane.b32.xlu0 %v860, 32
      %v933 = vpop.permute.xlu0 %932
      %934 = vrot.lane.b32.xlu0 %v861, 32
      %v935 = vpop.permute.xlu0 %934
      %936 = vrot.lane.b32.xlu0 %v862, 32
      %v937 = vpop.permute.xlu0 %936
      %938 = vrot.lane.b32.xlu0 %v863, 32
      %v939 = vpop.permute.xlu0 %938
      %940 = vrot.lane.b32.xlu0 %v864, 32
      %v941 = vpop.permute.xlu0 %940
      %942 = vrot.lane.b32.xlu0 %v865, 32
      %v943 = vpop.permute.xlu0 %942
      %944 = vrot.lane.b32.xlu0 %v866, 32
      %v945 = vpop.permute.xlu0 %944
      %946 = vrot.lane.b32.xlu0 %v867, 32
      %v947 = vpop.permute.xlu0 %946
      %964 = vst.msk [vmem:[#allocation2] sm:$0xff] %vm454, %v917
      %965 = vst.msk [vmem:[#allocation2 + $0x8] sm:$0xff] %vm454, %v919
      %966 = vst.msk [vmem:[#allocation2 + $0x10] sm:$0xff] %vm454, %v921
      %967 = vst.msk [vmem:[#allocation2 + $0x18] sm:$0xff] %vm454, %v923
      %968 = vst.msk [vmem:[#allocation2 + $0x20] sm:$0xff] %vm454, %v925
      %969 = vst.msk [vmem:[#allocation2 + $0x28] sm:$0xff] %vm454, %v927
      %970 = vst.msk [vmem:[#allocation2 + $0x30] sm:$0xff] %vm454, %v929
      %971 = vst.msk [vmem:[#allocation2 + $0x38] sm:$0xff] %vm454, %v931
      %972 = vst.msk [vmem:[#allocation2 + $0x40] sm:$0xff] %vm454, %v933
      %973 = vst.msk [vmem:[#allocation2 + $0x48] sm:$0xff] %vm454, %v935
      %974 = vst.msk [vmem:[#allocation2 + $0x50] sm:$0xff] %vm454, %v937
      %975 = vst.msk [vmem:[#allocation2 + $0x58] sm:$0xff] %vm454, %v939
      %976 = vst.msk [vmem:[#allocation2 + $0x60] sm:$0xff] %vm454, %v941
      %977 = vst.msk [vmem:[#allocation2 + $0x68] sm:$0xff] %vm454, %v943
      %978 = vst.msk [vmem:[#allocation2 + $0x70] sm:$0xff] %vm454, %v945
      %979 = vst.msk [vmem:[#allocation2 + $0x78] sm:$0xff] %vm454, %v947
      %v980 = vmul.f32 %v852, %v473
      %v981 = vmul.f32 %v853, %v477
      %v982 = vmul.f32 %v854, %v481
      %v983 = vmul.f32 %v855, %v485
      %v984 = vmul.f32 %v856, %v489
      %v985 = vmul.f32 %v857, %v493
      %v986 = vmul.f32 %v858, %v497
      %v987 = vmul.f32 %v859, %v501
      %v988 = vmul.f32 %v860, %v505
      %v989 = vmul.f32 %v861, %v509
      %v990 = vmul.f32 %v862, %v513
      %v991 = vmul.f32 %v863, %v517
      %v992 = vmul.f32 %v864, %v521
      %v993 = vmul.f32 %v865, %v525
      %v994 = vmul.f32 %v866, %v529
      %v995 = vmul.f32 %v867, %v533
      %1012 = vrot.lane.b32.xlu0 %v980, 64
      %v1013 = vpop.permute.xlu0 %1012
      %1014 = vrot.lane.b32.xlu0 %v981, 64
      %v1015 = vpop.permute.xlu0 %1014
      %1016 = vrot.lane.b32.xlu0 %v982, 64
      %v1017 = vpop.permute.xlu0 %1016
      %1018 = vrot.lane.b32.xlu0 %v983, 64
      %v1019 = vpop.permute.xlu0 %1018
      %1020 = vrot.lane.b32.xlu0 %v984, 64
      %v1021 = vpop.permute.xlu0 %1020
      %1022 = vrot.lane.b32.xlu0 %v985, 64
      %v1023 = vpop.permute.xlu0 %1022
      %1024 = vrot.lane.b32.xlu0 %v986, 64
      %v1025 = vpop.permute.xlu0 %1024
      %1026 = vrot.lane.b32.xlu0 %v987, 64
      %v1027 = vpop.permute.xlu0 %1026
      %1028 = vrot.lane.b32.xlu0 %v988, 64
      %v1029 = vpop.permute.xlu0 %1028
      %1030 = vrot.lane.b32.xlu0 %v989, 64
      %v1031 = vpop.permute.xlu0 %1030
      %1032 = vrot.lane.b32.xlu0 %v990, 64
      %v1033 = vpop.permute.xlu0 %1032
      %1034 = vrot.lane.b32.xlu0 %v991, 64
      %v1035 = vpop.permute.xlu0 %1034
      %1036 = vrot.lane.b32.xlu0 %v992, 64
      %v1037 = vpop.permute.xlu0 %1036
      %1038 = vrot.lane.b32.xlu0 %v993, 64
      %v1039 = vpop.permute.xlu0 %1038
      %1040 = vrot.lane.b32.xlu0 %v994, 64
      %v1041 = vpop.permute.xlu0 %1040
      %1042 = vrot.lane.b32.xlu0 %v995, 64
      %v1043 = vpop.permute.xlu0 %1042
      %1060 = vst.msk [vmem:[#allocation2 - $0x1] sm:$0xfe] %vm615, %v1013
      %1061 = vst.msk [vmem:[#allocation2 + $0x7] sm:$0xff] %vm617, %v1015
      %1062 = vst.msk [vmem:[#allocation2 + $0xf] sm:$0xff] %vm617, %v1017
      %1063 = vst.msk [vmem:[#allocation2 + $0x17] sm:$0xff] %vm617, %v1019
      %1064 = vst.msk [vmem:[#allocation2 + $0x1f] sm:$0xff] %vm617, %v1021
      %1065 = vst.msk [vmem:[#allocation2 + $0x27] sm:$0xff] %vm617, %v1023
      %1066 = vst.msk [vmem:[#allocation2 + $0x2f] sm:$0xff] %vm617, %v1025
      %1067 = vst.msk [vmem:[#allocation2 + $0x37] sm:$0xff] %vm617, %v1027
      %1068 = vst.msk [vmem:[#allocation2 + $0x3f] sm:$0xff] %vm617, %v1029
      %1069 = vst.msk [vmem:[#allocation2 + $0x47] sm:$0xff] %vm617, %v1031
      %1070 = vst.msk [vmem:[#allocation2 + $0x4f] sm:$0xff] %vm617, %v1033
      %1071 = vst.msk [vmem:[#allocation2 + $0x57] sm:$0xff] %vm617, %v1035
      %1072 = vst.msk [vmem:[#allocation2 + $0x5f] sm:$0xff] %vm617, %v1037
      %1073 = vst.msk [vmem:[#allocation2 + $0x67] sm:$0xff] %vm617, %v1039
      %1074 = vst.msk [vmem:[#allocation2 + $0x6f] sm:$0xff] %vm617, %v1041
      %1075 = vst.msk [vmem:[#allocation2 + $0x77] sm:$0xff] %vm617, %v1043
      %v1076 = vld [vmem:[%s3 + $0x1] sm:$0x1]
      %v1077 = vld [vmem:[%s3 + $0x2] sm:$0x1]
      %v1078 = vld [vmem:[#allocation2] sm:$0xff]
      %v1079 = vld [vmem:[#allocation2 + $0x8] sm:$0xff]
      %v1080 = vld [vmem:[#allocation2 + $0x10] sm:$0xff]
      %v1081 = vld [vmem:[#allocation2 + $0x18] sm:$0xff]
      %v1082 = vld [vmem:[#allocation2 + $0x20] sm:$0xff]
      %v1083 = vld [vmem:[#allocation2 + $0x28] sm:$0xff]
      %v1084 = vld [vmem:[#allocation2 + $0x30] sm:$0xff]
      %v1085 = vld [vmem:[#allocation2 + $0x38] sm:$0xff]
      %v1086 = vld [vmem:[#allocation2 + $0x40] sm:$0xff]
      %v1087 = vld [vmem:[#allocation2 + $0x48] sm:$0xff]
      %v1088 = vld [vmem:[#allocation2 + $0x50] sm:$0xff]
      %v1089 = vld [vmem:[#allocation2 + $0x58] sm:$0xff]
      %v1090 = vld [vmem:[#allocation2 + $0x60] sm:$0xff]
      %v1091 = vld [vmem:[#allocation2 + $0x68] sm:$0xff]
      %v1092 = vld [vmem:[#allocation2 + $0x70] sm:$0xff]
      %v1093 = vld [vmem:[#allocation2 + $0x78] sm:$0xff]
      %s1094 = scalar_lea.vmem %s2, 128
      %v1095 = vld [vmem:[%s1094] sm:$0xff]
      %v1096 = vld [vmem:[%s1094 + $0x8] sm:$0xff]
      %v1097 = vld [vmem:[%s1094 + $0x10] sm:$0xff]
      %v1098 = vld [vmem:[%s1094 + $0x18] sm:$0xff]
      %v1099 = vld [vmem:[%s1094 + $0x20] sm:$0xff]
      %v1100 = vld [vmem:[%s1094 + $0x28] sm:$0xff]
      %v1101 = vld [vmem:[%s1094 + $0x30] sm:$0xff]
      %v1102 = vld [vmem:[%s1094 + $0x38] sm:$0xff]
      %v1103 = vld [vmem:[%s1094 + $0x40] sm:$0xff]
      %v1104 = vld [vmem:[%s1094 + $0x48] sm:$0xff]
      %v1105 = vld [vmem:[%s1094 + $0x50] sm:$0xff]
      %v1106 = vld [vmem:[%s1094 + $0x58] sm:$0xff]
      %v1107 = vld [vmem:[%s1094 + $0x60] sm:$0xff]
      %v1108 = vld [vmem:[%s1094 + $0x68] sm:$0xff]
      %v1109 = vld [vmem:[%s1094 + $0x70] sm:$0xff]
      %v1110 = vld [vmem:[%s1094 + $0x78] sm:$0xff]
      %1111 = vmatprep.subr.mxu0 0.0
      %1112 = vmatpush1.msra.mxu0 %v1095
      %1113 = vmatprep.subr.mxu0 0.0
      %1114 = vmatpush1.msra.mxu0 %v1096
      %1115 = vmatprep.subr.mxu0 0.0
      %1116 = vmatpush1.msra.mxu0 %v1097
      %1117 = vmatprep.subr.mxu0 0.0
      %1118 = vmatpush1.msra.mxu0 %v1098
      %1119 = vmatprep.subr.mxu0 0.0
      %1120 = vmatpush1.msra.mxu0 %v1099
      %1121 = vmatprep.subr.mxu0 0.0
      %1122 = vmatpush1.msra.mxu0 %v1100
      %1123 = vmatprep.subr.mxu0 0.0
      %1124 = vmatpush1.msra.mxu0 %v1101
      %1125 = vmatprep.subr.mxu0 0.0
      %1126 = vmatpush1.msra.mxu0 %v1102
      %1127 = vmatprep.subr.mxu0 0.0
      %1128 = vmatpush1.msra.mxu0 %v1103
      %1129 = vmatprep.subr.mxu0 0.0
      %1130 = vmatpush1.msra.mxu0 %v1104
      %1131 = vmatprep.subr.mxu0 0.0
      %1132 = vmatpush1.msra.mxu0 %v1105
      %1133 = vmatprep.subr.mxu0 0.0
      %1134 = vmatpush1.msra.mxu0 %v1106
      %1135 = vmatprep.subr.mxu0 0.0
      %1136 = vmatpush1.msra.mxu0 %v1107
      %1137 = vmatprep.subr.mxu0 0.0
      %1138 = vmatpush1.msra.mxu0 %v1108
      %1139 = vmatprep.subr.mxu0 0.0
      %1140 = vmatpush1.msra.mxu0 %v1109
      %1141 = vmatprep.subr.mxu0 0.0
      %1142 = vmatpush1.msra.mxu0 %v1110
      %1143 = vmatprep.subr.mxu0 0.0
      %1144 = vmatpush1.msra.mxu0 0.0
      %1145 = vmatprep.subr.mxu0 0.0
      %1146 = vmatpush1.msra.mxu0 0.0
      %1147 = vmatprep.subr.mxu0 0.0
      %1148 = vmatpush1.msra.mxu0 0.0
      %1149 = vmatprep.subr.mxu0 0.0
      %1150 = vmatpush1.msra.mxu0 0.0
      %1151 = vmatprep.subr.mxu0 0.0
      %1152 = vmatpush1.msra.mxu0 0.0
      %1153 = vmatprep.subr.mxu0 0.0
      %1154 = vmatpush1.msra.mxu0 0.0
      %1155 = vmatprep.subr.mxu0 0.0
      %1156 = vmatpush1.msra.mxu0 0.0
      %1157 = vmatprep.subr.mxu0 0.0
      %1158 = vmatpush1.msra.mxu0 0.0
      %1159 = vmatprep.subr.mxu0 0.0
      %1160 = vmatpush1.msra.mxu0 0.0
      %1161 = vmatprep.subr.mxu0 0.0
      %1162 = vmatpush1.msra.mxu0 0.0
      %1163 = vmatprep.subr.mxu0 0.0
      %1164 = vmatpush1.msra.mxu0 0.0
      %1165 = vmatprep.subr.mxu0 0.0
      %1166 = vmatpush1.msra.mxu0 0.0
      %1167 = vmatprep.subr.mxu0 0.0
      %1168 = vmatpush1.msra.mxu0 0.0
      %1169 = vmatprep.subr.mxu0 0.0
      %1170 = vmatpush1.msra.mxu0 0.0
      %1171 = vmatprep.subr.mxu0 0.0
      %1172 = vmatpush1.msra.mxu0 0.0
      %1173 = vmatprep.subr.mxu0 0.0
      %1174 = vmatpush1.msra.mxu0 0.0
      %1175 = vmatprep.mubr.f32.mxu0 0.0
      %1176 = vmatmul.mubr.f32.gmra.mrb[0].mxu0 %v1078
      %v1177 = vpop.f32.mrb[0].mxu0
      %v1178 = vadd.f32 0.0, %v1177
      %v1179 = vpop.f32.mrb[0].mxu0
      %1180 = vmatprep.mubr.f32.mxu0 0.0
      %1181 = vmatmul.mubr.f32.gmra.mrb[0].mxu0 %v1079
      %v1182 = vpop.f32.mrb[0].mxu0
      %v1183 = vadd.f32 0.0, %v1182
      %v1184 = vpop.f32.mrb[0].mxu0
      %1185 = vmatprep.mubr.f32.mxu0 0.0
      %1186 = vmatmul.mubr.f32.gmra.mrb[0].mxu0 %v1080
      %v1187 = vpop.f32.mrb[0].mxu0
      %v1188 = vadd.f32 0.0, %v1187
      %v1189 = vpop.f32.mrb[0].mxu0
      %1190 = vmatprep.mubr.f32.mxu0 0.0
      %1191 = vmatmul.mubr.f32.gmra.mrb[0].mxu0 %v1081
      %v1192 = vpop.f32.mrb[0].mxu0
      %v1193 = vadd.f32 0.0, %v1192
      %v1194 = vpop.f32.mrb[0].mxu0
      %1195 = vmatprep.mubr.f32.mxu0 0.0
      %1196 = vmatmul.mubr.f32.gmra.mrb[0].mxu0 %v1082
      %v1197 = vpop.f32.mrb[0].mxu0
      %v1198 = vadd.f32 0.0, %v1197
      %v1199 = vpop.f32.mrb[0].mxu0
      %1200 = vmatprep.mubr.f32.mxu0 0.0
      %1201 = vmatmul.mubr.f32.gmra.mrb[0].mxu0 %v1083
      %v1202 = vpop.f32.mrb[0].mxu0
      %v1203 = vadd.f32 0.0, %v1202
      %v1204 = vpop.f32.mrb[0].mxu0
      %1205 = vmatprep.mubr.f32.mxu0 0.0
      %1206 = vmatmul.mubr.f32.gmra.mrb[0].mxu0 %v1084
      %v1207 = vpop.f32.mrb[0].mxu0
      %v1208 = vadd.f32 0.0, %v1207
      %v1209 = vpop.f32.mrb[0].mxu0
      %1210 = vmatprep.mubr.f32.mxu0 0.0
      %1211 = vmatmul.mubr.f32.gmra.mrb[0].mxu0 %v1085
      %v1212 = vpop.f32.mrb[0].mxu0
      %v1213 = vadd.f32 0.0, %v1212
      %v1214 = vpop.f32.mrb[0].mxu0
      %1215 = vmatprep.mubr.f32.mxu0 0.0
      %1216 = vmatmul.mubr.f32.gmra.mrb[0].mxu0 %v1086
      %v1217 = vpop.f32.mrb[0].mxu0
      %v1218 = vadd.f32 0.0, %v1217
      %v1219 = vpop.f32.mrb[0].mxu0
      %1220 = vmatprep.mubr.f32.mxu0 0.0
      %1221 = vmatmul.mubr.f32.gmra.mrb[0].mxu0 %v1087
      %v1222 = vpop.f32.mrb[0].mxu0
      %v1223 = vadd.f32 0.0, %v1222
      %v1224 = vpop.f32.mrb[0].mxu0
      %1225 = vmatprep.mubr.f32.mxu0 0.0
      %1226 = vmatmul.mubr.f32.gmra.mrb[0].mxu0 %v1088
      %v1227 = vpop.f32.mrb[0].mxu0
      %v1228 = vadd.f32 0.0, %v1227
      %v1229 = vpop.f32.mrb[0].mxu0
      %1230 = vmatprep.mubr.f32.mxu0 0.0
      %1231 = vmatmul.mubr.f32.gmra.mrb[0].mxu0 %v1089
      %v1232 = vpop.f32.mrb[0].mxu0
      %v1233 = vadd.f32 0.0, %v1232
      %v1234 = vpop.f32.mrb[0].mxu0
      %1235 = vmatprep.mubr.f32.mxu0 0.0
      %1236 = vmatmul.mubr.f32.gmra.mrb[0].mxu0 %v1090
      %v1237 = vpop.f32.mrb[0].mxu0
      %v1238 = vadd.f32 0.0, %v1237
      %v1239 = vpop.f32.mrb[0].mxu0
      %1240 = vmatprep.mubr.f32.mxu0 0.0
      %1241 = vmatmul.mubr.f32.gmra.mrb[0].mxu0 %v1091
      %v1242 = vpop.f32.mrb[0].mxu0
      %v1243 = vadd.f32 0.0, %v1242
      %v1244 = vpop.f32.mrb[0].mxu0
      %1245 = vmatprep.mubr.f32.mxu0 0.0
      %1246 = vmatmul.mubr.f32.gmra.mrb[0].mxu0 %v1092
      %v1247 = vpop.f32.mrb[0].mxu0
      %v1248 = vadd.f32 0.0, %v1247
      %v1249 = vpop.f32.mrb[0].mxu0
      %1250 = vmatprep.mubr.f32.mxu0 0.0
      %1251 = vmatmul.mubr.f32.gmra.mrb[0].mxu0 %v1093
      %v1252 = vpop.f32.mrb[0].mxu0
      %v1253 = vadd.f32 0.0, %v1252
      %v1254 = vpop.f32.mrb[0].mxu0
      %1255 = vdwg.mxu0
      %v1256 = vlaneseq
      %v1257 = vshrl.u32 %v1256, 7
      %v1258 = vsub.s32 0, %v1257
      %v1259 = vrot.slane %v1076, %v1258
      %1261 = vrot.lane.b32.xlu0 %v1259, 96
      %v1262 = vpop.permute.xlu0 %1261
      %v1264 = vmul.f32 %v1178, %v1262
      %v1265 = vmul.f32 %v1183, %v1262
      %v1266 = vmul.f32 %v1188, %v1262
      %v1267 = vmul.f32 %v1193, %v1262
      %v1268 = vmul.f32 %v1198, %v1262
      %v1269 = vmul.f32 %v1203, %v1262
      %v1270 = vmul.f32 %v1208, %v1262
      %v1271 = vmul.f32 %v1213, %v1262
      %v1272 = vmul.f32 %v1218, %v1262
      %v1273 = vmul.f32 %v1223, %v1262
      %v1274 = vmul.f32 %v1228, %v1262
      %v1275 = vmul.f32 %v1233, %v1262
      %v1276 = vmul.f32 %v1238, %v1262
      %v1277 = vmul.f32 %v1243, %v1262
      %v1278 = vmul.f32 %v1248, %v1262
      %v1279 = vmul.f32 %v1253, %v1262
      %v1280 = vlaneseq
      %v1281 = vshrl.u32 %v1280, 7
      %v1282 = vsub.s32 0, %v1281
      %v1283 = vrot.slane %v1077, %v1282
      %1285 = vrot.lane.b32.xlu0 %v1283, 96
      %v1286 = vpop.permute.xlu0 %1285
      %v1288 = vadd.f32 %v1264, %v1286
      %v1289 = vadd.f32 %v1265, %v1286
      %v1290 = vadd.f32 %v1266, %v1286
      %v1291 = vadd.f32 %v1267, %v1286
      %v1292 = vadd.f32 %v1268, %v1286
      %v1293 = vadd.f32 %v1269, %v1286
      %v1294 = vadd.f32 %v1270, %v1286
      %v1295 = vadd.f32 %v1271, %v1286
      %v1296 = vadd.f32 %v1272, %v1286
      %v1297 = vadd.f32 %v1273, %v1286
      %v1298 = vadd.f32 %v1274, %v1286
      %v1299 = vadd.f32 %v1275, %v1286
      %v1300 = vadd.f32 %v1276, %v1286
      %v1301 = vadd.f32 %v1277, %v1286
      %v1302 = vadd.f32 %v1278, %v1286
      %v1303 = vadd.f32 %v1279, %v1286
      %v1304 = vmax.f32 %v1288, 0.0
      %v1305 = vmax.f32 %v1289, 0.0
      %v1306 = vmax.f32 %v1290, 0.0
      %v1307 = vmax.f32 %v1291, 0.0
      %v1308 = vmax.f32 %v1292, 0.0
      %v1309 = vmax.f32 %v1293, 0.0
      %v1310 = vmax.f32 %v1294, 0.0
      %v1311 = vmax.f32 %v1295, 0.0
      %v1312 = vmax.f32 %v1296, 0.0
      %v1313 = vmax.f32 %v1297, 0.0
      %v1314 = vmax.f32 %v1298, 0.0
      %v1315 = vmax.f32 %v1299, 0.0
      %v1316 = vmax.f32 %v1300, 0.0
      %v1317 = vmax.f32 %v1301, 0.0
      %v1318 = vmax.f32 %v1302, 0.0
      %v1319 = vmax.f32 %v1303, 0.0
      %v1320 = vmul.f32 %v1304, %v279
      %v1321 = vmul.f32 %v1305, %v284
      %v1322 = vmul.f32 %v1306, %v289
      %v1323 = vmul.f32 %v1307, %v294
      %v1324 = vmul.f32 %v1308, %v299
      %v1325 = vmul.f32 %v1309, %v304
      %v1326 = vmul.f32 %v1310, %v309
      %v1327 = vmul.f32 %v1311, %v314
      %v1328 = vmul.f32 %v1312, %v319
      %v1329 = vmul.f32 %v1313, %v324
      %v1330 = vmul.f32 %v1314, %v329
      %v1331 = vmul.f32 %v1315, %v334
      %v1332 = vmul.f32 %v1316, %v339
      %v1333 = vmul.f32 %v1317, %v344
      %v1334 = vmul.f32 %v1318, %v349
      %v1335 = vmul.f32 %v1319, %v354
      %1336 = vst.msk [vmem:[#allocation2 + $0x1] sm:$0xff] %vm372, %v1320
      %1337 = vst.msk [vmem:[#allocation2 + $0x9] sm:$0xff] %vm372, %v1321
      %1338 = vst.msk [vmem:[#allocation2 + $0x11] sm:$0xff] %vm372, %v1322
      %1339 = vst.msk [vmem:[#allocation2 + $0x19] sm:$0xff] %vm372, %v1323
      %1340 = vst.msk [vmem:[#allocation2 + $0x21] sm:$0xff] %vm372, %v1324
      %1341 = vst.msk [vmem:[#allocation2 + $0x29] sm:$0xff] %vm372, %v1325
      %1342 = vst.msk [vmem:[#allocation2 + $0x31] sm:$0xff] %vm372, %v1326
      %1343 = vst.msk [vmem:[#allocation2 + $0x39] sm:$0xff] %vm372, %v1327
      %1344 = vst.msk [vmem:[#allocation2 + $0x41] sm:$0xff] %vm372, %v1328
      %1345 = vst.msk [vmem:[#allocation2 + $0x49] sm:$0xff] %vm372, %v1329
      %1346 = vst.msk [vmem:[#allocation2 + $0x51] sm:$0xff] %vm372, %v1330
      %1347 = vst.msk [vmem:[#allocation2 + $0x59] sm:$0xff] %vm372, %v1331
      %1348 = vst.msk [vmem:[#allocation2 + $0x61] sm:$0xff] %vm372, %v1332
      %1349 = vst.msk [vmem:[#allocation2 + $0x69] sm:$0xff] %vm372, %v1333
      %1350 = vst.msk [vmem:[#allocation2 + $0x71] sm:$0xff] %vm372, %v1334
      %1351 = vst.msk [vmem:[#allocation2 + $0x79] sm:$0x7f] %vm388, %v1335
      %1368 = vrot.lane.b32.xlu0 %v1304, 32
      %v1369 = vpop.permute.xlu0 %1368
      %1370 = vrot.lane.b32.xlu0 %v1305, 32
      %v1371 = vpop.permute.xlu0 %1370
      %1372 = vrot.lane.b32.xlu0 %v1306, 32
      %v1373 = vpop.permute.xlu0 %1372
      %1374 = vrot.lane.b32.xlu0 %v1307, 32
      %v1375 = vpop.permute.xlu0 %1374
      %1376 = vrot.lane.b32.xlu0 %v1308, 32
      %v1377 = vpop.permute.xlu0 %1376
      %1378 = vrot.lane.b32.xlu0 %v1309, 32
      %v1379 = vpop.permute.xlu0 %1378
      %1380 = vrot.lane.b32.xlu0 %v1310, 32
      %v1381 = vpop.permute.xlu0 %1380
      %1382 = vrot.lane.b32.xlu0 %v1311, 32
      %v1383 = vpop.permute.xlu0 %1382
      %1384 = vrot.lane.b32.xlu0 %v1312, 32
      %v1385 = vpop.permute.xlu0 %1384
      %1386 = vrot.lane.b32.xlu0 %v1313, 32
      %v1387 = vpop.permute.xlu0 %1386
      %1388 = vrot.lane.b32.xlu0 %v1314, 32
      %v1389 = vpop.permute.xlu0 %1388
      %1390 = vrot.lane.b32.xlu0 %v1315, 32
      %v1391 = vpop.permute.xlu0 %1390
      %1392 = vrot.lane.b32.xlu0 %v1316, 32
      %v1393 = vpop.permute.xlu0 %1392
      %1394 = vrot.lane.b32.xlu0 %v1317, 32
      %v1395 = vpop.permute.xlu0 %1394
      %1396 = vrot.lane.b32.xlu0 %v1318, 32
      %v1397 = vpop.permute.xlu0 %1396
      %1398 = vrot.lane.b32.xlu0 %v1319, 32
      %v1399 = vpop.permute.xlu0 %1398
      %1416 = vst.msk [vmem:[#allocation2] sm:$0xff] %vm454, %v1369
      %1417 = vst.msk [vmem:[#allocation2 + $0x8] sm:$0xff] %vm454, %v1371
      %1418 = vst.msk [vmem:[#allocation2 + $0x10] sm:$0xff] %vm454, %v1373
      %1419 = vst.msk [vmem:[#allocation2 + $0x18] sm:$0xff] %vm454, %v1375
      %1420 = vst.msk [vmem:[#allocation2 + $0x20] sm:$0xff] %vm454, %v1377
      %1421 = vst.msk [vmem:[#allocation2 + $0x28] sm:$0xff] %vm454, %v1379
      %1422 = vst.msk [vmem:[#allocation2 + $0x30] sm:$0xff] %vm454, %v1381
      %1423 = vst.msk [vmem:[#allocation2 + $0x38] sm:$0xff] %vm454, %v1383
      %1424 = vst.msk [vmem:[#allocation2 + $0x40] sm:$0xff] %vm454, %v1385
      %1425 = vst.msk [vmem:[#allocation2 + $0x48] sm:$0xff] %vm454, %v1387
      %1426 = vst.msk [vmem:[#allocation2 + $0x50] sm:$0xff] %vm454, %v1389
      %1427 = vst.msk [vmem:[#allocation2 + $0x58] sm:$0xff] %vm454, %v1391
      %1428 = vst.msk [vmem:[#allocation2 + $0x60] sm:$0xff] %vm454, %v1393
      %1429 = vst.msk [vmem:[#allocation2 + $0x68] sm:$0xff] %vm454, %v1395
      %1430 = vst.msk [vmem:[#allocation2 + $0x70] sm:$0xff] %vm454, %v1397
      %1431 = vst.msk [vmem:[#allocation2 + $0x78] sm:$0xff] %vm454, %v1399
      %v1432 = vmul.f32 %v1304, %v473
      %v1433 = vmul.f32 %v1305, %v477
      %v1434 = vmul.f32 %v1306, %v481
      %v1435 = vmul.f32 %v1307, %v485
      %v1436 = vmul.f32 %v1308, %v489
      %v1437 = vmul.f32 %v1309, %v493
      %v1438 = vmul.f32 %v1310, %v497
      %v1439 = vmul.f32 %v1311, %v501
      %v1440 = vmul.f32 %v1312, %v505
      %v1441 = vmul.f32 %v1313, %v509
      %v1442 = vmul.f32 %v1314, %v513
      %v1443 = vmul.f32 %v1315, %v517
      %v1444 = vmul.f32 %v1316, %v521
      %v1445 = vmul.f32 %v1317, %v525
      %v1446 = vmul.f32 %v1318, %v529
      %v1447 = vmul.f32 %v1319, %v533
      %1464 = vrot.lane.b32.xlu0 %v1432, 64
      %v1465 = vpop.permute.xlu0 %1464
      %1466 = vrot.lane.b32.xlu0 %v1433, 64
      %v1467 = vpop.permute.xlu0 %1466
      %1468 = vrot.lane.b32.xlu0 %v1434, 64
      %v1469 = vpop.permute.xlu0 %1468
      %1470 = vrot.lane.b32.xlu0 %v1435, 64
      %v1471 = vpop.permute.xlu0 %1470
      %1472 = vrot.lane.b32.xlu0 %v1436, 64
      %v1473 = vpop.permute.xlu0 %1472
      %1474 = vrot.lane.b32.xlu0 %v1437, 64
      %v1475 = vpop.permute.xlu0 %1474
      %1476 = vrot.lane.b32.xlu0 %v1438, 64
      %v1477 = vpop.permute.xlu0 %1476
      %1478 = vrot.lane.b32.xlu0 %v1439, 64
      %v1479 = vpop.permute.xlu0 %1478
      %1480 = vrot.lane.b32.xlu0 %v1440, 64
      %v1481 = vpop.permute.xlu0 %1480
      %1482 = vrot.lane.b32.xlu0 %v1441, 64
      %v1483 = vpop.permute.xlu0 %1482
      %1484 = vrot.lane.b32.xlu0 %v1442, 64
      %v1485 = vpop.permute.xlu0 %1484
      %1486 = vrot.lane.b32.xlu0 %v1443, 64
      %v1487 = vpop.permute.xlu0 %1486
      %1488 = vrot.lane.b32.xlu0 %v1444, 64
      %v1489 = vpop.permute.xlu0 %1488
      %1490 = vrot.lane.b32.xlu0 %v1445, 64
      %v1491 = vpop.permute.xlu0 %1490
      %1492 = vrot.lane.b32.xlu0 %v1446, 64
      %v1493 = vpop.permute.xlu0 %1492
      %1494 = vrot.lane.b32.xlu0 %v1447, 64
      %v1495 = vpop.permute.xlu0 %1494
      %1512 = vst.msk [vmem:[#allocation2 - $0x1] sm:$0xfe] %vm615, %v1465
      %1513 = vst.msk [vmem:[#allocation2 + $0x7] sm:$0xff] %vm617, %v1467
      %1514 = vst.msk [vmem:[#allocation2 + $0xf] sm:$0xff] %vm617, %v1469
      %1515 = vst.msk [vmem:[#allocation2 + $0x17] sm:$0xff] %vm617, %v1471
      %1516 = vst.msk [vmem:[#allocation2 + $0x1f] sm:$0xff] %vm617, %v1473
      %1517 = vst.msk [vmem:[#allocation2 + $0x27] sm:$0xff] %vm617, %v1475
      %1518 = vst.msk [vmem:[#allocation2 + $0x2f] sm:$0xff] %vm617, %v1477
      %1519 = vst.msk [vmem:[#allocation2 + $0x37] sm:$0xff] %vm617, %v1479
      %1520 = vst.msk [vmem:[#allocation2 + $0x3f] sm:$0xff] %vm617, %v1481
      %1521 = vst.msk [vmem:[#allocation2 + $0x47] sm:$0xff] %vm617, %v1483
      %1522 = vst.msk [vmem:[#allocation2 + $0x4f] sm:$0xff] %vm617, %v1485
      %1523 = vst.msk [vmem:[#allocation2 + $0x57] sm:$0xff] %vm617, %v1487
      %1524 = vst.msk [vmem:[#allocation2 + $0x5f] sm:$0xff] %vm617, %v1489
      %1525 = vst.msk [vmem:[#allocation2 + $0x67] sm:$0xff] %vm617, %v1491
      %1526 = vst.msk [vmem:[#allocation2 + $0x6f] sm:$0xff] %vm617, %v1493
      %1527 = vst.msk [vmem:[#allocation2 + $0x77] sm:$0xff] %vm617, %v1495
      %v1528 = vld [vmem:[%s3 + $0x1] sm:$0x1]
      %v1529 = vld [vmem:[%s3 + $0x2] sm:$0x1]
      %v1530 = vld [vmem:[#allocation2] sm:$0xff]
      %v1531 = vld [vmem:[#allocation2 + $0x8] sm:$0xff]
      %v1532 = vld [vmem:[#allocation2 + $0x10] sm:$0xff]
      %v1533 = vld [vmem:[#allocation2 + $0x18] sm:$0xff]
      %v1534 = vld [vmem:[#allocation2 + $0x20] sm:$0xff]
      %v1535 = vld [vmem:[#allocation2 + $0x28] sm:$0xff]
      %v1536 = vld [vmem:[#allocation2 + $0x30] sm:$0xff]
      %v1537 = vld [vmem:[#allocation2 + $0x38] sm:$0xff]
      %v1538 = vld [vmem:[#allocation2 + $0x40] sm:$0xff]
      %v1539 = vld [vmem:[#allocation2 + $0x48] sm:$0xff]
      %v1540 = vld [vmem:[#allocation2 + $0x50] sm:$0xff]
      %v1541 = vld [vmem:[#allocation2 + $0x58] sm:$0xff]
      %v1542 = vld [vmem:[#allocation2 + $0x60] sm:$0xff]
      %v1543 = vld [vmem:[#allocation2 + $0x68] sm:$0xff]
      %v1544 = vld [vmem:[#allocation2 + $0x70] sm:$0xff]
      %v1545 = vld [vmem:[#allocation2 + $0x78] sm:$0xff]
      %s1546 = scalar_lea.vmem %s2, 256
      %v1547 = vld [vmem:[%s1546] sm:$0xff]
      %v1548 = vld [vmem:[%s1546 + $0x8] sm:$0xff]
      %v1549 = vld [vmem:[%s1546 + $0x10] sm:$0xff]
      %v1550 = vld [vmem:[%s1546 + $0x18] sm:$0xff]
      %v1551 = vld [vmem:[%s1546 + $0x20] sm:$0xff]
      %v1552 = vld [vmem:[%s1546 + $0x28] sm:$0xff]
      %v1553 = vld [vmem:[%s1546 + $0x30] sm:$0xff]
      %v1554 = vld [vmem:[%s1546 + $0x38] sm:$0xff]
      %v1555 = vld [vmem:[%s1546 + $0x40] sm:$0xff]
      %v1556 = vld [vmem:[%s1546 + $0x48] sm:$0xff]
      %v1557 = vld [vmem:[%s1546 + $0x50] sm:$0xff]
      %v1558 = vld [vmem:[%s1546 + $0x58] sm:$0xff]
      %v1559 = vld [vmem:[%s1546 + $0x60] sm:$0xff]
      %v1560 = vld [vmem:[%s1546 + $0x68] sm:$0xff]
      %v1561 = vld [vmem:[%s1546 + $0x70] sm:$0xff]
      %v1562 = vld [vmem:[%s1546 + $0x78] sm:$0xff]
      %1563 = vmatprep.subr.mxu0 0.0
      %1564 = vmatpush1.msra.mxu0 %v1547
      %1565 = vmatprep.subr.mxu0 0.0
      %1566 = vmatpush1.msra.mxu0 %v1548
      %1567 = vmatprep.subr.mxu0 0.0
      %1568 = vmatpush1.msra.mxu0 %v1549
      %1569 = vmatprep.subr.mxu0 0.0
      %1570 = vmatpush1.msra.mxu0 %v1550
      %1571 = vmatprep.subr.mxu0 0.0
      %1572 = vmatpush1.msra.mxu0 %v1551
      %1573 = vmatprep.subr.mxu0 0.0
      %1574 = vmatpush1.msra.mxu0 %v1552
      %1575 = vmatprep.subr.mxu0 0.0
      %1576 = vmatpush1.msra.mxu0 %v1553
      %1577 = vmatprep.subr.mxu0 0.0
      %1578 = vmatpush1.msra.mxu0 %v1554
      %1579 = vmatprep.subr.mxu0 0.0
      %1580 = vmatpush1.msra.mxu0 %v1555
      %1581 = vmatprep.subr.mxu0 0.0
      %1582 = vmatpush1.msra.mxu0 %v1556
      %1583 = vmatprep.subr.mxu0 0.0
      %1584 = vmatpush1.msra.mxu0 %v1557
      %1585 = vmatprep.subr.mxu0 0.0
      %1586 = vmatpush1.msra.mxu0 %v1558
      %1587 = vmatprep.subr.mxu0 0.0
      %1588 = vmatpush1.msra.mxu0 %v1559
      %1589 = vmatprep.subr.mxu0 0.0
      %1590 = vmatpush1.msra.mxu0 %v1560
      %1591 = vmatprep.subr.mxu0 0.0
      %1592 = vmatpush1.msra.mxu0 %v1561
      %1593 = vmatprep.subr.mxu0 0.0
      %1594 = vmatpush1.msra.mxu0 %v1562
      %1595 = vmatprep.subr.mxu0 0.0
      %1596 = vmatpush1.msra.mxu0 0.0
      %1597 = vmatprep.subr.mxu0 0.0
      %1598 = vmatpush1.msra.mxu0 0.0
      %1599 = vmatprep.subr.mxu0 0.0
      %1600 = vmatpush1.msra.mxu0 0.0
      %1601 = vmatprep.subr.mxu0 0.0
      %1602 = vmatpush1.msra.mxu0 0.0
      %1603 = vmatprep.subr.mxu0 0.0
      %1604 = vmatpush1.msra.mxu0 0.0
      %1605 = vmatprep.subr.mxu0 0.0
      %1606 = vmatpush1.msra.mxu0 0.0
      %1607 = vmatprep.subr.mxu0 0.0
      %1608 = vmatpush1.msra.mxu0 0.0
      %1609 = vmatprep.subr.mxu0 0.0
      %1610 = vmatpush1.msra.mxu0 0.0
      %1611 = vmatprep.subr.mxu0 0.0
      %1612 = vmatpush1.msra.mxu0 0.0
      %1613 = vmatprep.subr.mxu0 0.0
      %1614 = vmatpush1.msra.mxu0 0.0
      %1615 = vmatprep.subr.mxu0 0.0
      %1616 = vmatpush1.msra.mxu0 0.0
      %1617 = vmatprep.subr.mxu0 0.0
      %1618 = vmatpush1.msra.mxu0 0.0
      %1619 = vmatprep.subr.mxu0 0.0
      %1620 = vmatpush1.msra.mxu0 0.0
      %1621 = vmatprep.subr.mxu0 0.0
      %1622 = vmatpush1.msra.mxu0 0.0
      %1623 = vmatprep.subr.mxu0 0.0
      %1624 = vmatpush1.msra.mxu0 0.0
      %1625 = vmatprep.subr.mxu0 0.0
      %1626 = vmatpush1.msra.mxu0 0.0
      %1627 = vmatprep.mubr.f32.mxu0 0.0
      %1628 = vmatmul.mubr.f32.gmra.mrb[0].mxu0 %v1530
      %v1629 = vpop.f32.mrb[0].mxu0
      %v1630 = vadd.f32 0.0, %v1629
      %v1631 = vpop.f32.mrb[0].mxu0
      %1632 = vmatprep.mubr.f32.mxu0 0.0
      %1633 = vmatmul.mubr.f32.gmra.mrb[0].mxu0 %v1531
      %v1634 = vpop.f32.mrb[0].mxu0
      %v1635 = vadd.f32 0.0, %v1634
      %v1636 = vpop.f32.mrb[0].mxu0
      %1637 = vmatprep.mubr.f32.mxu0 0.0
      %1638 = vmatmul.mubr.f32.gmra.mrb[0].mxu0 %v1532
      %v1639 = vpop.f32.mrb[0].mxu0
      %v1640 = vadd.f32 0.0, %v1639
      %v1641 = vpop.f32.mrb[0].mxu0
      %1642 = vmatprep.mubr.f32.mxu0 0.0
      %1643 = vmatmul.mubr.f32.gmra.mrb[0].mxu0 %v1533
      %v1644 = vpop.f32.mrb[0].mxu0
      %v1645 = vadd.f32 0.0, %v1644
      %v1646 = vpop.f32.mrb[0].mxu0
      %1647 = vmatprep.mubr.f32.mxu0 0.0
      %1648 = vmatmul.mubr.f32.gmra.mrb[0].mxu0 %v1534
      %v1649 = vpop.f32.mrb[0].mxu0
      %v1650 = vadd.f32 0.0, %v1649
      %v1651 = vpop.f32.mrb[0].mxu0
      %1652 = vmatprep.mubr.f32.mxu0 0.0
      %1653 = vmatmul.mubr.f32.gmra.mrb[0].mxu0 %v1535
      %v1654 = vpop.f32.mrb[0].mxu0
      %v1655 = vadd.f32 0.0, %v1654
      %v1656 = vpop.f32.mrb[0].mxu0
      %1657 = vmatprep.mubr.f32.mxu0 0.0
      %1658 = vmatmul.mubr.f32.gmra.mrb[0].mxu0 %v1536
      %v1659 = vpop.f32.mrb[0].mxu0
      %v1660 = vadd.f32 0.0, %v1659
      %v1661 = vpop.f32.mrb[0].mxu0
      %1662 = vmatprep.mubr.f32.mxu0 0.0
      %1663 = vmatmul.mubr.f32.gmra.mrb[0].mxu0 %v1537
      %v1664 = vpop.f32.mrb[0].mxu0
      %v1665 = vadd.f32 0.0, %v1664
      %v1666 = vpop.f32.mrb[0].mxu0
      %1667 = vmatprep.mubr.f32.mxu0 0.0
      %1668 = vmatmul.mubr.f32.gmra.mrb[0].mxu0 %v1538
      %v1669 = vpop.f32.mrb[0].mxu0
      %v1670 = vadd.f32 0.0, %v1669
      %v1671 = vpop.f32.mrb[0].mxu0
      %1672 = vmatprep.mubr.f32.mxu0 0.0
      %1673 = vmatmul.mubr.f32.gmra.mrb[0].mxu0 %v1539
      %v1674 = vpop.f32.mrb[0].mxu0
      %v1675 = vadd.f32 0.0, %v1674
      %v1676 = vpop.f32.mrb[0].mxu0
      %1677 = vmatprep.mubr.f32.mxu0 0.0
      %1678 = vmatmul.mubr.f32.gmra.mrb[0].mxu0 %v1540
      %v1679 = vpop.f32.mrb[0].mxu0
      %v1680 = vadd.f32 0.0, %v1679
      %v1681 = vpop.f32.mrb[0].mxu0
      %1682 = vmatprep.mubr.f32.mxu0 0.0
      %1683 = vmatmul.mubr.f32.gmra.mrb[0].mxu0 %v1541
      %v1684 = vpop.f32.mrb[0].mxu0
      %v1685 = vadd.f32 0.0, %v1684
      %v1686 = vpop.f32.mrb[0].mxu0
      %1687 = vmatprep.mubr.f32.mxu0 0.0
      %1688 = vmatmul.mubr.f32.gmra.mrb[0].mxu0 %v1542
      %v1689 = vpop.f32.mrb[0].mxu0
      %v1690 = vadd.f32 0.0, %v1689
      %v1691 = vpop.f32.mrb[0].mxu0
      %1692 = vmatprep.mubr.f32.mxu0 0.0
      %1693 = vmatmul.mubr.f32.gmra.mrb[0].mxu0 %v1543
      %v1694 = vpop.f32.mrb[0].mxu0
      %v1695 = vadd.f32 0.0, %v1694
      %v1696 = vpop.f32.mrb[0].mxu0
      %1697 = vmatprep.mubr.f32.mxu0 0.0
      %1698 = vmatmul.mubr.f32.gmra.mrb[0].mxu0 %v1544
      %v1699 = vpop.f32.mrb[0].mxu0
      %v1700 = vadd.f32 0.0, %v1699
      %v1701 = vpop.f32.mrb[0].mxu0
      %1702 = vmatprep.mubr.f32.mxu0 0.0
      %1703 = vmatmul.mubr.f32.gmra.mrb[0].mxu0 %v1545
      %v1704 = vpop.f32.mrb[0].mxu0
      %v1705 = vadd.f32 0.0, %v1704
      %v1706 = vpop.f32.mrb[0].mxu0
      %1707 = vdwg.mxu0
      %v1708 = vlaneseq
      %v1709 = vshrl.u32 %v1708, 7
      %v1710 = vsub.s32 0, %v1709
      %v1711 = vrot.slane %v1528, %v1710
      %1713 = vrot.lane.b32.xlu0 %v1711, 64
      %v1714 = vpop.permute.xlu0 %1713
      %v1716 = vmul.f32 %v1630, %v1714
      %v1717 = vmul.f32 %v1635, %v1714
      %v1718 = vmul.f32 %v1640, %v1714
      %v1719 = vmul.f32 %v1645, %v1714
      %v1720 = vmul.f32 %v1650, %v1714
      %v1721 = vmul.f32 %v1655, %v1714
      %v1722 = vmul.f32 %v1660, %v1714
      %v1723 = vmul.f32 %v1665, %v1714
      %v1724 = vmul.f32 %v1670, %v1714
      %v1725 = vmul.f32 %v1675, %v1714
      %v1726 = vmul.f32 %v1680, %v1714
      %v1727 = vmul.f32 %v1685, %v1714
      %v1728 = vmul.f32 %v1690, %v1714
      %v1729 = vmul.f32 %v1695, %v1714
      %v1730 = vmul.f32 %v1700, %v1714
      %v1731 = vmul.f32 %v1705, %v1714
      %v1732 = vlaneseq
      %v1733 = vshrl.u32 %v1732, 7
      %v1734 = vsub.s32 0, %v1733
      %v1735 = vrot.slane %v1529, %v1734
      %1737 = vrot.lane.b32.xlu0 %v1735, 64
      %v1738 = vpop.permute.xlu0 %1737
      %v1740 = vadd.f32 %v1716, %v1738
      %v1741 = vadd.f32 %v1717, %v1738
      %v1742 = vadd.f32 %v1718, %v1738
      %v1743 = vadd.f32 %v1719, %v1738
      %v1744 = vadd.f32 %v1720, %v1738
      %v1745 = vadd.f32 %v1721, %v1738
      %v1746 = vadd.f32 %v1722, %v1738
      %v1747 = vadd.f32 %v1723, %v1738
      %v1748 = vadd.f32 %v1724, %v1738
      %v1749 = vadd.f32 %v1725, %v1738
      %v1750 = vadd.f32 %v1726, %v1738
      %v1751 = vadd.f32 %v1727, %v1738
      %v1752 = vadd.f32 %v1728, %v1738
      %v1753 = vadd.f32 %v1729, %v1738
      %v1754 = vadd.f32 %v1730, %v1738
      %v1755 = vadd.f32 %v1731, %v1738
      %v1756 = vmax.f32 %v1740, 0.0
      %v1757 = vmax.f32 %v1741, 0.0
      %v1758 = vmax.f32 %v1742, 0.0
      %v1759 = vmax.f32 %v1743, 0.0
      %v1760 = vmax.f32 %v1744, 0.0
      %v1761 = vmax.f32 %v1745, 0.0
      %v1762 = vmax.f32 %v1746, 0.0
      %v1763 = vmax.f32 %v1747, 0.0
      %v1764 = vmax.f32 %v1748, 0.0
      %v1765 = vmax.f32 %v1749, 0.0
      %v1766 = vmax.f32 %v1750, 0.0
      %v1767 = vmax.f32 %v1751, 0.0
      %v1768 = vmax.f32 %v1752, 0.0
      %v1769 = vmax.f32 %v1753, 0.0
      %v1770 = vmax.f32 %v1754, 0.0
      %v1771 = vmax.f32 %v1755, 0.0
      %1788 = vrot.lane.b32.xlu0 %v1756, 32
      %v1789 = vpop.permute.xlu0 %1788
      %1790 = vrot.lane.b32.xlu0 %v1757, 32
      %v1791 = vpop.permute.xlu0 %1790
      %1792 = vrot.lane.b32.xlu0 %v1758, 32
      %v1793 = vpop.permute.xlu0 %1792
      %1794 = vrot.lane.b32.xlu0 %v1759, 32
      %v1795 = vpop.permute.xlu0 %1794
      %1796 = vrot.lane.b32.xlu0 %v1760, 32
      %v1797 = vpop.permute.xlu0 %1796
      %1798 = vrot.lane.b32.xlu0 %v1761, 32
      %v1799 = vpop.permute.xlu0 %1798
      %1800 = vrot.lane.b32.xlu0 %v1762, 32
      %v1801 = vpop.permute.xlu0 %1800
      %1802 = vrot.lane.b32.xlu0 %v1763, 32
      %v1803 = vpop.permute.xlu0 %1802
      %1804 = vrot.lane.b32.xlu0 %v1764, 32
      %v1805 = vpop.permute.xlu0 %1804
      %1806 = vrot.lane.b32.xlu0 %v1765, 32
      %v1807 = vpop.permute.xlu0 %1806
      %1808 = vrot.lane.b32.xlu0 %v1766, 32
      %v1809 = vpop.permute.xlu0 %1808
      %1810 = vrot.lane.b32.xlu0 %v1767, 32
      %v1811 = vpop.permute.xlu0 %1810
      %1812 = vrot.lane.b32.xlu0 %v1768, 32
      %v1813 = vpop.permute.xlu0 %1812
      %1814 = vrot.lane.b32.xlu0 %v1769, 32
      %v1815 = vpop.permute.xlu0 %1814
      %1816 = vrot.lane.b32.xlu0 %v1770, 32
      %v1817 = vpop.permute.xlu0 %1816
      %1818 = vrot.lane.b32.xlu0 %v1771, 32
      %v1819 = vpop.permute.xlu0 %1818
      %1836 = vst.msk [vmem:[#allocation2] sm:$0xff] %vm454, %v1789
      %1837 = vst.msk [vmem:[#allocation2 + $0x8] sm:$0xff] %vm454, %v1791
      %1838 = vst.msk [vmem:[#allocation2 + $0x10] sm:$0xff] %vm454, %v1793
      %1839 = vst.msk [vmem:[#allocation2 + $0x18] sm:$0xff] %vm454, %v1795
      %1840 = vst.msk [vmem:[#allocation2 + $0x20] sm:$0xff] %vm454, %v1797
      %1841 = vst.msk [vmem:[#allocation2 + $0x28] sm:$0xff] %vm454, %v1799
      %1842 = vst.msk [vmem:[#allocation2 + $0x30] sm:$0xff] %vm454, %v1801
      %1843 = vst.msk [vmem:[#allocation2 + $0x38] sm:$0xff] %vm454, %v1803
      %1844 = vst.msk [vmem:[#allocation2 + $0x40] sm:$0xff] %vm454, %v1805
      %1845 = vst.msk [vmem:[#allocation2 + $0x48] sm:$0xff] %vm454, %v1807
      %1846 = vst.msk [vmem:[#allocation2 + $0x50] sm:$0xff] %vm454, %v1809
      %1847 = vst.msk [vmem:[#allocation2 + $0x58] sm:$0xff] %vm454, %v1811
      %1848 = vst.msk [vmem:[#allocation2 + $0x60] sm:$0xff] %vm454, %v1813
      %1849 = vst.msk [vmem:[#allocation2 + $0x68] sm:$0xff] %vm454, %v1815
      %1850 = vst.msk [vmem:[#allocation2 + $0x70] sm:$0xff] %vm454, %v1817
      %1851 = vst.msk [vmem:[#allocation2 + $0x78] sm:$0xff] %vm454, %v1819
      %1852 = vrot.lane.b32.xlu0 %v223, 96
      %v1853 = vpop.permute.xlu0 %1852
      %1854 = vrot.lane.b32.xlu0 %v224, 96
      %v1855 = vpop.permute.xlu0 %1854
      %1856 = vrot.lane.b32.xlu0 %v225, 96
      %v1857 = vpop.permute.xlu0 %1856
      %1858 = vrot.lane.b32.xlu0 %v226, 96
      %v1859 = vpop.permute.xlu0 %1858
      %1860 = vrot.lane.b32.xlu0 %v227, 96
      %v1861 = vpop.permute.xlu0 %1860
      %1862 = vrot.lane.b32.xlu0 %v228, 96
      %v1863 = vpop.permute.xlu0 %1862
      %1864 = vrot.lane.b32.xlu0 %v229, 96
      %v1865 = vpop.permute.xlu0 %1864
      %1866 = vrot.lane.b32.xlu0 %v230, 96
      %v1867 = vpop.permute.xlu0 %1866
      %1868 = vrot.lane.b32.xlu0 %v231, 96
      %v1869 = vpop.permute.xlu0 %1868
      %1870 = vrot.lane.b32.xlu0 %v232, 96
      %v1871 = vpop.permute.xlu0 %1870
      %1872 = vrot.lane.b32.xlu0 %v233, 96
      %v1873 = vpop.permute.xlu0 %1872
      %1874 = vrot.lane.b32.xlu0 %v234, 96
      %v1875 = vpop.permute.xlu0 %1874
      %1876 = vrot.lane.b32.xlu0 %v235, 96
      %v1877 = vpop.permute.xlu0 %1876
      %1878 = vrot.lane.b32.xlu0 %v236, 96
      %v1879 = vpop.permute.xlu0 %1878
      %1880 = vrot.lane.b32.xlu0 %v237, 96
      %v1881 = vpop.permute.xlu0 %1880
      %1882 = vrot.lane.b32.xlu0 %v238, 96
      %v1883 = vpop.permute.xlu0 %1882
      %vm1900 = vcmask 851712
      %1901 = vst.msk [vmem:[#allocation2] sm:$0xff] %vm1900, %v1853
      %1902 = vst.msk [vmem:[#allocation2 + $0x8] sm:$0xff] %vm1900, %v1855
      %1903 = vst.msk [vmem:[#allocation2 + $0x10] sm:$0xff] %vm1900, %v1857
      %1904 = vst.msk [vmem:[#allocation2 + $0x18] sm:$0xff] %vm1900, %v1859
      %1905 = vst.msk [vmem:[#allocation2 + $0x20] sm:$0xff] %vm1900, %v1861
      %1906 = vst.msk [vmem:[#allocation2 + $0x28] sm:$0xff] %vm1900, %v1863
      %1907 = vst.msk [vmem:[#allocation2 + $0x30] sm:$0xff] %vm1900, %v1865
      %1908 = vst.msk [vmem:[#allocation2 + $0x38] sm:$0xff] %vm1900, %v1867
      %1909 = vst.msk [vmem:[#allocation2 + $0x40] sm:$0xff] %vm1900, %v1869
      %1910 = vst.msk [vmem:[#allocation2 + $0x48] sm:$0xff] %vm1900, %v1871
      %1911 = vst.msk [vmem:[#allocation2 + $0x50] sm:$0xff] %vm1900, %v1873
      %1912 = vst.msk [vmem:[#allocation2 + $0x58] sm:$0xff] %vm1900, %v1875
      %1913 = vst.msk [vmem:[#allocation2 + $0x60] sm:$0xff] %vm1900, %v1877
      %1914 = vst.msk [vmem:[#allocation2 + $0x68] sm:$0xff] %vm1900, %v1879
      %1915 = vst.msk [vmem:[#allocation2 + $0x70] sm:$0xff] %vm1900, %v1881
      %1916 = vst.msk [vmem:[#allocation2 + $0x78] sm:$0xff] %vm1900, %v1883
      %v1917 = vld [vmem:[%s3 + $0x1] sm:$0x1]
      %v1918 = vld [vmem:[#allocation2] sm:$0xff]
      %v1919 = vld [vmem:[#allocation2 + $0x8] sm:$0xff]
      %v1920 = vld [vmem:[#allocation2 + $0x10] sm:$0xff]
      %v1921 = vld [vmem:[#allocation2 + $0x18] sm:$0xff]
      %v1922 = vld [vmem:[#allocation2 + $0x20] sm:$0xff]
      %v1923 = vld [vmem:[#allocation2 + $0x28] sm:$0xff]
      %v1924 = vld [vmem:[#allocation2 + $0x30] sm:$0xff]
      %v1925 = vld [vmem:[#allocation2 + $0x38] sm:$0xff]
      %v1926 = vld [vmem:[#allocation2 + $0x40] sm:$0xff]
      %v1927 = vld [vmem:[#allocation2 + $0x48] sm:$0xff]
      %v1928 = vld [vmem:[#allocation2 + $0x50] sm:$0xff]
      %v1929 = vld [vmem:[#allocation2 + $0x58] sm:$0xff]
      %v1930 = vld [vmem:[#allocation2 + $0x60] sm:$0xff]
      %v1931 = vld [vmem:[#allocation2 + $0x68] sm:$0xff]
      %v1932 = vld [vmem:[#allocation2 + $0x70] sm:$0xff]
      %v1933 = vld [vmem:[#allocation2 + $0x78] sm:$0xff]
      %s1934 = scalar_lea.vmem %s2, 384
      %v1935 = vld [vmem:[%s1934] sm:$0xff]
      %v1936 = vld [vmem:[%s1934 + $0x8] sm:$0xff]
      %v1937 = vld [vmem:[%s1934 + $0x10] sm:$0xff]
      %v1938 = vld [vmem:[%s1934 + $0x18] sm:$0xff]
      %v1939 = vld [vmem:[%s1934 + $0x20] sm:$0xff]
      %v1940 = vld [vmem:[%s1934 + $0x28] sm:$0xff]
      %v1941 = vld [vmem:[%s1934 + $0x30] sm:$0xff]
      %v1942 = vld [vmem:[%s1934 + $0x38] sm:$0xff]
      %v1943 = vld [vmem:[%s1934 + $0x40] sm:$0xff]
      %v1944 = vld [vmem:[%s1934 + $0x48] sm:$0xff]
      %v1945 = vld [vmem:[%s1934 + $0x50] sm:$0xff]
      %v1946 = vld [vmem:[%s1934 + $0x58] sm:$0xff]
      %v1947 = vld [vmem:[%s1934 + $0x60] sm:$0xff]
      %v1948 = vld [vmem:[%s1934 + $0x68] sm:$0xff]
      %v1949 = vld [vmem:[%s1934 + $0x70] sm:$0xff]
      %v1950 = vld [vmem:[%s1934 + $0x78] sm:$0xff]
      %v1951 = vlaneseq
      %v1952 = vshrl.u32 %v1951, 7
      %v1953 = vsub.s32 0, %v1952
      %v1954 = vrot.slane %v1917, %v1953
      %1956 = vrot.lane.b32.xlu0 %v1954, 32
      %v1957 = vpop.permute.xlu0 %1956
      %1959 = vmatprep.subr.mxu0 0.0
      %1960 = vmatpush1.msra.mxu0 %v1935
      %1961 = vmatprep.subr.mxu0 0.0
      %1962 = vmatpush1.msra.mxu0 %v1936
      %1963 = vmatprep.subr.mxu0 0.0
      %1964 = vmatpush1.msra.mxu0 %v1937
      %1965 = vmatprep.subr.mxu0 0.0
      %1966 = vmatpush1.msra.mxu0 %v1938
      %1967 = vmatprep.subr.mxu0 0.0
      %1968 = vmatpush1.msra.mxu0 %v1939
      %1969 = vmatprep.subr.mxu0 0.0
      %1970 = vmatpush1.msra.mxu0 %v1940
      %1971 = vmatprep.subr.mxu0 0.0
      %1972 = vmatpush1.msra.mxu0 %v1941
      %1973 = vmatprep.subr.mxu0 0.0
      %1974 = vmatpush1.msra.mxu0 %v1942
      %1975 = vmatprep.subr.mxu0 0.0
      %1976 = vmatpush1.msra.mxu0 %v1943
      %1977 = vmatprep.subr.mxu0 0.0
      %1978 = vmatpush1.msra.mxu0 %v1944
      %1979 = vmatprep.subr.mxu0 0.0
      %1980 = vmatpush1.msra.mxu0 %v1945
      %1981 = vmatprep.subr.mxu0 0.0
      %1982 = vmatpush1.msra.mxu0 %v1946
      %1983 = vmatprep.subr.mxu0 0.0
      %1984 = vmatpush1.msra.mxu0 %v1947
      %1985 = vmatprep.subr.mxu0 0.0
      %1986 = vmatpush1.msra.mxu0 %v1948
      %1987 = vmatprep.subr.mxu0 0.0
      %1988 = vmatpush1.msra.mxu0 %v1949
      %1989 = vmatprep.subr.mxu0 0.0
      %1990 = vmatpush1.msra.mxu0 %v1950
      %1991 = vmatprep.subr.mxu0 0.0
      %1992 = vmatpush1.msra.mxu0 0.0
      %1993 = vmatprep.subr.mxu0 0.0
      %1994 = vmatpush1.msra.mxu0 0.0
      %1995 = vmatprep.subr.mxu0 0.0
      %1996 = vmatpush1.msra.mxu0 0.0
      %1997 = vmatprep.subr.mxu0 0.0
      %1998 = vmatpush1.msra.mxu0 0.0
      %1999 = vmatprep.subr.mxu0 0.0
      %2000 = vmatpush1.msra.mxu0 0.0
      %2001 = vmatprep.subr.mxu0 0.0
      %2002 = vmatpush1.msra.mxu0 0.0
      %2003 = vmatprep.subr.mxu0 0.0
      %2004 = vmatpush1.msra.mxu0 0.0
      %2005 = vmatprep.subr.mxu0 0.0
      %2006 = vmatpush1.msra.mxu0 0.0
      %2007 = vmatprep.subr.mxu0 0.0
      %2008 = vmatpush1.msra.mxu0 0.0
      %2009 = vmatprep.subr.mxu0 0.0
      %2010 = vmatpush1.msra.mxu0 0.0
      %2011 = vmatprep.subr.mxu0 0.0
      %2012 = vmatpush1.msra.mxu0 0.0
      %2013 = vmatprep.subr.mxu0 0.0
      %2014 = vmatpush1.msra.mxu0 0.0
      %2015 = vmatprep.subr.mxu0 0.0
      %2016 = vmatpush1.msra.mxu0 0.0
      %2017 = vmatprep.subr.mxu0 0.0
      %2018 = vmatpush1.msra.mxu0 0.0
      %2019 = vmatprep.subr.mxu0 0.0
      %2020 = vmatpush1.msra.mxu0 0.0
      %2021 = vmatprep.subr.mxu0 0.0
      %2022 = vmatpush1.msra.mxu0 0.0
      %2023 = vmatprep.mubr.f32.mxu0 0.0
      %2024 = vmatmul.mubr.f32.gmra.mrb[0].mxu0 %v1918
      %v2025 = vpop.f32.mrb[0].mxu0
      %v2026 = vadd.f32 %v1957, %v2025
      %v2027 = vpop.f32.mrb[0].mxu0
      %2028 = vmatprep.mubr.f32.mxu0 0.0
      %2029 = vmatmul.mubr.f32.gmra.mrb[0].mxu0 %v1919
      %v2030 = vpop.f32.mrb[0].mxu0
      %v2031 = vadd.f32 %v1957, %v2030
      %v2032 = vpop.f32.mrb[0].mxu0
      %2033 = vmatprep.mubr.f32.mxu0 0.0
      %2034 = vmatmul.mubr.f32.gmra.mrb[0].mxu0 %v1920
      %v2035 = vpop.f32.mrb[0].mxu0
      %v2036 = vadd.f32 %v1957, %v2035
      %v2037 = vpop.f32.mrb[0].mxu0
      %2038 = vmatprep.mubr.f32.mxu0 0.0
      %2039 = vmatmul.mubr.f32.gmra.mrb[0].mxu0 %v1921
      %v2040 = vpop.f32.mrb[0].mxu0
      %v2041 = vadd.f32 %v1957, %v2040
      %v2042 = vpop.f32.mrb[0].mxu0
      %2043 = vmatprep.mubr.f32.mxu0 0.0
      %2044 = vmatmul.mubr.f32.gmra.mrb[0].mxu0 %v1922
      %v2045 = vpop.f32.mrb[0].mxu0
      %v2046 = vadd.f32 %v1957, %v2045
      %v2047 = vpop.f32.mrb[0].mxu0
      %2048 = vmatprep.mubr.f32.mxu0 0.0
      %2049 = vmatmul.mubr.f32.gmra.mrb[0].mxu0 %v1923
      %v2050 = vpop.f32.mrb[0].mxu0
      %v2051 = vadd.f32 %v1957, %v2050
      %v2052 = vpop.f32.mrb[0].mxu0
      %2053 = vmatprep.mubr.f32.mxu0 0.0
      %2054 = vmatmul.mubr.f32.gmra.mrb[0].mxu0 %v1924
      %v2055 = vpop.f32.mrb[0].mxu0
      %v2056 = vadd.f32 %v1957, %v2055
      %v2057 = vpop.f32.mrb[0].mxu0
      %2058 = vmatprep.mubr.f32.mxu0 0.0
      %2059 = vmatmul.mubr.f32.gmra.mrb[0].mxu0 %v1925
      %v2060 = vpop.f32.mrb[0].mxu0
      %v2061 = vadd.f32 %v1957, %v2060
      %v2062 = vpop.f32.mrb[0].mxu0
      %2063 = vmatprep.mubr.f32.mxu0 0.0
      %2064 = vmatmul.mubr.f32.gmra.mrb[0].mxu0 %v1926
      %v2065 = vpop.f32.mrb[0].mxu0
      %v2066 = vadd.f32 %v1957, %v2065
      %v2067 = vpop.f32.mrb[0].mxu0
      %2068 = vmatprep.mubr.f32.mxu0 0.0
      %2069 = vmatmul.mubr.f32.gmra.mrb[0].mxu0 %v1927
      %v2070 = vpop.f32.mrb[0].mxu0
      %v2071 = vadd.f32 %v1957, %v2070
      %v2072 = vpop.f32.mrb[0].mxu0
      %2073 = vmatprep.mubr.f32.mxu0 0.0
      %2074 = vmatmul.mubr.f32.gmra.mrb[0].mxu0 %v1928
      %v2075 = vpop.f32.mrb[0].mxu0
      %v2076 = vadd.f32 %v1957, %v2075
      %v2077 = vpop.f32.mrb[0].mxu0
      %2078 = vmatprep.mubr.f32.mxu0 0.0
      %2079 = vmatmul.mubr.f32.gmra.mrb[0].mxu0 %v1929
      %v2080 = vpop.f32.mrb[0].mxu0
      %v2081 = vadd.f32 %v1957, %v2080
      %v2082 = vpop.f32.mrb[0].mxu0
      %2083 = vmatprep.mubr.f32.mxu0 0.0
      %2084 = vmatmul.mubr.f32.gmra.mrb[0].mxu0 %v1930
      %v2085 = vpop.f32.mrb[0].mxu0
      %v2086 = vadd.f32 %v1957, %v2085
      %v2087 = vpop.f32.mrb[0].mxu0
      %2088 = vmatprep.mubr.f32.mxu0 0.0
      %2089 = vmatmul.mubr.f32.gmra.mrb[0].mxu0 %v1931
      %v2090 = vpop.f32.mrb[0].mxu0
      %v2091 = vadd.f32 %v1957, %v2090
      %v2092 = vpop.f32.mrb[0].mxu0
      %2093 = vmatprep.mubr.f32.mxu0 0.0
      %2094 = vmatmul.mubr.f32.gmra.mrb[0].mxu0 %v1932
      %v2095 = vpop.f32.mrb[0].mxu0
      %v2096 = vadd.f32 %v1957, %v2095
      %v2097 = vpop.f32.mrb[0].mxu0
      %2098 = vmatprep.mubr.f32.mxu0 0.0
      %2099 = vmatmul.mubr.f32.gmra.mrb[0].mxu0 %v1933
      %v2100 = vpop.f32.mrb[0].mxu0
      %v2101 = vadd.f32 %v1957, %v2100
      %v2102 = vpop.f32.mrb[0].mxu0
      %2103 = vdwg.mxu0
      %v2104 = vmax.f32 %v2026, 0.0
      %v2105 = vmax.f32 %v2031, 0.0
      %v2106 = vmax.f32 %v2036, 0.0
      %v2107 = vmax.f32 %v2041, 0.0
      %v2108 = vmax.f32 %v2046, 0.0
      %v2109 = vmax.f32 %v2051, 0.0
      %v2110 = vmax.f32 %v2056, 0.0
      %v2111 = vmax.f32 %v2061, 0.0
      %v2112 = vmax.f32 %v2066, 0.0
      %v2113 = vmax.f32 %v2071, 0.0
      %v2114 = vmax.f32 %v2076, 0.0
      %v2115 = vmax.f32 %v2081, 0.0
      %v2116 = vmax.f32 %v2086, 0.0
      %v2117 = vmax.f32 %v2091, 0.0
      %v2118 = vmax.f32 %v2096, 0.0
      %v2119 = vmax.f32 %v2101, 0.0
      %v2120 = vld [vmem:[%s3 + $0x8] sm:$0xff]
      %v2121 = vld [vmem:[%s3 + $0x10] sm:$0xff]
      %v2122 = vld [vmem:[%s3 + $0x18] sm:$0xff]
      %v2123 = vld [vmem:[%s3 + $0x20] sm:$0xff]
      %v2124 = vld [vmem:[%s3] sm:$0x1]
      %v2125 = vlaneseq
      %v2126 = vshrl.u32 %v2125, 7
      %v2127 = vsub.s32 0, %v2126
      %v2128 = vrot.slane %v2124, %v2127
      %v2130 = vsel %vm372, %v2104, 0
      %v2133 = vsel %vm372, %v2105, 0
      %v2136 = vsel %vm372, %v2106, 0
      %v2139 = vsel %vm372, %v2107, 0
      %v2142 = vsel %vm372, %v2108, 0
      %v2145 = vsel %vm372, %v2109, 0
      %v2148 = vsel %vm372, %v2110, 0
      %v2151 = vsel %vm372, %v2111, 0
      %v2154 = vsel %vm372, %v2112, 0
      %v2157 = vsel %vm372, %v2113, 0
      %v2160 = vsel %vm372, %v2114, 0
      %v2163 = vsel %vm372, %v2115, 0
      %v2166 = vsel %vm372, %v2116, 0
      %v2169 = vsel %vm372, %v2117, 0
      %v2172 = vsel %vm372, %v2118, 0
      %v2175 = vsel %vm372, %v2119, 0
      %2177 = vmatprep.subr.mxu0 0.0
      %2178 = vmatpush1.msra.mxu0 %v2120
      %2179 = vmatprep.subr.mxu0 0.0
      %2180 = vmatpush1.msra.mxu0 %v2121
      %2181 = vmatprep.subr.mxu0 0.0
      %2182 = vmatpush1.msra.mxu0 %v2122
      %2183 = vmatprep.subr.mxu0 0.0
      %2184 = vmatpush1.msra.mxu0 %v2123
      %2185 = vmatprep.subr.mxu0 0.0
      %2186 = vmatpush1.msra.mxu0 0.0
      %2187 = vmatprep.subr.mxu0 0.0
      %2188 = vmatpush1.msra.mxu0 0.0
      %2189 = vmatprep.subr.mxu0 0.0
      %2190 = vmatpush1.msra.mxu0 0.0
      %2191 = vmatprep.subr.mxu0 0.0
      %2192 = vmatpush1.msra.mxu0 0.0
      %2193 = vmatprep.subr.mxu0 0.0
      %2194 = vmatpush1.msra.mxu0 0.0
      %2195 = vmatprep.subr.mxu0 0.0
      %2196 = vmatpush1.msra.mxu0 0.0
      %2197 = vmatprep.subr.mxu0 0.0
      %2198 = vmatpush1.msra.mxu0 0.0
      %2199 = vmatprep.subr.mxu0 0.0
      %2200 = vmatpush1.msra.mxu0 0.0
      %2201 = vmatprep.subr.mxu0 0.0
      %2202 = vmatpush1.msra.mxu0 0.0
      %2203 = vmatprep.subr.mxu0 0.0
      %2204 = vmatpush1.msra.mxu0 0.0
      %2205 = vmatprep.subr.mxu0 0.0
      %2206 = vmatpush1.msra.mxu0 0.0
      %2207 = vmatprep.subr.mxu0 0.0
      %2208 = vmatpush1.msra.mxu0 0.0
      %2209 = vmatprep.subr.mxu0 0.0
      %2210 = vmatpush1.msra.mxu0 0.0
      %2211 = vmatprep.subr.mxu0 0.0
      %2212 = vmatpush1.msra.mxu0 0.0
      %2213 = vmatprep.subr.mxu0 0.0
      %2214 = vmatpush1.msra.mxu0 0.0
      %2215 = vmatprep.subr.mxu0 0.0
      %2216 = vmatpush1.msra.mxu0 0.0
      %2217 = vmatprep.subr.mxu0 0.0
      %2218 = vmatpush1.msra.mxu0 0.0
      %2219 = vmatprep.subr.mxu0 0.0
      %2220 = vmatpush1.msra.mxu0 0.0
      %2221 = vmatprep.subr.mxu0 0.0
      %2222 = vmatpush1.msra.mxu0 0.0
      %2223 = vmatprep.subr.mxu0 0.0
      %2224 = vmatpush1.msra.mxu0 0.0
      %2225 = vmatprep.subr.mxu0 0.0
      %2226 = vmatpush1.msra.mxu0 0.0
      %2227 = vmatprep.subr.mxu0 0.0
      %2228 = vmatpush1.msra.mxu0 0.0
      %2229 = vmatprep.subr.mxu0 0.0
      %2230 = vmatpush1.msra.mxu0 0.0
      %2231 = vmatprep.subr.mxu0 0.0
      %2232 = vmatpush1.msra.mxu0 0.0
      %2233 = vmatprep.subr.mxu0 0.0
      %2234 = vmatpush1.msra.mxu0 0.0
      %2235 = vmatprep.subr.mxu0 0.0
      %2236 = vmatpush1.msra.mxu0 0.0
      %2237 = vmatprep.subr.mxu0 0.0
      %2238 = vmatpush1.msra.mxu0 0.0
      %2239 = vmatprep.subr.mxu0 0.0
      %2240 = vmatpush1.msra.mxu0 0.0
      %2241 = vmatprep.mubr.f32.mxu0 0.0
      %2242 = vmatmul.mubr.f32.gmra.mrb[0].mxu0 %v2130
      %v2243 = vpop.f32.mrb[0].mxu0
      %v2244 = vadd.f32 %v2128, %v2243
      %v2245 = vpop.f32.mrb[0].mxu0
      %2246 = vmatprep.mubr.f32.mxu0 0.0
      %2247 = vmatmul.mubr.f32.gmra.mrb[0].mxu0 %v2133
      %v2248 = vpop.f32.mrb[0].mxu0
      %v2249 = vadd.f32 %v2128, %v2248
      %v2250 = vpop.f32.mrb[0].mxu0
      %2251 = vmatprep.mubr.f32.mxu0 0.0
      %2252 = vmatmul.mubr.f32.gmra.mrb[0].mxu0 %v2136
      %v2253 = vpop.f32.mrb[0].mxu0
      %v2254 = vadd.f32 %v2128, %v2253
      %v2255 = vpop.f32.mrb[0].mxu0
      %2256 = vmatprep.mubr.f32.mxu0 0.0
      %2257 = vmatmul.mubr.f32.gmra.mrb[0].mxu0 %v2139
      %v2258 = vpop.f32.mrb[0].mxu0
      %v2259 = vadd.f32 %v2128, %v2258
      %v2260 = vpop.f32.mrb[0].mxu0
      %2261 = vmatprep.mubr.f32.mxu0 0.0
      %2262 = vmatmul.mubr.f32.gmra.mrb[0].mxu0 %v2142
      %v2263 = vpop.f32.mrb[0].mxu0
      %v2264 = vadd.f32 %v2128, %v2263
      %v2265 = vpop.f32.mrb[0].mxu0
      %2266 = vmatprep.mubr.f32.mxu0 0.0
      %2267 = vmatmul.mubr.f32.gmra.mrb[0].mxu0 %v2145
      %v2268 = vpop.f32.mrb[0].mxu0
      %v2269 = vadd.f32 %v2128, %v2268
      %v2270 = vpop.f32.mrb[0].mxu0
      %2271 = vmatprep.mubr.f32.mxu0 0.0
      %2272 = vmatmul.mubr.f32.gmra.mrb[0].mxu0 %v2148
      %v2273 = vpop.f32.mrb[0].mxu0
      %v2274 = vadd.f32 %v2128, %v2273
      %v2275 = vpop.f32.mrb[0].mxu0
      %2276 = vmatprep.mubr.f32.mxu0 0.0
      %2277 = vmatmul.mubr.f32.gmra.mrb[0].mxu0 %v2151
      %v2278 = vpop.f32.mrb[0].mxu0
      %v2279 = vadd.f32 %v2128, %v2278
      %v2280 = vpop.f32.mrb[0].mxu0
      %2281 = vmatprep.mubr.f32.mxu0 0.0
      %2282 = vmatmul.mubr.f32.gmra.mrb[0].mxu0 %v2154
      %v2283 = vpop.f32.mrb[0].mxu0
      %v2284 = vadd.f32 %v2128, %v2283
      %v2285 = vpop.f32.mrb[0].mxu0
      %2286 = vmatprep.mubr.f32.mxu0 0.0
      %2287 = vmatmul.mubr.f32.gmra.mrb[0].mxu0 %v2157
      %v2288 = vpop.f32.mrb[0].mxu0
      %v2289 = vadd.f32 %v2128, %v2288
      %v2290 = vpop.f32.mrb[0].mxu0
      %2291 = vmatprep.mubr.f32.mxu0 0.0
      %2292 = vmatmul.mubr.f32.gmra.mrb[0].mxu0 %v2160
      %v2293 = vpop.f32.mrb[0].mxu0
      %v2294 = vadd.f32 %v2128, %v2293
      %v2295 = vpop.f32.mrb[0].mxu0
      %2296 = vmatprep.mubr.f32.mxu0 0.0
      %2297 = vmatmul.mubr.f32.gmra.mrb[0].mxu0 %v2163
      %v2298 = vpop.f32.mrb[0].mxu0
      %v2299 = vadd.f32 %v2128, %v2298
      %v2300 = vpop.f32.mrb[0].mxu0
      %2301 = vmatprep.mubr.f32.mxu0 0.0
      %2302 = vmatmul.mubr.f32.gmra.mrb[0].mxu0 %v2166
      %v2303 = vpop.f32.mrb[0].mxu0
      %v2304 = vadd.f32 %v2128, %v2303
      %v2305 = vpop.f32.mrb[0].mxu0
      %2306 = vmatprep.mubr.f32.mxu0 0.0
      %2307 = vmatmul.mubr.f32.gmra.mrb[0].mxu0 %v2169
      %v2308 = vpop.f32.mrb[0].mxu0
      %v2309 = vadd.f32 %v2128, %v2308
      %v2310 = vpop.f32.mrb[0].mxu0
      %2311 = vmatprep.mubr.f32.mxu0 0.0
      %2312 = vmatmul.mubr.f32.gmra.mrb[0].mxu0 %v2172
      %v2313 = vpop.f32.mrb[0].mxu0
      %v2314 = vadd.f32 %v2128, %v2313
      %v2315 = vpop.f32.mrb[0].mxu0
      %2316 = vmatprep.mubr.f32.mxu0 0.0
      %2317 = vmatmul.mubr.f32.gmra.mrb[0].mxu0 %v2175
      %v2318 = vpop.f32.mrb[0].mxu0
      %v2319 = vadd.f32 %v2128, %v2318
      %v2320 = vpop.f32.mrb[0].mxu0
      %2321 = vdwg.mxu0
      %v2322 = vlaneseq
      %v2323 = vand.u32 %v2322, 127
      %vm2324 = vcmp.lt.s32.totalorder %v2323, 5
      %vm2325 = vcmp.ge.s32.totalorder %v2323, 5
      %vm2326 = vcmp.lt.s32.totalorder %v2323, 15
      %vm2327 = vmand %vm2325, %vm2326
      %v2328 = vld [vmem:[%s3 + $0x3] sm:$0x1]
      %v2329 = vld [vmem:[%s3 + $0x4] sm:$0x1]
      %v2330 = vsel %vm2324, %v2244, -inf
      %v2331 = vsel %vm2324, %v2249, -inf
      %v2332 = vsel %vm2324, %v2254, -inf
      %v2333 = vsel %vm2324, %v2259, -inf
      %v2334 = vsel %vm2324, %v2264, -inf
      %v2335 = vsel %vm2324, %v2269, -inf
      %v2336 = vsel %vm2324, %v2274, -inf
      %v2337 = vsel %vm2324, %v2279, -inf
      %v2338 = vsel %vm2324, %v2284, -inf
      %v2339 = vsel %vm2324, %v2289, -inf
      %v2340 = vsel %vm2324, %v2294, -inf
      %v2341 = vsel %vm2324, %v2299, -inf
      %v2342 = vsel %vm2324, %v2304, -inf
      %v2343 = vsel %vm2324, %v2309, -inf
      %v2344 = vsel %vm2324, %v2314, -inf
      %v2345 = vsel %vm2324, %v2319, -inf
      %2346 = vmax.xlane.f32.xlu0 %v2330
      %v2347 = vpop.xlane.xlu0 %2346
      %2348 = vmax.xlane.f32.xlu0 %v2331
      %v2349 = vpop.xlane.xlu0 %2348
      %2350 = vmax.xlane.f32.xlu0 %v2332
      %v2351 = vpop.xlane.xlu0 %2350
      %2352 = vmax.xlane.f32.xlu0 %v2333
      %v2353 = vpop.xlane.xlu0 %2352
      %2354 = vmax.xlane.f32.xlu0 %v2334
      %v2355 = vpop.xlane.xlu0 %2354
      %2356 = vmax.xlane.f32.xlu0 %v2335
      %v2357 = vpop.xlane.xlu0 %2356
      %2358 = vmax.xlane.f32.xlu0 %v2336
      %v2359 = vpop.xlane.xlu0 %2358
      %2360 = vmax.xlane.f32.xlu0 %v2337
      %v2361 = vpop.xlane.xlu0 %2360
      %2362 = vmax.xlane.f32.xlu0 %v2338
      %v2363 = vpop.xlane.xlu0 %2362
      %2364 = vmax.xlane.f32.xlu0 %v2339
      %v2365 = vpop.xlane.xlu0 %2364
      %2366 = vmax.xlane.f32.xlu0 %v2340
      %v2367 = vpop.xlane.xlu0 %2366
      %2368 = vmax.xlane.f32.xlu0 %v2341
      %v2369 = vpop.xlane.xlu0 %2368
      %2370 = vmax.xlane.f32.xlu0 %v2342
      %v2371 = vpop.xlane.xlu0 %2370
      %2372 = vmax.xlane.f32.xlu0 %v2343
      %v2373 = vpop.xlane.xlu0 %2372
      %2374 = vmax.xlane.f32.xlu0 %v2344
      %v2375 = vpop.xlane.xlu0 %2374
      %2376 = vmax.xlane.f32.xlu0 %v2345
      %v2377 = vpop.xlane.xlu0 %2376
      %vm2378 = vcmp.eq.f32.partialorder %v2330, %v2347
      %vm2379 = vcmp.eq.f32.partialorder %v2331, %v2349
      %vm2380 = vcmp.eq.f32.partialorder %v2332, %v2351
      %vm2381 = vcmp.eq.f32.partialorder %v2333, %v2353
      %vm2382 = vcmp.eq.f32.partialorder %v2334, %v2355
      %vm2383 = vcmp.eq.f32.partialorder %v2335, %v2357
      %vm2384 = vcmp.eq.f32.partialorder %v2336, %v2359
      %vm2385 = vcmp.eq.f32.partialorder %v2337, %v2361
      %vm2386 = vcmp.eq.f32.partialorder %v2338, %v2363
      %vm2387 = vcmp.eq.f32.partialorder %v2339, %v2365
      %vm2388 = vcmp.eq.f32.partialorder %v2340, %v2367
      %vm2389 = vcmp.eq.f32.partialorder %v2341, %v2369
      %vm2390 = vcmp.eq.f32.partialorder %v2342, %v2371
      %vm2391 = vcmp.eq.f32.partialorder %v2343, %v2373
      %vm2392 = vcmp.eq.f32.partialorder %v2344, %v2375
      %vm2393 = vcmp.eq.f32.partialorder %v2345, %v2377
      %v2394 = vsel %vm2378, %v2323, 128
      %v2395 = vsel %vm2379, %v2323, 128
      %v2396 = vsel %vm2380, %v2323, 128
      %v2397 = vsel %vm2381, %v2323, 128
      %v2398 = vsel %vm2382, %v2323, 128
      %v2399 = vsel %vm2383, %v2323, 128
      %v2400 = vsel %vm2384, %v2323, 128
      %v2401 = vsel %vm2385, %v2323, 128
      %v2402 = vsel %vm2386, %v2323, 128
      %v2403 = vsel %vm2387, %v2323, 128
      %v2404 = vsel %vm2388, %v2323, 128
      %v2405 = vsel %vm2389, %v2323, 128
      %v2406 = vsel %vm2390, %v2323, 128
      %v2407 = vsel %vm2391, %v2323, 128
      %v2408 = vsel %vm2392, %v2323, 128
      %v2409 = vsel %vm2393, %v2323, 128
      %v2410 = vand.u32 %v2394, 65535
      %v2411 = vshra.s32 %v2394, 16
      %v2412 = vcvt.s32.f32 %v2410
      %v2413 = vcvt.s32.f32 %v2411
      %2414 = vmin.xlane.f32.xlu0 %v2413
      %v2415 = vpop.xlane.xlu0 %2414
      %vm2416 = vcmp.eq.f32.partialorder %v2413, %v2415
      %v2417 = vsel %vm2416, %v2412, inf
      %2418 = vmin.xlane.f32.xlu0 %v2417
      %v2419 = vpop.xlane.xlu0 %2418
      %v2420 = vcvt.f32.s32 %v2419
      %v2421 = vcvt.f32.s32 %v2415
      %v2422 = vshll.u32 %v2421, 16
      %v2423 = vadd.s32 %v2422, %v2420
      %v2424 = vand.u32 %v2395, 65535
      %v2425 = vshra.s32 %v2395, 16
      %v2426 = vcvt.s32.f32 %v2424
      %v2427 = vcvt.s32.f32 %v2425
      %2428 = vmin.xlane.f32.xlu0 %v2427
      %v2429 = vpop.xlane.xlu0 %2428
      %vm2430 = vcmp.eq.f32.partialorder %v2427, %v2429
      %v2431 = vsel %vm2430, %v2426, inf
      %2432 = vmin.xlane.f32.xlu0 %v2431
      %v2433 = vpop.xlane.xlu0 %2432
      %v2434 = vcvt.f32.s32 %v2433
      %v2435 = vcvt.f32.s32 %v2429
      %v2436 = vshll.u32 %v2435, 16
      %v2437 = vadd.s32 %v2436, %v2434
      %v2438 = vand.u32 %v2396, 65535
      %v2439 = vshra.s32 %v2396, 16
      %v2440 = vcvt.s32.f32 %v2438
      %v2441 = vcvt.s32.f32 %v2439
      %2442 = vmin.xlane.f32.xlu0 %v2441
      %v2443 = vpop.xlane.xlu0 %2442
      %vm2444 = vcmp.eq.f32.partialorder %v2441, %v2443
      %v2445 = vsel %vm2444, %v2440, inf
      %2446 = vmin.xlane.f32.xlu0 %v2445
      %v2447 = vpop.xlane.xlu0 %2446
      %v2448 = vcvt.f32.s32 %v2447
      %v2449 = vcvt.f32.s32 %v2443
      %v2450 = vshll.u32 %v2449, 16
      %v2451 = vadd.s32 %v2450, %v2448
      %v2452 = vand.u32 %v2397, 65535
      %v2453 = vshra.s32 %v2397, 16
      %v2454 = vcvt.s32.f32 %v2452
      %v2455 = vcvt.s32.f32 %v2453
      %2456 = vmin.xlane.f32.xlu0 %v2455
      %v2457 = vpop.xlane.xlu0 %2456
      %vm2458 = vcmp.eq.f32.partialorder %v2455, %v2457
      %v2459 = vsel %vm2458, %v2454, inf
      %2460 = vmin.xlane.f32.xlu0 %v2459
      %v2461 = vpop.xlane.xlu0 %2460
      %v2462 = vcvt.f32.s32 %v2461
      %v2463 = vcvt.f32.s32 %v2457
      %v2464 = vshll.u32 %v2463, 16
      %v2465 = vadd.s32 %v2464, %v2462
      %v2466 = vand.u32 %v2398, 65535
      %v2467 = vshra.s32 %v2398, 16
      %v2468 = vcvt.s32.f32 %v2466
      %v2469 = vcvt.s32.f32 %v2467
      %2470 = vmin.xlane.f32.xlu0 %v2469
      %v2471 = vpop.xlane.xlu0 %2470
      %vm2472 = vcmp.eq.f32.partialorder %v2469, %v2471
      %v2473 = vsel %vm2472, %v2468, inf
      %2474 = vmin.xlane.f32.xlu0 %v2473
      %v2475 = vpop.xlane.xlu0 %2474
      %v2476 = vcvt.f32.s32 %v2475
      %v2477 = vcvt.f32.s32 %v2471
      %v2478 = vshll.u32 %v2477, 16
      %v2479 = vadd.s32 %v2478, %v2476
      %v2480 = vand.u32 %v2399, 65535
      %v2481 = vshra.s32 %v2399, 16
      %v2482 = vcvt.s32.f32 %v2480
      %v2483 = vcvt.s32.f32 %v2481
      %2484 = vmin.xlane.f32.xlu0 %v2483
      %v2485 = vpop.xlane.xlu0 %2484
      %vm2486 = vcmp.eq.f32.partialorder %v2483, %v2485
      %v2487 = vsel %vm2486, %v2482, inf
      %2488 = vmin.xlane.f32.xlu0 %v2487
      %v2489 = vpop.xlane.xlu0 %2488
      %v2490 = vcvt.f32.s32 %v2489
      %v2491 = vcvt.f32.s32 %v2485
      %v2492 = vshll.u32 %v2491, 16
      %v2493 = vadd.s32 %v2492, %v2490
      %v2494 = vand.u32 %v2400, 65535
      %v2495 = vshra.s32 %v2400, 16
      %v2496 = vcvt.s32.f32 %v2494
      %v2497 = vcvt.s32.f32 %v2495
      %2498 = vmin.xlane.f32.xlu0 %v2497
      %v2499 = vpop.xlane.xlu0 %2498
      %vm2500 = vcmp.eq.f32.partialorder %v2497, %v2499
      %v2501 = vsel %vm2500, %v2496, inf
      %2502 = vmin.xlane.f32.xlu0 %v2501
      %v2503 = vpop.xlane.xlu0 %2502
      %v2504 = vcvt.f32.s32 %v2503
      %v2505 = vcvt.f32.s32 %v2499
      %v2506 = vshll.u32 %v2505, 16
      %v2507 = vadd.s32 %v2506, %v2504
      %v2508 = vand.u32 %v2401, 65535
      %v2509 = vshra.s32 %v2401, 16
      %v2510 = vcvt.s32.f32 %v2508
      %v2511 = vcvt.s32.f32 %v2509
      %2512 = vmin.xlane.f32.xlu0 %v2511
      %v2513 = vpop.xlane.xlu0 %2512
      %vm2514 = vcmp.eq.f32.partialorder %v2511, %v2513
      %v2515 = vsel %vm2514, %v2510, inf
      %2516 = vmin.xlane.f32.xlu0 %v2515
      %v2517 = vpop.xlane.xlu0 %2516
      %v2518 = vcvt.f32.s32 %v2517
      %v2519 = vcvt.f32.s32 %v2513
      %v2520 = vshll.u32 %v2519, 16
      %v2521 = vadd.s32 %v2520, %v2518
      %v2522 = vand.u32 %v2402, 65535
      %v2523 = vshra.s32 %v2402, 16
      %v2524 = vcvt.s32.f32 %v2522
      %v2525 = vcvt.s32.f32 %v2523
      %2526 = vmin.xlane.f32.xlu0 %v2525
      %v2527 = vpop.xlane.xlu0 %2526
      %vm2528 = vcmp.eq.f32.partialorder %v2525, %v2527
      %v2529 = vsel %vm2528, %v2524, inf
      %2530 = vmin.xlane.f32.xlu0 %v2529
      %v2531 = vpop.xlane.xlu0 %2530
      %v2532 = vcvt.f32.s32 %v2531
      %v2533 = vcvt.f32.s32 %v2527
      %v2534 = vshll.u32 %v2533, 16
      %v2535 = vadd.s32 %v2534, %v2532
      %v2536 = vand.u32 %v2403, 65535
      %v2537 = vshra.s32 %v2403, 16
      %v2538 = vcvt.s32.f32 %v2536
      %v2539 = vcvt.s32.f32 %v2537
      %2540 = vmin.xlane.f32.xlu0 %v2539
      %v2541 = vpop.xlane.xlu0 %2540
      %vm2542 = vcmp.eq.f32.partialorder %v2539, %v2541
      %v2543 = vsel %vm2542, %v2538, inf
      %2544 = vmin.xlane.f32.xlu0 %v2543
      %v2545 = vpop.xlane.xlu0 %2544
      %v2546 = vcvt.f32.s32 %v2545
      %v2547 = vcvt.f32.s32 %v2541
      %v2548 = vshll.u32 %v2547, 16
      %v2549 = vadd.s32 %v2548, %v2546
      %v2550 = vand.u32 %v2404, 65535
      %v2551 = vshra.s32 %v2404, 16
      %v2552 = vcvt.s32.f32 %v2550
      %v2553 = vcvt.s32.f32 %v2551
      %2554 = vmin.xlane.f32.xlu0 %v2553
      %v2555 = vpop.xlane.xlu0 %2554
      %vm2556 = vcmp.eq.f32.partialorder %v2553, %v2555
      %v2557 = vsel %vm2556, %v2552, inf
      %2558 = vmin.xlane.f32.xlu0 %v2557
      %v2559 = vpop.xlane.xlu0 %2558
      %v2560 = vcvt.f32.s32 %v2559
      %v2561 = vcvt.f32.s32 %v2555
      %v2562 = vshll.u32 %v2561, 16
      %v2563 = vadd.s32 %v2562, %v2560
      %v2564 = vand.u32 %v2405, 65535
      %v2565 = vshra.s32 %v2405, 16
      %v2566 = vcvt.s32.f32 %v2564
      %v2567 = vcvt.s32.f32 %v2565
      %2568 = vmin.xlane.f32.xlu0 %v2567
      %v2569 = vpop.xlane.xlu0 %2568
      %vm2570 = vcmp.eq.f32.partialorder %v2567, %v2569
      %v2571 = vsel %vm2570, %v2566, inf
      %2572 = vmin.xlane.f32.xlu0 %v2571
      %v2573 = vpop.xlane.xlu0 %2572
      %v2574 = vcvt.f32.s32 %v2573
      %v2575 = vcvt.f32.s32 %v2569
      %v2576 = vshll.u32 %v2575, 16
      %v2577 = vadd.s32 %v2576, %v2574
      %v2578 = vand.u32 %v2406, 65535
      %v2579 = vshra.s32 %v2406, 16
      %v2580 = vcvt.s32.f32 %v2578
      %v2581 = vcvt.s32.f32 %v2579
      %2582 = vmin.xlane.f32.xlu0 %v2581
      %v2583 = vpop.xlane.xlu0 %2582
      %vm2584 = vcmp.eq.f32.partialorder %v2581, %v2583
      %v2585 = vsel %vm2584, %v2580, inf
      %2586 = vmin.xlane.f32.xlu0 %v2585
      %v2587 = vpop.xlane.xlu0 %2586
      %v2588 = vcvt.f32.s32 %v2587
      %v2589 = vcvt.f32.s32 %v2583
      %v2590 = vshll.u32 %v2589, 16
      %v2591 = vadd.s32 %v2590, %v2588
      %v2592 = vand.u32 %v2407, 65535
      %v2593 = vshra.s32 %v2407, 16
      %v2594 = vcvt.s32.f32 %v2592
      %v2595 = vcvt.s32.f32 %v2593
      %2596 = vmin.xlane.f32.xlu0 %v2595
      %v2597 = vpop.xlane.xlu0 %2596
      %vm2598 = vcmp.eq.f32.partialorder %v2595, %v2597
      %v2599 = vsel %vm2598, %v2594, inf
      %2600 = vmin.xlane.f32.xlu0 %v2599
      %v2601 = vpop.xlane.xlu0 %2600
      %v2602 = vcvt.f32.s32 %v2601
      %v2603 = vcvt.f32.s32 %v2597
      %v2604 = vshll.u32 %v2603, 16
      %v2605 = vadd.s32 %v2604, %v2602
      %v2606 = vand.u32 %v2408, 65535
      %v2607 = vshra.s32 %v2408, 16
      %v2608 = vcvt.s32.f32 %v2606
      %v2609 = vcvt.s32.f32 %v2607
      %2610 = vmin.xlane.f32.xlu0 %v2609
      %v2611 = vpop.xlane.xlu0 %2610
      %vm2612 = vcmp.eq.f32.partialorder %v2609, %v2611
      %v2613 = vsel %vm2612, %v2608, inf
      %2614 = vmin.xlane.f32.xlu0 %v2613
      %v2615 = vpop.xlane.xlu0 %2614
      %v2616 = vcvt.f32.s32 %v2615
      %v2617 = vcvt.f32.s32 %v2611
      %v2618 = vshll.u32 %v2617, 16
      %v2619 = vadd.s32 %v2618, %v2616
      %v2620 = vand.u32 %v2409, 65535
      %v2621 = vshra.s32 %v2409, 16
      %v2622 = vcvt.s32.f32 %v2620
      %v2623 = vcvt.s32.f32 %v2621
      %2624 = vmin.xlane.f32.xlu0 %v2623
      %v2625 = vpop.xlane.xlu0 %2624
      %vm2626 = vcmp.eq.f32.partialorder %v2623, %v2625
      %v2627 = vsel %vm2626, %v2622, inf
      %2628 = vmin.xlane.f32.xlu0 %v2627
      %v2629 = vpop.xlane.xlu0 %2628
      %v2630 = vcvt.f32.s32 %v2629
      %v2631 = vcvt.f32.s32 %v2625
      %v2632 = vshll.u32 %v2631, 16
      %v2633 = vadd.s32 %v2632, %v2630
      %v2634 = vcvt.s32.f32 %v2423
      %v2635 = vcvt.s32.f32 %v2437
      %v2636 = vcvt.s32.f32 %v2451
      %v2637 = vcvt.s32.f32 %v2465
      %v2638 = vcvt.s32.f32 %v2479
      %v2639 = vcvt.s32.f32 %v2493
      %v2640 = vcvt.s32.f32 %v2507
      %v2641 = vcvt.s32.f32 %v2521
      %v2642 = vcvt.s32.f32 %v2535
      %v2643 = vcvt.s32.f32 %v2549
      %v2644 = vcvt.s32.f32 %v2563
      %v2645 = vcvt.s32.f32 %v2577
      %v2646 = vcvt.s32.f32 %v2591
      %v2647 = vcvt.s32.f32 %v2605
      %v2648 = vcvt.s32.f32 %v2619
      %v2649 = vcvt.s32.f32 %v2633
      %v2650 = vlaneseq
      %v2651 = vshrl.u32 %v2650, 7
      %v2652 = vsub.s32 0, %v2651
      %v2653 = vrot.slane %v2328, %v2652
      %vm2654 = vcmp.eq.f32.partialorder %v2634, %v2653
      %vm2655 = vcmp.eq.f32.partialorder %v2635, %v2653
      %vm2656 = vcmp.eq.f32.partialorder %v2636, %v2653
      %vm2657 = vcmp.eq.f32.partialorder %v2637, %v2653
      %vm2658 = vcmp.eq.f32.partialorder %v2638, %v2653
      %vm2659 = vcmp.eq.f32.partialorder %v2639, %v2653
      %vm2660 = vcmp.eq.f32.partialorder %v2640, %v2653
      %vm2661 = vcmp.eq.f32.partialorder %v2641, %v2653
      %vm2662 = vcmp.eq.f32.partialorder %v2642, %v2653
      %vm2663 = vcmp.eq.f32.partialorder %v2643, %v2653
      %vm2664 = vcmp.eq.f32.partialorder %v2644, %v2653
      %vm2665 = vcmp.eq.f32.partialorder %v2645, %v2653
      %vm2666 = vcmp.eq.f32.partialorder %v2646, %v2653
      %vm2667 = vcmp.eq.f32.partialorder %v2647, %v2653
      %vm2668 = vcmp.eq.f32.partialorder %v2648, %v2653
      %vm2669 = vcmp.eq.f32.partialorder %v2649, %v2653
      %v2670 = vsel %vm2654, %v2244, 0.0
      %v2671 = vsel %vm2655, %v2249, 0.0
      %v2672 = vsel %vm2656, %v2254, 0.0
      %v2673 = vsel %vm2657, %v2259, 0.0
      %v2674 = vsel %vm2658, %v2264, 0.0
      %v2675 = vsel %vm2659, %v2269, 0.0
      %v2676 = vsel %vm2660, %v2274, 0.0
      %v2677 = vsel %vm2661, %v2279, 0.0
      %v2678 = vsel %vm2662, %v2284, 0.0
      %v2679 = vsel %vm2663, %v2289, 0.0
      %v2680 = vsel %vm2664, %v2294, 0.0
      %v2681 = vsel %vm2665, %v2299, 0.0
      %v2682 = vsel %vm2666, %v2304, 0.0
      %v2683 = vsel %vm2667, %v2309, 0.0
      %v2684 = vsel %vm2668, %v2314, 0.0
      %v2685 = vsel %vm2669, %v2319, 0.0
      %v2686 = vsel %vm2327, %v2670, -inf
      %v2687 = vsel %vm2327, %v2671, -inf
      %v2688 = vsel %vm2327, %v2672, -inf
      %v2689 = vsel %vm2327, %v2673, -inf
      %v2690 = vsel %vm2327, %v2674, -inf
      %v2691 = vsel %vm2327, %v2675, -inf
      %v2692 = vsel %vm2327, %v2676, -inf
      %v2693 = vsel %vm2327, %v2677, -inf
      %v2694 = vsel %vm2327, %v2678, -inf
      %v2695 = vsel %vm2327, %v2679, -inf
      %v2696 = vsel %vm2327, %v2680, -inf
      %v2697 = vsel %vm2327, %v2681, -inf
      %v2698 = vsel %vm2327, %v2682, -inf
      %v2699 = vsel %vm2327, %v2683, -inf
      %v2700 = vsel %vm2327, %v2684, -inf
      %v2701 = vsel %vm2327, %v2685, -inf
      %2702 = vmax.xlane.f32.xlu0 %v2686
      %v2703 = vpop.xlane.xlu0 %2702
      %2704 = vmax.xlane.f32.xlu0 %v2687
      %v2705 = vpop.xlane.xlu0 %2704
      %2706 = vmax.xlane.f32.xlu0 %v2688
      %v2707 = vpop.xlane.xlu0 %2706
      %2708 = vmax.xlane.f32.xlu0 %v2689
      %v2709 = vpop.xlane.xlu0 %2708
      %2710 = vmax.xlane.f32.xlu0 %v2690
      %v2711 = vpop.xlane.xlu0 %2710
      %2712 = vmax.xlane.f32.xlu0 %v2691
      %v2713 = vpop.xlane.xlu0 %2712
      %2714 = vmax.xlane.f32.xlu0 %v2692
      %v2715 = vpop.xlane.xlu0 %2714
      %2716 = vmax.xlane.f32.xlu0 %v2693
      %v2717 = vpop.xlane.xlu0 %2716
      %2718 = vmax.xlane.f32.xlu0 %v2694
      %v2719 = vpop.xlane.xlu0 %2718
      %2720 = vmax.xlane.f32.xlu0 %v2695
      %v2721 = vpop.xlane.xlu0 %2720
      %2722 = vmax.xlane.f32.xlu0 %v2696
      %v2723 = vpop.xlane.xlu0 %2722
      %2724 = vmax.xlane.f32.xlu0 %v2697
      %v2725 = vpop.xlane.xlu0 %2724
      %2726 = vmax.xlane.f32.xlu0 %v2698
      %v2727 = vpop.xlane.xlu0 %2726
      %2728 = vmax.xlane.f32.xlu0 %v2699
      %v2729 = vpop.xlane.xlu0 %2728
      %2730 = vmax.xlane.f32.xlu0 %v2700
      %v2731 = vpop.xlane.xlu0 %2730
      %2732 = vmax.xlane.f32.xlu0 %v2701
      %v2733 = vpop.xlane.xlu0 %2732
      %vm2734 = vcmp.eq.f32.partialorder %v2686, %v2703
      %vm2735 = vcmp.eq.f32.partialorder %v2687, %v2705
      %vm2736 = vcmp.eq.f32.partialorder %v2688, %v2707
      %vm2737 = vcmp.eq.f32.partialorder %v2689, %v2709
      %vm2738 = vcmp.eq.f32.partialorder %v2690, %v2711
      %vm2739 = vcmp.eq.f32.partialorder %v2691, %v2713
      %vm2740 = vcmp.eq.f32.partialorder %v2692, %v2715
      %vm2741 = vcmp.eq.f32.partialorder %v2693, %v2717
      %vm2742 = vcmp.eq.f32.partialorder %v2694, %v2719
      %vm2743 = vcmp.eq.f32.partialorder %v2695, %v2721
      %vm2744 = vcmp.eq.f32.partialorder %v2696, %v2723
      %vm2745 = vcmp.eq.f32.partialorder %v2697, %v2725
      %vm2746 = vcmp.eq.f32.partialorder %v2698, %v2727
      %vm2747 = vcmp.eq.f32.partialorder %v2699, %v2729
      %vm2748 = vcmp.eq.f32.partialorder %v2700, %v2731
      %vm2749 = vcmp.eq.f32.partialorder %v2701, %v2733
      %v2750 = vsel %vm2734, %v2323, 128
      %v2751 = vsel %vm2735, %v2323, 128
      %v2752 = vsel %vm2736, %v2323, 128
      %v2753 = vsel %vm2737, %v2323, 128
      %v2754 = vsel %vm2738, %v2323, 128
      %v2755 = vsel %vm2739, %v2323, 128
      %v2756 = vsel %vm2740, %v2323, 128
      %v2757 = vsel %vm2741, %v2323, 128
      %v2758 = vsel %vm2742, %v2323, 128
      %v2759 = vsel %vm2743, %v2323, 128
      %v2760 = vsel %vm2744, %v2323, 128
      %v2761 = vsel %vm2745, %v2323, 128
      %v2762 = vsel %vm2746, %v2323, 128
      %v2763 = vsel %vm2747, %v2323, 128
      %v2764 = vsel %vm2748, %v2323, 128
      %v2765 = vsel %vm2749, %v2323, 128
      %v2766 = vand.u32 %v2750, 65535
      %v2767 = vshra.s32 %v2750, 16
      %v2768 = vcvt.s32.f32 %v2766
      %v2769 = vcvt.s32.f32 %v2767
      %2770 = vmin.xlane.f32.xlu0 %v2769
      %v2771 = vpop.xlane.xlu0 %2770
      %vm2772 = vcmp.eq.f32.partialorder %v2769, %v2771
      %v2773 = vsel %vm2772, %v2768, inf
      %2774 = vmin.xlane.f32.xlu0 %v2773
      %v2775 = vpop.xlane.xlu0 %2774
      %v2776 = vcvt.f32.s32 %v2775
      %v2777 = vcvt.f32.s32 %v2771
      %v2778 = vshll.u32 %v2777, 16
      %v2779 = vadd.s32 %v2778, %v2776
      %v2780 = vand.u32 %v2751, 65535
      %v2781 = vshra.s32 %v2751, 16
      %v2782 = vcvt.s32.f32 %v2780
      %v2783 = vcvt.s32.f32 %v2781
      %2784 = vmin.xlane.f32.xlu0 %v2783
      %v2785 = vpop.xlane.xlu0 %2784
      %vm2786 = vcmp.eq.f32.partialorder %v2783, %v2785
      %v2787 = vsel %vm2786, %v2782, inf
      %2788 = vmin.xlane.f32.xlu0 %v2787
      %v2789 = vpop.xlane.xlu0 %2788
      %v2790 = vcvt.f32.s32 %v2789
      %v2791 = vcvt.f32.s32 %v2785
      %v2792 = vshll.u32 %v2791, 16
      %v2793 = vadd.s32 %v2792, %v2790
      %v2794 = vand.u32 %v2752, 65535
      %v2795 = vshra.s32 %v2752, 16
      %v2796 = vcvt.s32.f32 %v2794
      %v2797 = vcvt.s32.f32 %v2795
      %2798 = vmin.xlane.f32.xlu0 %v2797
      %v2799 = vpop.xlane.xlu0 %2798
      %vm2800 = vcmp.eq.f32.partialorder %v2797, %v2799
      %v2801 = vsel %vm2800, %v2796, inf
      %2802 = vmin.xlane.f32.xlu0 %v2801
      %v2803 = vpop.xlane.xlu0 %2802
      %v2804 = vcvt.f32.s32 %v2803
      %v2805 = vcvt.f32.s32 %v2799
      %v2806 = vshll.u32 %v2805, 16
      %v2807 = vadd.s32 %v2806, %v2804
      %v2808 = vand.u32 %v2753, 65535
      %v2809 = vshra.s32 %v2753, 16
      %v2810 = vcvt.s32.f32 %v2808
      %v2811 = vcvt.s32.f32 %v2809
      %2812 = vmin.xlane.f32.xlu0 %v2811
      %v2813 = vpop.xlane.xlu0 %2812
      %vm2814 = vcmp.eq.f32.partialorder %v2811, %v2813
      %v2815 = vsel %vm2814, %v2810, inf
      %2816 = vmin.xlane.f32.xlu0 %v2815
      %v2817 = vpop.xlane.xlu0 %2816
      %v2818 = vcvt.f32.s32 %v2817
      %v2819 = vcvt.f32.s32 %v2813
      %v2820 = vshll.u32 %v2819, 16
      %v2821 = vadd.s32 %v2820, %v2818
      %v2822 = vand.u32 %v2754, 65535
      %v2823 = vshra.s32 %v2754, 16
      %v2824 = vcvt.s32.f32 %v2822
      %v2825 = vcvt.s32.f32 %v2823
      %2826 = vmin.xlane.f32.xlu0 %v2825
      %v2827 = vpop.xlane.xlu0 %2826
      %vm2828 = vcmp.eq.f32.partialorder %v2825, %v2827
      %v2829 = vsel %vm2828, %v2824, inf
      %2830 = vmin.xlane.f32.xlu0 %v2829
      %v2831 = vpop.xlane.xlu0 %2830
      %v2832 = vcvt.f32.s32 %v2831
      %v2833 = vcvt.f32.s32 %v2827
      %v2834 = vshll.u32 %v2833, 16
      %v2835 = vadd.s32 %v2834, %v2832
      %v2836 = vand.u32 %v2755, 65535
      %v2837 = vshra.s32 %v2755, 16
      %v2838 = vcvt.s32.f32 %v2836
      %v2839 = vcvt.s32.f32 %v2837
      %2840 = vmin.xlane.f32.xlu0 %v2839
      %v2841 = vpop.xlane.xlu0 %2840
      %vm2842 = vcmp.eq.f32.partialorder %v2839, %v2841
      %v2843 = vsel %vm2842, %v2838, inf
      %2844 = vmin.xlane.f32.xlu0 %v2843
      %v2845 = vpop.xlane.xlu0 %2844
      %v2846 = vcvt.f32.s32 %v2845
      %v2847 = vcvt.f32.s32 %v2841
      %v2848 = vshll.u32 %v2847, 16
      %v2849 = vadd.s32 %v2848, %v2846
      %v2850 = vand.u32 %v2756, 65535
      %v2851 = vshra.s32 %v2756, 16
      %v2852 = vcvt.s32.f32 %v2850
      %v2853 = vcvt.s32.f32 %v2851
      %2854 = vmin.xlane.f32.xlu0 %v2853
      %v2855 = vpop.xlane.xlu0 %2854
      %vm2856 = vcmp.eq.f32.partialorder %v2853, %v2855
      %v2857 = vsel %vm2856, %v2852, inf
      %2858 = vmin.xlane.f32.xlu0 %v2857
      %v2859 = vpop.xlane.xlu0 %2858
      %v2860 = vcvt.f32.s32 %v2859
      %v2861 = vcvt.f32.s32 %v2855
      %v2862 = vshll.u32 %v2861, 16
      %v2863 = vadd.s32 %v2862, %v2860
      %v2864 = vand.u32 %v2757, 65535
      %v2865 = vshra.s32 %v2757, 16
      %v2866 = vcvt.s32.f32 %v2864
      %v2867 = vcvt.s32.f32 %v2865
      %2868 = vmin.xlane.f32.xlu0 %v2867
      %v2869 = vpop.xlane.xlu0 %2868
      %vm2870 = vcmp.eq.f32.partialorder %v2867, %v2869
      %v2871 = vsel %vm2870, %v2866, inf
      %2872 = vmin.xlane.f32.xlu0 %v2871
      %v2873 = vpop.xlane.xlu0 %2872
      %v2874 = vcvt.f32.s32 %v2873
      %v2875 = vcvt.f32.s32 %v2869
      %v2876 = vshll.u32 %v2875, 16
      %v2877 = vadd.s32 %v2876, %v2874
      %v2878 = vand.u32 %v2758, 65535
      %v2879 = vshra.s32 %v2758, 16
      %v2880 = vcvt.s32.f32 %v2878
      %v2881 = vcvt.s32.f32 %v2879
      %2882 = vmin.xlane.f32.xlu0 %v2881
      %v2883 = vpop.xlane.xlu0 %2882
      %vm2884 = vcmp.eq.f32.partialorder %v2881, %v2883
      %v2885 = vsel %vm2884, %v2880, inf
      %2886 = vmin.xlane.f32.xlu0 %v2885
      %v2887 = vpop.xlane.xlu0 %2886
      %v2888 = vcvt.f32.s32 %v2887
      %v2889 = vcvt.f32.s32 %v2883
      %v2890 = vshll.u32 %v2889, 16
      %v2891 = vadd.s32 %v2890, %v2888
      %v2892 = vand.u32 %v2759, 65535
      %v2893 = vshra.s32 %v2759, 16
      %v2894 = vcvt.s32.f32 %v2892
      %v2895 = vcvt.s32.f32 %v2893
      %2896 = vmin.xlane.f32.xlu0 %v2895
      %v2897 = vpop.xlane.xlu0 %2896
      %vm2898 = vcmp.eq.f32.partialorder %v2895, %v2897
      %v2899 = vsel %vm2898, %v2894, inf
      %2900 = vmin.xlane.f32.xlu0 %v2899
      %v2901 = vpop.xlane.xlu0 %2900
      %v2902 = vcvt.f32.s32 %v2901
      %v2903 = vcvt.f32.s32 %v2897
      %v2904 = vshll.u32 %v2903, 16
      %v2905 = vadd.s32 %v2904, %v2902
      %v2906 = vand.u32 %v2760, 65535
      %v2907 = vshra.s32 %v2760, 16
      %v2908 = vcvt.s32.f32 %v2906
      %v2909 = vcvt.s32.f32 %v2907
      %2910 = vmin.xlane.f32.xlu0 %v2909
      %v2911 = vpop.xlane.xlu0 %2910
      %vm2912 = vcmp.eq.f32.partialorder %v2909, %v2911
      %v2913 = vsel %vm2912, %v2908, inf
      %2914 = vmin.xlane.f32.xlu0 %v2913
      %v2915 = vpop.xlane.xlu0 %2914
      %v2916 = vcvt.f32.s32 %v2915
      %v2917 = vcvt.f32.s32 %v2911
      %v2918 = vshll.u32 %v2917, 16
      %v2919 = vadd.s32 %v2918, %v2916
      %v2920 = vand.u32 %v2761, 65535
      %v2921 = vshra.s32 %v2761, 16
      %v2922 = vcvt.s32.f32 %v2920
      %v2923 = vcvt.s32.f32 %v2921
      %2924 = vmin.xlane.f32.xlu0 %v2923
      %v2925 = vpop.xlane.xlu0 %2924
      %vm2926 = vcmp.eq.f32.partialorder %v2923, %v2925
      %v2927 = vsel %vm2926, %v2922, inf
      %2928 = vmin.xlane.f32.xlu0 %v2927
      %v2929 = vpop.xlane.xlu0 %2928
      %v2930 = vcvt.f32.s32 %v2929
      %v2931 = vcvt.f32.s32 %v2925
      %v2932 = vshll.u32 %v2931, 16
      %v2933 = vadd.s32 %v2932, %v2930
      %v2934 = vand.u32 %v2762, 65535
      %v2935 = vshra.s32 %v2762, 16
      %v2936 = vcvt.s32.f32 %v2934
      %v2937 = vcvt.s32.f32 %v2935
      %2938 = vmin.xlane.f32.xlu0 %v2937
      %v2939 = vpop.xlane.xlu0 %2938
      %vm2940 = vcmp.eq.f32.partialorder %v2937, %v2939
      %v2941 = vsel %vm2940, %v2936, inf
      %2942 = vmin.xlane.f32.xlu0 %v2941
      %v2943 = vpop.xlane.xlu0 %2942
      %v2944 = vcvt.f32.s32 %v2943
      %v2945 = vcvt.f32.s32 %v2939
      %v2946 = vshll.u32 %v2945, 16
      %v2947 = vadd.s32 %v2946, %v2944
      %v2948 = vand.u32 %v2763, 65535
      %v2949 = vshra.s32 %v2763, 16
      %v2950 = vcvt.s32.f32 %v2948
      %v2951 = vcvt.s32.f32 %v2949
      %2952 = vmin.xlane.f32.xlu0 %v2951
      %v2953 = vpop.xlane.xlu0 %2952
      %vm2954 = vcmp.eq.f32.partialorder %v2951, %v2953
      %v2955 = vsel %vm2954, %v2950, inf
      %2956 = vmin.xlane.f32.xlu0 %v2955
      %v2957 = vpop.xlane.xlu0 %2956
      %v2958 = vcvt.f32.s32 %v2957
      %v2959 = vcvt.f32.s32 %v2953
      %v2960 = vshll.u32 %v2959, 16
      %v2961 = vadd.s32 %v2960, %v2958
      %v2962 = vand.u32 %v2764, 65535
      %v2963 = vshra.s32 %v2764, 16
      %v2964 = vcvt.s32.f32 %v2962
      %v2965 = vcvt.s32.f32 %v2963
      %2966 = vmin.xlane.f32.xlu0 %v2965
      %v2967 = vpop.xlane.xlu0 %2966
      %vm2968 = vcmp.eq.f32.partialorder %v2965, %v2967
      %v2969 = vsel %vm2968, %v2964, inf
      %2970 = vmin.xlane.f32.xlu0 %v2969
      %v2971 = vpop.xlane.xlu0 %2970
      %v2972 = vcvt.f32.s32 %v2971
      %v2973 = vcvt.f32.s32 %v2967
      %v2974 = vshll.u32 %v2973, 16
      %v2975 = vadd.s32 %v2974, %v2972
      %v2976 = vand.u32 %v2765, 65535
      %v2977 = vshra.s32 %v2765, 16
      %v2978 = vcvt.s32.f32 %v2976
      %v2979 = vcvt.s32.f32 %v2977
      %2980 = vmin.xlane.f32.xlu0 %v2979
      %v2981 = vpop.xlane.xlu0 %2980
      %vm2982 = vcmp.eq.f32.partialorder %v2979, %v2981
      %v2983 = vsel %vm2982, %v2978, inf
      %2984 = vmin.xlane.f32.xlu0 %v2983
      %v2985 = vpop.xlane.xlu0 %2984
      %v2986 = vcvt.f32.s32 %v2985
      %v2987 = vcvt.f32.s32 %v2981
      %v2988 = vshll.u32 %v2987, 16
      %v2989 = vadd.s32 %v2988, %v2986
      %v2990 = vsub.s32 %v2779, 5
      %v2991 = vsub.s32 %v2793, 5
      %v2992 = vsub.s32 %v2807, 5
      %v2993 = vsub.s32 %v2821, 5
      %v2994 = vsub.s32 %v2835, 5
      %v2995 = vsub.s32 %v2849, 5
      %v2996 = vsub.s32 %v2863, 5
      %v2997 = vsub.s32 %v2877, 5
      %v2998 = vsub.s32 %v2891, 5
      %v2999 = vsub.s32 %v2905, 5
      %v3000 = vsub.s32 %v2919, 5
      %v3001 = vsub.s32 %v2933, 5
      %v3002 = vsub.s32 %v2947, 5
      %v3003 = vsub.s32 %v2961, 5
      %v3004 = vsub.s32 %v2975, 5
      %v3005 = vsub.s32 %v2989, 5
      %v3006 = vcvt.s32.f32 %v2990
      %v3007 = vcvt.s32.f32 %v2991
      %v3008 = vcvt.s32.f32 %v2992
      %v3009 = vcvt.s32.f32 %v2993
      %v3010 = vcvt.s32.f32 %v2994
      %v3011 = vcvt.s32.f32 %v2995
      %v3012 = vcvt.s32.f32 %v2996
      %v3013 = vcvt.s32.f32 %v2997
      %v3014 = vcvt.s32.f32 %v2998
      %v3015 = vcvt.s32.f32 %v2999
      %v3016 = vcvt.s32.f32 %v3000
      %v3017 = vcvt.s32.f32 %v3001
      %v3018 = vcvt.s32.f32 %v3002
      %v3019 = vcvt.s32.f32 %v3003
      %v3020 = vcvt.s32.f32 %v3004
      %v3021 = vcvt.s32.f32 %v3005
      %v3022 = vlaneseq
      %v3023 = vshrl.u32 %v3022, 7
      %v3024 = vsub.s32 0, %v3023
      %v3025 = vrot.slane %v2329, %v3024
      %vm3026 = vcmp.eq.f32.partialorder %v3006, %v3025
      %vm3027 = vcmp.eq.f32.partialorder %v3007, %v3025
      %vm3028 = vcmp.eq.f32.partialorder %v3008, %v3025
      %vm3029 = vcmp.eq.f32.partialorder %v3009, %v3025
      %vm3030 = vcmp.eq.f32.partialorder %v3010, %v3025
      %vm3031 = vcmp.eq.f32.partialorder %v3011, %v3025
      %vm3032 = vcmp.eq.f32.partialorder %v3012, %v3025
      %vm3033 = vcmp.eq.f32.partialorder %v3013, %v3025
      %vm3034 = vcmp.eq.f32.partialorder %v3014, %v3025
      %vm3035 = vcmp.eq.f32.partialorder %v3015, %v3025
      %vm3036 = vcmp.eq.f32.partialorder %v3016, %v3025
      %vm3037 = vcmp.eq.f32.partialorder %v3017, %v3025
      %vm3038 = vcmp.eq.f32.partialorder %v3018, %v3025
      %vm3039 = vcmp.eq.f32.partialorder %v3019, %v3025
      %vm3040 = vcmp.eq.f32.partialorder %v3020, %v3025
      %vm3041 = vcmp.eq.f32.partialorder %v3021, %v3025
      %v3042 = vsel %vm3026, %v2244, 0.0
      %v3043 = vsel %vm3027, %v2249, 0.0
      %v3044 = vsel %vm3028, %v2254, 0.0
      %v3045 = vsel %vm3029, %v2259, 0.0
      %v3046 = vsel %vm3030, %v2264, 0.0
      %v3047 = vsel %vm3031, %v2269, 0.0
      %v3048 = vsel %vm3032, %v2274, 0.0
      %v3049 = vsel %vm3033, %v2279, 0.0
      %v3050 = vsel %vm3034, %v2284, 0.0
      %v3051 = vsel %vm3035, %v2289, 0.0
      %v3052 = vsel %vm3036, %v2294, 0.0
      %v3053 = vsel %vm3037, %v2299, 0.0
      %v3054 = vsel %vm3038, %v2304, 0.0
      %v3055 = vsel %vm3039, %v2309, 0.0
      %v3056 = vsel %vm3040, %v2314, 0.0
      %v3057 = vsel %vm3041, %v2319, 0.0
      %v3058 = vsel %vm2324, %v2244, 0.0
      %v3059 = vsel %vm2324, %v2249, 0.0
      %v3060 = vsel %vm2324, %v2254, 0.0
      %v3061 = vsel %vm2324, %v2259, 0.0
      %v3062 = vsel %vm2324, %v2264, 0.0
      %v3063 = vsel %vm2324, %v2269, 0.0
      %v3064 = vsel %vm2324, %v2274, 0.0
      %v3065 = vsel %vm2324, %v2279, 0.0
      %v3066 = vsel %vm2324, %v2284, 0.0
      %v3067 = vsel %vm2324, %v2289, 0.0
      %v3068 = vsel %vm2324, %v2294, 0.0
      %v3069 = vsel %vm2324, %v2299, 0.0
      %v3070 = vsel %vm2324, %v2304, 0.0
      %v3071 = vsel %vm2324, %v2309, 0.0
      %v3072 = vsel %vm2324, %v2314, 0.0
      %v3073 = vsel %vm2324, %v2319, 0.0
      %v3074 = vadd.f32 %v3058, %v2670
      %v3075 = vadd.f32 %v3059, %v2671
      %v3076 = vadd.f32 %v3060, %v2672
      %v3077 = vadd.f32 %v3061, %v2673
      %v3078 = vadd.f32 %v3062, %v2674
      %v3079 = vadd.f32 %v3063, %v2675
      %v3080 = vadd.f32 %v3064, %v2676
      %v3081 = vadd.f32 %v3065, %v2677
      %v3082 = vadd.f32 %v3066, %v2678
      %v3083 = vadd.f32 %v3067, %v2679
      %v3084 = vadd.f32 %v3068, %v2680
      %v3085 = vadd.f32 %v3069, %v2681
      %v3086 = vadd.f32 %v3070, %v2682
      %v3087 = vadd.f32 %v3071, %v2683
      %v3088 = vadd.f32 %v3072, %v2684
      %v3089 = vadd.f32 %v3073, %v2685
      %v3090 = vadd.f32 %v3074, %v3042
      %v3091 = vadd.f32 %v3075, %v3043
      %v3092 = vadd.f32 %v3076, %v3044
      %v3093 = vadd.f32 %v3077, %v3045
      %v3094 = vadd.f32 %v3078, %v3046
      %v3095 = vadd.f32 %v3079, %v3047
      %v3096 = vadd.f32 %v3080, %v3048
      %v3097 = vadd.f32 %v3081, %v3049
      %v3098 = vadd.f32 %v3082, %v3050
      %v3099 = vadd.f32 %v3083, %v3051
      %v3100 = vadd.f32 %v3084, %v3052
      %v3101 = vadd.f32 %v3085, %v3053
      %v3102 = vadd.f32 %v3086, %v3054
      %v3103 = vadd.f32 %v3087, %v3055
      %v3104 = vadd.f32 %v3088, %v3056
      %v3105 = vadd.f32 %v3089, %v3057
      %3106 = vst [vmem:[%s221] sm:$0xff] %v3090
      %3107 = vst [vmem:[%s221 + $0x8] sm:$0xff] %v3091
      %3108 = vst [vmem:[%s221 + $0x10] sm:$0xff] %v3092
      %3109 = vst [vmem:[%s221 + $0x18] sm:$0xff] %v3093
      %3110 = vst [vmem:[%s221 + $0x20] sm:$0xff] %v3094
      %3111 = vst [vmem:[%s221 + $0x28] sm:$0xff] %v3095
      %3112 = vst [vmem:[%s221 + $0x30] sm:$0xff] %v3096
      %3113 = vst [vmem:[%s221 + $0x38] sm:$0xff] %v3097
      %3114 = vst [vmem:[%s221 + $0x40] sm:$0xff] %v3098
      %3115 = vst [vmem:[%s221 + $0x48] sm:$0xff] %v3099
      %3116 = vst [vmem:[%s221 + $0x50] sm:$0xff] %v3100
      %3117 = vst [vmem:[%s221 + $0x58] sm:$0xff] %v3101
      %3118 = vst [vmem:[%s221 + $0x60] sm:$0xff] %v3102
      %3119 = vst [vmem:[%s221 + $0x68] sm:$0xff] %v3103
      %3120 = vst [vmem:[%s221 + $0x70] sm:$0xff] %v3104
      %3121 = vst [vmem:[%s221 + $0x78] sm:$0xff] %v3105
      %s3122 = smul.u32 16, %s15
      %p3123 = scmp.lt.s32.totalorder %s3122, 31
      %s3124 = scalar_select %p3123, %s3122, 31
      %s3125 = smul.addr %s3124, 8
      %s3126 = scalar_lea.vmem %s4, %s3125
      // Predicated region
      $region37: #{cnn_net_forward.1} parent=35 // pred_check
        %p3127 = pneg %p127
      $region38: #{cnn_net_forward.1} parent=35 // pred_check_branch
        %3129 = sbr.rel (%p3127) target = $region40
      $region39: #{cnn_net_forward.1} parent=35 // pred_region
        %s3130 = smul.u32 16, %s15
      $region40: #{cnn_net_forward.1} parent=35 // pred_fallthru
        _
    $region36: #{cnn_net_forward.1} parent=5 // pred_fallthru
      _
    %p3131 = scmp.le.s32.totalorder 2, %s10
    // Predicated region
    $region41: #{cnn_net_forward.1} parent=5 // pred_check
      %p3132 = pneg %p3131
    $region42: #{cnn_net_forward.1} parent=5 // pred_check_branch
      %3134 = sbr.rel (%p3132) target = $region44
    $region43: #{cnn_net_forward.1} parent=5 // pred_region
      %s3135 = ssub.s32 %s10, 2
      // Predicated region
      $region45: #{cnn_net_forward.1} parent=43 // pred_check
        %p3136 = pneg %p133
      $region46: #{cnn_net_forward.1} parent=43 // pred_check_branch
        %3138 = sbr.rel (%p3136) target = $region48
      $region47: #{cnn_net_forward.1} parent=43 // pred_region
        %s3139 = smul.u32 16, %s16
        %p3140 = scmp.lt.s32.totalorder %s3139, 31
        %s3141 = scalar_select %p3140, %s3139, 31
        %s3142 = smul.addr %s3141, 8
        %s3143 = scalar_lea.vmem %s4, %s3142
      $region48: #{cnn_net_forward.1} parent=43 // pred_fallthru
        _
    $region44: #{cnn_net_forward.1} parent=5 // pred_fallthru
      _
  $region6: #{cnn_net_forward.1} parent=0 // loop_footer
    %s14 = sadd.s32 1, %s10
  $region7: #{cnn_net_forward.1} parent=0 // loop_footer_branch
    %9 = sbr.rel target = $region3
  $region8: #{cnn_net_forward.1} parent=0 // loop_exit
    _

</llo_original>
